<compile_context>
chip_gen: v7x
topology: tpu7x:2x2x1
jax: 0.10.0
libtpu: 0.0.40
codegen_flags: <defaults>
</compile_context>

<pallas_src>
import functools

import numpy as np
import jax
import jax.numpy as jnp
from jax import lax
from jax.experimental import pallas as pl
from jax.experimental.pallas import tpu as pltpu


def _fused_kernel(x_ref, w1_ref, b1_ref, w2_ref, b2_ref, mask_ref,
                  out_ref, patch_ref, buf_ref, *,
                  k1, k2, cin, cout, wp, hw, np_, lead, k1c, k2c, avg_k, slope):
  """One batch element; everything in (channels, flat padded grid) layout.

  x_ref    : (Cin, Np + ext1)   flattened, zero-padded + zero-extended input
  w1_ref   : (Cout, k1^3*Cin)   rows ordered (kd, kh, kw, cin)
  b1_ref   : (Cout, 1)
  w2_ref   : (Cout, k2^3*Cout)
  b2_ref   : (Cout, 1)
  mask_ref : (1, Np)            1.0 where the grid slot is a valid conv1 output
  out_ref  : (Cout, Np)         2x2x2 window averages at every grid slot
  patch_ref: (max(K1,K2), Np)   im2col scratch
  buf_ref  : (Cout, Le)         zero-extended staging buffer
  """
  pad_front = ((lead + 127) // 128) * 128   # lane-aligned offset for the z1 store
  base2 = pad_front - lead

  # -------- conv1: im2col (lane-shifted slices) + one (Cout,K1)@(K1,Np) dot --
  for kd in range(k1):
    for kh in range(k1):
      for kw in range(k1):
        t = (kd * k1 + kh) * k1 + kw
        off = kd * hw + kh * wp + kw
        patch_ref[t * cin:(t + 1) * cin, :] = x_ref[:, off:off + np_]
  z1 = jnp.dot(w1_ref[...], patch_ref[0:k1c, :],
               preferred_element_type=jnp.float32)
  z1 = z1 + b1_ref[...]
  z1 = jnp.where(z1 >= 0, z1, slope * z1)          # LeakyReLU(0.01)
  z1 = z1 * mask_ref[...]                          # zero non-valid grid slots

  # -------- stage conv1 output re-centred by pad2 (= conv2's zero padding) ---
  buf_ref[...] = jnp.zeros(buf_ref.shape, jnp.float32)   # tiny, lane-dense
  buf_ref[:, pad_front:pad_front + np_] = z1

  # -------- conv2: im2col + one (Cout,K2)@(K2,Np) dot ------------------------
  for kd in range(k2):
    for kh in range(k2):
      for kw in range(k2):
        t = (kd * k2 + kh) * k2 + kw
        off = base2 + kd * hw + kh * wp + kw
        patch_ref[t * cout:(t + 1) * cout, :] = buf_ref[:, off:off + np_]
  z2 = jnp.dot(w2_ref[...], patch_ref[0:k2c, :],
               preferred_element_type=jnp.float32)
  z2 = z2 + b2_ref[...]
  z2 = jnp.where(z2 >= 0, z2, slope * z2)          # LeakyReLU(0.01)

  # -------- AvgPool3d window sums: shifted-slice adds on the VPU -------------
  buf_ref[...] = jnp.zeros(buf_ref.shape, jnp.float32)
  buf_ref[:, 0:np_] = z2
  s = z2
  for dd in range(avg_k):
    for hh in range(avg_k):
      for ww in range(avg_k):
        if dd == 0 and hh == 0 and ww == 0:
          continue
        off = dd * hw + hh * wp + ww
        s = s + buf_ref[:, off:off + np_]
  out_ref[...] = s * (1.0 / float(avg_k ** 3))


def conv3d_leakyrelu(x, w1, b1, w2, b2, *, padding, pad2=1, stride=1,
                     avg_kernel=2, avg_stride=2, avg_pad=0,
                     negative_slope=0.01):
  """x: (B, Cin, D, H, W) NCDHW; w: (Cout, Cin, k, k, k) OIDHW (PyTorch layouts).

  Returns (B, Cout, Do, Ho, Wo) NCDHW, matching the PyTorch module.
  """
  assert stride == 1   # TODO(synk): strided convs not implemented (module default is 1)
  assert avg_pad == 0  # TODO(synk): padded AvgPool3d not implemented (module default is 0)
  B, cin, D, H, W = x.shape
  cout, _, k1 = w1.shape[:3]
  k2 = w2.shape[2]
  # Both convs run on one shared flattened padded grid; this needs conv2's
  # padded extent to equal conv1's padded extent.
  assert 2 * pad2 == k1 - 1, "TODO(synk): general pad2 needs a second staging grid"

  dp, hp, wp = D + 2 * padding, H + 2 * padding, W + 2 * padding
  hw, np_ = hp * wp, dp * hp * wp
  d1, h1, w1v = dp - k1 + 1, hp - k1 + 1, wp - k1 + 1
  d2, h2, w2v = dp - k2 + 1, hp - k2 + 1, wp - k2 + 1
  do_ = (d2 - avg_kernel) // avg_stride + 1
  ho_ = (h2 - avg_kernel) // avg_stride + 1
  wo_ = (w2v - avg_kernel) // avg_stride + 1

  ext1 = (k1 - 1) * (hw + wp + 1)
  lead = pad2 * (hw + wp + 1)
  ext2 = (k2 - 1) * (hw + wp + 1)
  pe = (avg_kernel - 1) * (hw + wp + 1)
  pad_front = ((lead + 127) // 128) * 128
  le = max(np_ + (pad_front - lead) + ext2, np_ + pe, pad_front + np_)
  k1c, k2c = k1 ** 3 * cin, k2 ** 3 * cout

  # ---- glue: flatten + zero-extend input, flatten weights, validity mask ----
  xp = jnp.pad(x.astype(jnp.float32),
               ((0, 0), (0, 0), (padding, padding), (padding, padding),
                (padding, padding)))
  xf = jnp.pad(xp.reshape(B, cin, np_), ((0, 0), (0, 0), (0, ext1)))

  w1m = jnp.transpose(w1.astype(jnp.float32), (0, 2, 3, 4, 1)).reshape(cout, k1c)
  w2m = jnp.transpose(w2.astype(jnp.float32), (0, 2, 3, 4, 1)).reshape(cout, k2c)
  b1m = b1.astype(jnp.float32).reshape(cout, 1)
  b2m = b2.astype(jnp.float32).reshape(cout, 1)

  vmask = ((np.arange(dp) < d1)[:, None, None]
           & (np.arange(hp) < h1)[None, :, None]
           & (np.arange(wp) < w1v)[None, None, :])
  vmask = jnp.asarray(vmask.reshape(1, np_).astype(np.float32))

  kernel = functools.partial(
      _fused_kernel, k1=k1, k2=k2, cin=cin, cout=cout, wp=wp, hw=hw, np_=np_,
      lead=lead, k1c=k1c, k2c=k2c, avg_k=avg_kernel, slope=negative_slope)

  sums = pl.pallas_call(
      kernel,
      out_shape=jax.ShapeDtypeStruct((B, cout, np_), jnp.float32),
      grid_spec=pltpu.PrefetchScalarGridSpec(
          num_scalar_prefetch=0,
          grid=(B,),
          in_specs=[
              pl.BlockSpec((None, cin, np_ + ext1), lambda b: (b, 0, 0)),
              pl.BlockSpec((cout, k1c), lambda b: (0, 0)),
              pl.BlockSpec((cout, 1), lambda b: (0, 0)),
              pl.BlockSpec((cout, k2c), lambda b: (0, 0)),
              pl.BlockSpec((cout, 1), lambda b: (0, 0)),
              pl.BlockSpec((1, np_), lambda b: (0, 0)),
          ],
          out_specs=pl.BlockSpec((None, cout, np_), lambda b: (b, 0, 0)),
          scratch_shapes=[
              pltpu.VMEM((max(k1c, k2c), np_), jnp.float32),
              pltpu.VMEM((cout, le), jnp.float32),
          ]),
      compiler_params=pltpu.CompilerParams(
          dimension_semantics=("parallel",)),   # v7x: shard batch over 2 TCs
  )(xf, w1m, b1m, w2m, b2m, vmask)

  # glue: stride-2 subsample of the in-kernel pooled averages (pure view only).
  s5 = sums.reshape(B, cout, dp, hp, wp)
  out = s5[:, :,
           0:avg_stride * do_:avg_stride,
           0:avg_stride * ho_:avg_stride,
           0:avg_stride * wo_:avg_stride]
  return out.astype(x.dtype)


if __name__ == "__main__":
  # Conv3d_LeakyReLU(in_channels=4, out_channels=8, kernel_size=3, padding=1)
  # with module defaults kernel2=kernel_size, pad2=1, stride=1,
  # avg_kernel=avg_stride=2, avg_pad=0.
  B, Cin, Cout, D, H, W = 2, 4, 8, 8, 8, 8
  k, pad = 3, 1
  k2_, pad2 = k, 1

  key = jax.random.PRNGKey(0)
  kx, kw1, kb1, kw2, kb2 = jax.random.split(key, 5)
  x = jax.random.normal(kx, (B, Cin, D, H, W), jnp.float32)             # NCDHW
  w1 = jax.random.normal(kw1, (Cout, Cin, k, k, k), jnp.float32) * 0.1  # OIDHW
  b1 = jax.random.normal(kb1, (Cout,), jnp.float32) * 0.1
  w2 = jax.random.normal(kw2, (Cout, Cout, k2_, k2_, k2_), jnp.float32) * 0.1
  b2 = jax.random.normal(kb2, (Cout,), jnp.float32) * 0.1

  out = conv3d_leakyrelu(x, w1, b1, w2, b2, padding=pad, pad2=pad2)
  out = jax.block_until_ready(out)

  # pure-JAX reference mirroring the PyTorch module (NCDHW throughout).
  def ref(xi):
    y = lax.conv_general_dilated(xi, w1, (1, 1, 1), [(pad, pad)] * 3,
                                 dimension_numbers=("NCDHW", "OIDHW", "NCDHW"),
                                 precision=lax.Precision.HIGHEST)
    y = y + b1[None, :, None, None, None]
    y = jnp.where(y >= 0, y, 0.01 * y)
    y = lax.conv_general_dilated(y, w2, (1, 1, 1), [(pad2, pad2)] * 3,
                                 dimension_numbers=("NCDHW", "OIDHW", "NCDHW"),
                                 precision=lax.Precision.HIGHEST)
    y = y + b2[None, :, None, None, None]
    y = jnp.where(y >= 0, y, 0.01 * y)
    b_, c_, d_, h_, w_ = y.shape
    y = y.reshape(b_, c_, d_ // 2, 2, h_ // 2, 2, w_ // 2, 2).mean(axis=(3, 5, 7))
    return y                                                           # NCDHW

  expected = jax.block_until_ready(ref(x))
  assert out.shape == expected.shape, (out.shape, expected.shape)
  err = float(jnp.max(jnp.abs(out - expected)))
  assert jnp.allclose(out, expected, atol=1e-4, rtol=1e-4), f"max abs err {err}"
  print("KERNEL_OK")
</pallas_src>

<mosaic_0001>
module attributes {stable_mosaic.version = 11 : i64} {
  func.func @_fused_kernel(%arg0: i32, %arg1: memref<1x4x1222xf32, #tpu.memory_space<vmem>>, %arg2: memref<8x108xf32, #tpu.memory_space<vmem>>, %arg3: memref<8x1xf32, #tpu.memory_space<vmem>>, %arg4: memref<8x216xf32, #tpu.memory_space<vmem>>, %arg5: memref<8x1xf32, #tpu.memory_space<vmem>>, %arg6: memref<1x1000xf32, #tpu.memory_space<vmem>>, %arg7: memref<1x8x1000xf32, #tpu.memory_space<vmem>>, %arg8: memref<216x1000xf32, #tpu.memory_space<vmem>>, %arg9: memref<8x1239xf32, #tpu.memory_space<vmem>>) attributes {dimension_semantics = [#tpu.dimension_semantics<parallel>], iteration_bounds = array<i64: 2>, scalar_prefetch = 0 : i64, scratch_operands = 2 : i64, tpu.core_type = #tpu.core_type<tc>, window_params = [{transform_indices = @transform_0, window_bounds = array<i64: 1, 4, 1222>}, {pipeline_mode = #tpu.pipeline_mode<synchronous>, transform_indices = @transform_1, window_bounds = array<i64: 8, 108>}, {pipeline_mode = #tpu.pipeline_mode<synchronous>, transform_indices = @transform_2, window_bounds = array<i64: 8, 1>}, {pipeline_mode = #tpu.pipeline_mode<synchronous>, transform_indices = @transform_3, window_bounds = array<i64: 8, 216>}, {pipeline_mode = #tpu.pipeline_mode<synchronous>, transform_indices = @transform_4, window_bounds = array<i64: 8, 1>}, {pipeline_mode = #tpu.pipeline_mode<synchronous>, transform_indices = @transform_5, window_bounds = array<i64: 1, 1000>}, {transform_indices = @transform_6, window_bounds = array<i64: 1, 8, 1000>}]} {
    %c0 = arith.constant 0 : index
    %c0_0 = arith.constant 0 : index
    %c0_1 = arith.constant 0 : index
    %0 = vector.load %arg1[%c0, %c0_0, %c0_1] : memref<1x4x1222xf32, #tpu.memory_space<vmem>>, vector<1x4x1000xf32>
    %1 = vector.shape_cast %0 : vector<1x4x1000xf32> to vector<4x1000xf32>
    %c0_2 = arith.constant 0 : index
    %c0_3 = arith.constant 0 : index
    %2 = vector.load %arg8[%c0_2, %c0_3] : memref<216x1000xf32, #tpu.memory_space<vmem>>, vector<4x1000xf32>
    tpu.vector_store %arg8[%c0_2, %c0_3], %1 {strides = array<i32>} : memref<216x1000xf32, #tpu.memory_space<vmem>>, vector<4x1000xf32>,
    %c0_4 = arith.constant 0 : index
    %c0_5 = arith.constant 0 : index
    %c1 = arith.constant 1 : index
    %3 = vector.load %arg1[%c0_4, %c0_5, %c1] : memref<1x4x1222xf32, #tpu.memory_space<vmem>>, vector<1x4x1000xf32>
    %4 = vector.shape_cast %3 : vector<1x4x1000xf32> to vector<4x1000xf32>
    %c4 = arith.constant 4 : index
    %c0_6 = arith.constant 0 : index
    %5 = vector.load %arg8[%c4, %c0_6] : memref<216x1000xf32, #tpu.memory_space<vmem>>, vector<4x1000xf32>
    tpu.vector_store %arg8[%c4, %c0_6], %4 {strides = array<i32>} : memref<216x1000xf32, #tpu.memory_space<vmem>>, vector<4x1000xf32>,
    %c0_7 = arith.constant 0 : index
    %c0_8 = arith.constant 0 : index
    %c2 = arith.constant 2 : index
    %6 = vector.load %arg1[%c0_7, %c0_8, %c2] : memref<1x4x1222xf32, #tpu.memory_space<vmem>>, vector<1x4x1000xf32>
    %7 = vector.shape_cast %6 : vector<1x4x1000xf32> to vector<4x1000xf32>
    %c8 = arith.constant 8 : index
    %c0_9 = arith.constant 0 : index
    %8 = vector.load %arg8[%c8, %c0_9] : memref<216x1000xf32, #tpu.memory_space<vmem>>, vector<4x1000xf32>
    tpu.vector_store %arg8[%c8, %c0_9], %7 {strides = array<i32>} : memref<216x1000xf32, #tpu.memory_space<vmem>>, vector<4x1000xf32>,
    %c0_10 = arith.constant 0 : index
    %c0_11 = arith.constant 0 : index
    %c10 = arith.constant 10 : index
    %9 = vector.load %arg1[%c0_10, %c0_11, %c10] : memref<1x4x1222xf32, #tpu.memory_space<vmem>>, vector<1x4x1000xf32>
    %10 = vector.shape_cast %9 : vector<1x4x1000xf32> to vector<4x1000xf32>
    %c12 = arith.constant 12 : index
    %c0_12 = arith.constant 0 : index
    %11 = vector.load %arg8[%c12, %c0_12] : memref<216x1000xf32, #tpu.memory_space<vmem>>, vector<4x1000xf32>
    tpu.vector_store %arg8[%c12, %c0_12], %10 {strides = array<i32>} : memref<216x1000xf32, #tpu.memory_space<vmem>>, vector<4x1000xf32>,
    %c0_13 = arith.constant 0 : index
    %c0_14 = arith.constant 0 : index
    %c11 = arith.constant 11 : index
    %12 = vector.load %arg1[%c0_13, %c0_14, %c11] : memref<1x4x1222xf32, #tpu.memory_space<vmem>>, vector<1x4x1000xf32>
    %13 = vector.shape_cast %12 : vector<1x4x1000xf32> to vector<4x1000xf32>
    %c16 = arith.constant 16 : index
    %c0_15 = arith.constant 0 : index
    %14 = vector.load %arg8[%c16, %c0_15] : memref<216x1000xf32, #tpu.memory_space<vmem>>, vector<4x1000xf32>
    tpu.vector_store %arg8[%c16, %c0_15], %13 {strides = array<i32>} : memref<216x1000xf32, #tpu.memory_space<vmem>>, vector<4x1000xf32>,
    %c0_16 = arith.constant 0 : index
    %c0_17 = arith.constant 0 : index
    %c12_18 = arith.constant 12 : index
    %15 = vector.load %arg1[%c0_16, %c0_17, %c12_18] : memref<1x4x1222xf32, #tpu.memory_space<vmem>>, vector<1x4x1000xf32>
    %16 = vector.shape_cast %15 : vector<1x4x1000xf32> to vector<4x1000xf32>
    %c20 = arith.constant 20 : index
    %c0_19 = arith.constant 0 : index
    %17 = vector.load %arg8[%c20, %c0_19] : memref<216x1000xf32, #tpu.memory_space<vmem>>, vector<4x1000xf32>
    tpu.vector_store %arg8[%c20, %c0_19], %16 {strides = array<i32>} : memref<216x1000xf32, #tpu.memory_space<vmem>>, vector<4x1000xf32>,
    %c0_20 = arith.constant 0 : index
    %c0_21 = arith.constant 0 : index
    %c20_22 = arith.constant 20 : index
    %18 = vector.load %arg1[%c0_20, %c0_21, %c20_22] : memref<1x4x1222xf32, #tpu.memory_space<vmem>>, vector<1x4x1000xf32>
    %19 = vector.shape_cast %18 : vector<1x4x1000xf32> to vector<4x1000xf32>
    %c24 = arith.constant 24 : index
    %c0_23 = arith.constant 0 : index
    %20 = vector.load %arg8[%c24, %c0_23] : memref<216x1000xf32, #tpu.memory_space<vmem>>, vector<4x1000xf32>
    tpu.vector_store %arg8[%c24, %c0_23], %19 {strides = array<i32>} : memref<216x1000xf32, #tpu.memory_space<vmem>>, vector<4x1000xf32>,
    %c0_24 = arith.constant 0 : index
    %c0_25 = arith.constant 0 : index
    %c21 = arith.constant 21 : index
    %21 = vector.load %arg1[%c0_24, %c0_25, %c21] : memref<1x4x1222xf32, #tpu.memory_space<vmem>>, vector<1x4x1000xf32>
    %22 = vector.shape_cast %21 : vector<1x4x1000xf32> to vector<4x1000xf32>
    %c28 = arith.constant 28 : index
    %c0_26 = arith.constant 0 : index
    %23 = vector.load %arg8[%c28, %c0_26] : memref<216x1000xf32, #tpu.memory_space<vmem>>, vector<4x1000xf32>
    tpu.vector_store %arg8[%c28, %c0_26], %22 {strides = array<i32>} : memref<216x1000xf32, #tpu.memory_space<vmem>>, vector<4x1000xf32>,
    %c0_27 = arith.constant 0 : index
    %c0_28 = arith.constant 0 : index
    %c22 = arith.constant 22 : index
    %24 = vector.load %arg1[%c0_27, %c0_28, %c22] : memref<1x4x1222xf32, #tpu.memory_space<vmem>>, vector<1x4x1000xf32>
    %25 = vector.shape_cast %24 : vector<1x4x1000xf32> to vector<4x1000xf32>
    %c32 = arith.constant 32 : index
    %c0_29 = arith.constant 0 : index
    %26 = vector.load %arg8[%c32, %c0_29] : memref<216x1000xf32, #tpu.memory_space<vmem>>, vector<4x1000xf32>
    tpu.vector_store %arg8[%c32, %c0_29], %25 {strides = array<i32>} : memref<216x1000xf32, #tpu.memory_space<vmem>>, vector<4x1000xf32>,
    %c0_30 = arith.constant 0 : index
    %c0_31 = arith.constant 0 : index
    %c100 = arith.constant 100 : index
    %27 = vector.load %arg1[%c0_30, %c0_31, %c100] : memref<1x4x1222xf32, #tpu.memory_space<vmem>>, vector<1x4x1000xf32>
    %28 = vector.shape_cast %27 : vector<1x4x1000xf32> to vector<4x1000xf32>
    %c36 = arith.constant 36 : index
    %c0_32 = arith.constant 0 : index
    %29 = vector.load %arg8[%c36, %c0_32] : memref<216x1000xf32, #tpu.memory_space<vmem>>, vector<4x1000xf32>
    tpu.vector_store %arg8[%c36, %c0_32], %28 {strides = array<i32>} : memref<216x1000xf32, #tpu.memory_space<vmem>>, vector<4x1000xf32>,
    %c0_33 = arith.constant 0 : index
    %c0_34 = arith.constant 0 : index
    %c101 = arith.constant 101 : index
    %30 = vector.load %arg1[%c0_33, %c0_34, %c101] : memref<1x4x1222xf32, #tpu.memory_space<vmem>>, vector<1x4x1000xf32>
    %31 = vector.shape_cast %30 : vector<1x4x1000xf32> to vector<4x1000xf32>
    %c40 = arith.constant 40 : index
    %c0_35 = arith.constant 0 : index
    %32 = vector.load %arg8[%c40, %c0_35] : memref<216x1000xf32, #tpu.memory_space<vmem>>, vector<4x1000xf32>
    tpu.vector_store %arg8[%c40, %c0_35], %31 {strides = array<i32>} : memref<216x1000xf32, #tpu.memory_space<vmem>>, vector<4x1000xf32>,
    %c0_36 = arith.constant 0 : index
    %c0_37 = arith.constant 0 : index
    %c102 = arith.constant 102 : index
    %33 = vector.load %arg1[%c0_36, %c0_37, %c102] : memref<1x4x1222xf32, #tpu.memory_space<vmem>>, vector<1x4x1000xf32>
    %34 = vector.shape_cast %33 : vector<1x4x1000xf32> to vector<4x1000xf32>
    %c44 = arith.constant 44 : index
    %c0_38 = arith.constant 0 : index
    %35 = vector.load %arg8[%c44, %c0_38] : memref<216x1000xf32, #tpu.memory_space<vmem>>, vector<4x1000xf32>
    tpu.vector_store %arg8[%c44, %c0_38], %34 {strides = array<i32>} : memref<216x1000xf32, #tpu.memory_space<vmem>>, vector<4x1000xf32>,
    %c0_39 = arith.constant 0 : index
    %c0_40 = arith.constant 0 : index
    %c110 = arith.constant 110 : index
    %36 = vector.load %arg1[%c0_39, %c0_40, %c110] : memref<1x4x1222xf32, #tpu.memory_space<vmem>>, vector<1x4x1000xf32>
    %37 = vector.shape_cast %36 : vector<1x4x1000xf32> to vector<4x1000xf32>
    %c48 = arith.constant 48 : index
    %c0_41 = arith.constant 0 : index
    %38 = vector.load %arg8[%c48, %c0_41] : memref<216x1000xf32, #tpu.memory_space<vmem>>, vector<4x1000xf32>
    tpu.vector_store %arg8[%c48, %c0_41], %37 {strides = array<i32>} : memref<216x1000xf32, #tpu.memory_space<vmem>>, vector<4x1000xf32>,
    %c0_42 = arith.constant 0 : index
    %c0_43 = arith.constant 0 : index
    %c111 = arith.constant 111 : index
    %39 = vector.load %arg1[%c0_42, %c0_43, %c111] : memref<1x4x1222xf32, #tpu.memory_space<vmem>>, vector<1x4x1000xf32>
    %40 = vector.shape_cast %39 : vector<1x4x1000xf32> to vector<4x1000xf32>
    %c52 = arith.constant 52 : index
    %c0_44 = arith.constant 0 : index
    %41 = vector.load %arg8[%c52, %c0_44] : memref<216x1000xf32, #tpu.memory_space<vmem>>, vector<4x1000xf32>
    tpu.vector_store %arg8[%c52, %c0_44], %40 {strides = array<i32>} : memref<216x1000xf32, #tpu.memory_space<vmem>>, vector<4x1000xf32>,
    %c0_45 = arith.constant 0 : index
    %c0_46 = arith.constant 0 : index
    %c112 = arith.constant 112 : index
    %42 = vector.load %arg1[%c0_45, %c0_46, %c112] : memref<1x4x1222xf32, #tpu.memory_space<vmem>>, vector<1x4x1000xf32>
    %43 = vector.shape_cast %42 : vector<1x4x1000xf32> to vector<4x1000xf32>
    %c56 = arith.constant 56 : index
    %c0_47 = arith.constant 0 : index
    %44 = vector.load %arg8[%c56, %c0_47] : memref<216x1000xf32, #tpu.memory_space<vmem>>, vector<4x1000xf32>
    tpu.vector_store %arg8[%c56, %c0_47], %43 {strides = array<i32>} : memref<216x1000xf32, #tpu.memory_space<vmem>>, vector<4x1000xf32>,
    %c0_48 = arith.constant 0 : index
    %c0_49 = arith.constant 0 : index
    %c120 = arith.constant 120 : index
    %45 = vector.load %arg1[%c0_48, %c0_49, %c120] : memref<1x4x1222xf32, #tpu.memory_space<vmem>>, vector<1x4x1000xf32>
    %46 = vector.shape_cast %45 : vector<1x4x1000xf32> to vector<4x1000xf32>
    %c60 = arith.constant 60 : index
    %c0_50 = arith.constant 0 : index
    %47 = vector.load %arg8[%c60, %c0_50] : memref<216x1000xf32, #tpu.memory_space<vmem>>, vector<4x1000xf32>
    tpu.vector_store %arg8[%c60, %c0_50], %46 {strides = array<i32>} : memref<216x1000xf32, #tpu.memory_space<vmem>>, vector<4x1000xf32>,
    %c0_51 = arith.constant 0 : index
    %c0_52 = arith.constant 0 : index
    %c121 = arith.constant 121 : index
    %48 = vector.load %arg1[%c0_51, %c0_52, %c121] : memref<1x4x1222xf32, #tpu.memory_space<vmem>>, vector<1x4x1000xf32>
    %49 = vector.shape_cast %48 : vector<1x4x1000xf32> to vector<4x1000xf32>
    %c64 = arith.constant 64 : index
    %c0_53 = arith.constant 0 : index
    %50 = vector.load %arg8[%c64, %c0_53] : memref<216x1000xf32, #tpu.memory_space<vmem>>, vector<4x1000xf32>
    tpu.vector_store %arg8[%c64, %c0_53], %49 {strides = array<i32>} : memref<216x1000xf32, #tpu.memory_space<vmem>>, vector<4x1000xf32>,
    %c0_54 = arith.constant 0 : index
    %c0_55 = arith.constant 0 : index
    %c122 = arith.constant 122 : index
    %51 = vector.load %arg1[%c0_54, %c0_55, %c122] : memref<1x4x1222xf32, #tpu.memory_space<vmem>>, vector<1x4x1000xf32>
    %52 = vector.shape_cast %51 : vector<1x4x1000xf32> to vector<4x1000xf32>
    %c68 = arith.constant 68 : index
    %c0_56 = arith.constant 0 : index
    %53 = vector.load %arg8[%c68, %c0_56] : memref<216x1000xf32, #tpu.memory_space<vmem>>, vector<4x1000xf32>
    tpu.vector_store %arg8[%c68, %c0_56], %52 {strides = array<i32>} : memref<216x1000xf32, #tpu.memory_space<vmem>>, vector<4x1000xf32>,
    %c0_57 = arith.constant 0 : index
    %c0_58 = arith.constant 0 : index
    %c200 = arith.constant 200 : index
    %54 = vector.load %arg1[%c0_57, %c0_58, %c200] : memref<1x4x1222xf32, #tpu.memory_space<vmem>>, vector<1x4x1000xf32>
    %55 = vector.shape_cast %54 : vector<1x4x1000xf32> to vector<4x1000xf32>
    %c72 = arith.constant 72 : index
    %c0_59 = arith.constant 0 : index
    %56 = vector.load %arg8[%c72, %c0_59] : memref<216x1000xf32, #tpu.memory_space<vmem>>, vector<4x1000xf32>
    tpu.vector_store %arg8[%c72, %c0_59], %55 {strides = array<i32>} : memref<216x1000xf32, #tpu.memory_space<vmem>>, vector<4x1000xf32>,
    %c0_60 = arith.constant 0 : index
    %c0_61 = arith.constant 0 : index
    %c201 = arith.constant 201 : index
    %57 = vector.load %arg1[%c0_60, %c0_61, %c201] : memref<1x4x1222xf32, #tpu.memory_space<vmem>>, vector<1x4x1000xf32>
    %58 = vector.shape_cast %57 : vector<1x4x1000xf32> to vector<4x1000xf32>
    %c76 = arith.constant 76 : index
    %c0_62 = arith.constant 0 : index
    %59 = vector.load %arg8[%c76, %c0_62] : memref<216x1000xf32, #tpu.memory_space<vmem>>, vector<4x1000xf32>
    tpu.vector_store %arg8[%c76, %c0_62], %58 {strides = array<i32>} : memref<216x1000xf32, #tpu.memory_space<vmem>>, vector<4x1000xf32>,
    %c0_63 = arith.constant 0 : index
    %c0_64 = arith.constant 0 : index
    %c202 = arith.constant 202 : index
    %60 = vector.load %arg1[%c0_63, %c0_64, %c202] : memref<1x4x1222xf32, #tpu.memory_space<vmem>>, vector<1x4x1000xf32>
    %61 = vector.shape_cast %60 : vector<1x4x1000xf32> to vector<4x1000xf32>
    %c80 = arith.constant 80 : index
    %c0_65 = arith.constant 0 : index
    %62 = vector.load %arg8[%c80, %c0_65] : memref<216x1000xf32, #tpu.memory_space<vmem>>, vector<4x1000xf32>
    tpu.vector_store %arg8[%c80, %c0_65], %61 {strides = array<i32>} : memref<216x1000xf32, #tpu.memory_space<vmem>>, vector<4x1000xf32>,
    %c0_66 = arith.constant 0 : index
    %c0_67 = arith.constant 0 : index
    %c210 = arith.constant 210 : index
    %63 = vector.load %arg1[%c0_66, %c0_67, %c210] : memref<1x4x1222xf32, #tpu.memory_space<vmem>>, vector<1x4x1000xf32>
    %64 = vector.shape_cast %63 : vector<1x4x1000xf32> to vector<4x1000xf32>
    %c84 = arith.constant 84 : index
    %c0_68 = arith.constant 0 : index
    %65 = vector.load %arg8[%c84, %c0_68] : memref<216x1000xf32, #tpu.memory_space<vmem>>, vector<4x1000xf32>
    tpu.vector_store %arg8[%c84, %c0_68], %64 {strides = array<i32>} : memref<216x1000xf32, #tpu.memory_space<vmem>>, vector<4x1000xf32>,
    %c0_69 = arith.constant 0 : index
    %c0_70 = arith.constant 0 : index
    %c211 = arith.constant 211 : index
    %66 = vector.load %arg1[%c0_69, %c0_70, %c211] : memref<1x4x1222xf32, #tpu.memory_space<vmem>>, vector<1x4x1000xf32>
    %67 = vector.shape_cast %66 : vector<1x4x1000xf32> to vector<4x1000xf32>
    %c88 = arith.constant 88 : index
    %c0_71 = arith.constant 0 : index
    %68 = vector.load %arg8[%c88, %c0_71] : memref<216x1000xf32, #tpu.memory_space<vmem>>, vector<4x1000xf32>
    tpu.vector_store %arg8[%c88, %c0_71], %67 {strides = array<i32>} : memref<216x1000xf32, #tpu.memory_space<vmem>>, vector<4x1000xf32>,
    %c0_72 = arith.constant 0 : index
    %c0_73 = arith.constant 0 : index
    %c212 = arith.constant 212 : index
    %69 = vector.load %arg1[%c0_72, %c0_73, %c212] : memref<1x4x1222xf32, #tpu.memory_space<vmem>>, vector<1x4x1000xf32>
    %70 = vector.shape_cast %69 : vector<1x4x1000xf32> to vector<4x1000xf32>
    %c92 = arith.constant 92 : index
    %c0_74 = arith.constant 0 : index
    %71 = vector.load %arg8[%c92, %c0_74] : memref<216x1000xf32, #tpu.memory_space<vmem>>, vector<4x1000xf32>
    tpu.vector_store %arg8[%c92, %c0_74], %70 {strides = array<i32>} : memref<216x1000xf32, #tpu.memory_space<vmem>>, vector<4x1000xf32>,
    %c0_75 = arith.constant 0 : index
    %c0_76 = arith.constant 0 : index
    %c220 = arith.constant 220 : index
    %72 = vector.load %arg1[%c0_75, %c0_76, %c220] : memref<1x4x1222xf32, #tpu.memory_space<vmem>>, vector<1x4x1000xf32>
    %73 = vector.shape_cast %72 : vector<1x4x1000xf32> to vector<4x1000xf32>
    %c96 = arith.constant 96 : index
    %c0_77 = arith.constant 0 : index
    %74 = vector.load %arg8[%c96, %c0_77] : memref<216x1000xf32, #tpu.memory_space<vmem>>, vector<4x1000xf32>
    tpu.vector_store %arg8[%c96, %c0_77], %73 {strides = array<i32>} : memref<216x1000xf32, #tpu.memory_space<vmem>>, vector<4x1000xf32>,
    %c0_78 = arith.constant 0 : index
    %c0_79 = arith.constant 0 : index
    %c221 = arith.constant 221 : index
    %75 = vector.load %arg1[%c0_78, %c0_79, %c221] : memref<1x4x1222xf32, #tpu.memory_space<vmem>>, vector<1x4x1000xf32>
    %76 = vector.shape_cast %75 : vector<1x4x1000xf32> to vector<4x1000xf32>
    %c100_80 = arith.constant 100 : index
    %c0_81 = arith.constant 0 : index
    %77 = vector.load %arg8[%c100_80, %c0_81] : memref<216x1000xf32, #tpu.memory_space<vmem>>, vector<4x1000xf32>
    tpu.vector_store %arg8[%c100_80, %c0_81], %76 {strides = array<i32>} : memref<216x1000xf32, #tpu.memory_space<vmem>>, vector<4x1000xf32>,
    %c0_82 = arith.constant 0 : index
    %c0_83 = arith.constant 0 : index
    %c222 = arith.constant 222 : index
    %78 = vector.load %arg1[%c0_82, %c0_83, %c222] : memref<1x4x1222xf32, #tpu.memory_space<vmem>>, vector<1x4x1000xf32>
    %79 = vector.shape_cast %78 : vector<1x4x1000xf32> to vector<4x1000xf32>
    %c104 = arith.constant 104 : index
    %c0_84 = arith.constant 0 : index
    %80 = vector.load %arg8[%c104, %c0_84] : memref<216x1000xf32, #tpu.memory_space<vmem>>, vector<4x1000xf32>
    tpu.vector_store %arg8[%c104, %c0_84], %79 {strides = array<i32>} : memref<216x1000xf32, #tpu.memory_space<vmem>>, vector<4x1000xf32>,
    %c0_85 = arith.constant 0 : index
    %c0_86 = arith.constant 0 : index
    %81 = vector.load %arg2[%c0_85, %c0_86] : memref<8x108xf32, #tpu.memory_space<vmem>>, vector<8x108xf32>
    %c0_87 = arith.constant 0 : index
    %c0_88 = arith.constant 0 : index
    %82 = vector.load %arg8[%c0_87, %c0_88] : memref<216x1000xf32, #tpu.memory_space<vmem>>, vector<108x1000xf32>
    %cst = arith.constant dense<0.000000e+00> : vector<8x1000xf32>
    %83 = tpu.matmul %81, %82, %cst {dimension_numbers = #tpu.dot_dimension_numbers<[1], [0], [0], [1], [0, 0, 1, 1], [], []>} : vector<8x108xf32>, vector<108x1000xf32>, vector<8x1000xf32> -> vector<8x1000xf32>
    %c0_89 = arith.constant 0 : index
    %c0_90 = arith.constant 0 : index
    %84 = vector.load %arg3[%c0_89, %c0_90] : memref<8x1xf32, #tpu.memory_space<vmem>>, vector<8x1xf32>
    %85 = vector.broadcast %84 : vector<8x1xf32> to vector<8x1000xf32>
    %86 = arith.addf %83, %85 : vector<8x1000xf32>
    %cst_91 = arith.constant 0.000000e+00 : f32
    %87 = vector.broadcast %cst_91 : f32 to vector<8x1000xf32>
    %88 = arith.cmpf oge, %86, %87 : vector<8x1000xf32>
    %cst_92 = arith.constant 0.00999999977 : f32
    %89 = vector.broadcast %cst_92 : f32 to vector<8x1000xf32>
    %90 = arith.mulf %89, %86 : vector<8x1000xf32>
    %91 = arith.select %88, %86, %90 : vector<8x1000xi1>, vector<8x1000xf32>
    %c0_93 = arith.constant 0 : index
    %c0_94 = arith.constant 0 : index
    %92 = vector.load %arg6[%c0_93, %c0_94] : memref<1x1000xf32, #tpu.memory_space<vmem>>, vector<1x1000xf32>
    %93 = vector.broadcast %92 : vector<1x1000xf32> to vector<8x1000xf32>
    %94 = arith.mulf %91, %93 : vector<8x1000xf32>
    %cst_95 = arith.constant 0.000000e+00 : f32
    %95 = vector.broadcast %cst_95 : f32 to vector<8x1239xf32>
    %c0_96 = arith.constant 0 : index
    %c0_97 = arith.constant 0 : index
    %96 = vector.load %arg9[%c0_96, %c0_97] : memref<8x1239xf32, #tpu.memory_space<vmem>>, vector<8x1239xf32>
    tpu.vector_store %arg9[%c0_96, %c0_97], %95 {strides = array<i32>} : memref<8x1239xf32, #tpu.memory_space<vmem>>, vector<8x1239xf32>,
    %c0_98 = arith.constant 0 : index
    %c128 = arith.constant 128 : index
    %97 = vector.load %arg9[%c0_98, %c128] : memref<8x1239xf32, #tpu.memory_space<vmem>>, vector<8x1000xf32>
    tpu.vector_store %arg9[%c0_98, %c128], %94 {strides = array<i32>} : memref<8x1239xf32, #tpu.memory_space<vmem>>, vector<8x1000xf32>,
    %c0_99 = arith.constant 0 : index
    %c17 = arith.constant 17 : index
    %98 = vector.load %arg9[%c0_99, %c17] : memref<8x1239xf32, #tpu.memory_space<vmem>>, vector<8x1000xf32>
    %c0_100 = arith.constant 0 : index
    %c0_101 = arith.constant 0 : index
    %99 = vector.load %arg8[%c0_100, %c0_101] : memref<216x1000xf32, #tpu.memory_space<vmem>>, vector<8x1000xf32>
    tpu.vector_store %arg8[%c0_100, %c0_101], %98 {strides = array<i32>} : memref<216x1000xf32, #tpu.memory_space<vmem>>, vector<8x1000xf32>,
    %c0_102 = arith.constant 0 : index
    %c18 = arith.constant 18 : index
    %100 = vector.load %arg9[%c0_102, %c18] : memref<8x1239xf32, #tpu.memory_space<vmem>>, vector<8x1000xf32>
    %c8_103 = arith.constant 8 : index
    %c0_104 = arith.constant 0 : index
    %101 = vector.load %arg8[%c8_103, %c0_104] : memref<216x1000xf32, #tpu.memory_space<vmem>>, vector<8x1000xf32>
    tpu.vector_store %arg8[%c8_103, %c0_104], %100 {strides = array<i32>} : memref<216x1000xf32, #tpu.memory_space<vmem>>, vector<8x1000xf32>,
    %c0_105 = arith.constant 0 : index
    %c19 = arith.constant 19 : index
    %102 = vector.load %arg9[%c0_105, %c19] : memref<8x1239xf32, #tpu.memory_space<vmem>>, vector<8x1000xf32>
    %c16_106 = arith.constant 16 : index
    %c0_107 = arith.constant 0 : index
    %103 = vector.load %arg8[%c16_106, %c0_107] : memref<216x1000xf32, #tpu.memory_space<vmem>>, vector<8x1000xf32>
    tpu.vector_store %arg8[%c16_106, %c0_107], %102 {strides = array<i32>} : memref<216x1000xf32, #tpu.memory_space<vmem>>, vector<8x1000xf32>,
    %c0_108 = arith.constant 0 : index
    %c27 = arith.constant 27 : index
    %104 = vector.load %arg9[%c0_108, %c27] : memref<8x1239xf32, #tpu.memory_space<vmem>>, vector<8x1000xf32>
    %c24_109 = arith.constant 24 : index
    %c0_110 = arith.constant 0 : index
    %105 = vector.load %arg8[%c24_109, %c0_110] : memref<216x1000xf32, #tpu.memory_space<vmem>>, vector<8x1000xf32>
    tpu.vector_store %arg8[%c24_109, %c0_110], %104 {strides = array<i32>} : memref<216x1000xf32, #tpu.memory_space<vmem>>, vector<8x1000xf32>,
    %c0_111 = arith.constant 0 : index
    %c28_112 = arith.constant 28 : index
    %106 = vector.load %arg9[%c0_111, %c28_112] : memref<8x1239xf32, #tpu.memory_space<vmem>>, vector<8x1000xf32>
    %c32_113 = arith.constant 32 : index
    %c0_114 = arith.constant 0 : index
    %107 = vector.load %arg8[%c32_113, %c0_114] : memref<216x1000xf32, #tpu.memory_space<vmem>>, vector<8x1000xf32>
    tpu.vector_store %arg8[%c32_113, %c0_114], %106 {strides = array<i32>} : memref<216x1000xf32, #tpu.memory_space<vmem>>, vector<8x1000xf32>,
    %c0_115 = arith.constant 0 : index
    %c29 = arith.constant 29 : index
    %108 = vector.load %arg9[%c0_115, %c29] : memref<8x1239xf32, #tpu.memory_space<vmem>>, vector<8x1000xf32>
    %c40_116 = arith.constant 40 : index
    %c0_117 = arith.constant 0 : index
    %109 = vector.load %arg8[%c40_116, %c0_117] : memref<216x1000xf32, #tpu.memory_space<vmem>>, vector<8x1000xf32>
    tpu.vector_store %arg8[%c40_116, %c0_117], %108 {strides = array<i32>} : memref<216x1000xf32, #tpu.memory_space<vmem>>, vector<8x1000xf32>,
    %c0_118 = arith.constant 0 : index
    %c37 = arith.constant 37 : index
    %110 = vector.load %arg9[%c0_118, %c37] : memref<8x1239xf32, #tpu.memory_space<vmem>>, vector<8x1000xf32>
    %c48_119 = arith.constant 48 : index
    %c0_120 = arith.constant 0 : index
    %111 = vector.load %arg8[%c48_119, %c0_120] : memref<216x1000xf32, #tpu.memory_space<vmem>>, vector<8x1000xf32>
    tpu.vector_store %arg8[%c48_119, %c0_120], %110 {strides = array<i32>} : memref<216x1000xf32, #tpu.memory_space<vmem>>, vector<8x1000xf32>,
    %c0_121 = arith.constant 0 : index
    %c38 = arith.constant 38 : index
    %112 = vector.load %arg9[%c0_121, %c38] : memref<8x1239xf32, #tpu.memory_space<vmem>>, vector<8x1000xf32>
    %c56_122 = arith.constant 56 : index
    %c0_123 = arith.constant 0 : index
    %113 = vector.load %arg8[%c56_122, %c0_123] : memref<216x1000xf32, #tpu.memory_space<vmem>>, vector<8x1000xf32>
    tpu.vector_store %arg8[%c56_122, %c0_123], %112 {strides = array<i32>} : memref<216x1000xf32, #tpu.memory_space<vmem>>, vector<8x1000xf32>,
    %c0_124 = arith.constant 0 : index
    %c39 = arith.constant 39 : index
    %114 = vector.load %arg9[%c0_124, %c39] : memref<8x1239xf32, #tpu.memory_space<vmem>>, vector<8x1000xf32>
    %c64_125 = arith.constant 64 : index
    %c0_126 = arith.constant 0 : index
    %115 = vector.load %arg8[%c64_125, %c0_126] : memref<216x1000xf32, #tpu.memory_space<vmem>>, vector<8x1000xf32>
    tpu.vector_store %arg8[%c64_125, %c0_126], %114 {strides = array<i32>} : memref<216x1000xf32, #tpu.memory_space<vmem>>, vector<8x1000xf32>,
    %c0_127 = arith.constant 0 : index
    %c117 = arith.constant 117 : index
    %116 = vector.load %arg9[%c0_127, %c117] : memref<8x1239xf32, #tpu.memory_space<vmem>>, vector<8x1000xf32>
    %c72_128 = arith.constant 72 : index
    %c0_129 = arith.constant 0 : index
    %117 = vector.load %arg8[%c72_128, %c0_129] : memref<216x1000xf32, #tpu.memory_space<vmem>>, vector<8x1000xf32>
    tpu.vector_store %arg8[%c72_128, %c0_129], %116 {strides = array<i32>} : memref<216x1000xf32, #tpu.memory_space<vmem>>, vector<8x1000xf32>,
    %c0_130 = arith.constant 0 : index
    %c118 = arith.constant 118 : index
    %118 = vector.load %arg9[%c0_130, %c118] : memref<8x1239xf32, #tpu.memory_space<vmem>>, vector<8x1000xf32>
    %c80_131 = arith.constant 80 : index
    %c0_132 = arith.constant 0 : index
    %119 = vector.load %arg8[%c80_131, %c0_132] : memref<216x1000xf32, #tpu.memory_space<vmem>>, vector<8x1000xf32>
    tpu.vector_store %arg8[%c80_131, %c0_132], %118 {strides = array<i32>} : memref<216x1000xf32, #tpu.memory_space<vmem>>, vector<8x1000xf32>,
    %c0_133 = arith.constant 0 : index
    %c119 = arith.constant 119 : index
    %120 = vector.load %arg9[%c0_133, %c119] : memref<8x1239xf32, #tpu.memory_space<vmem>>, vector<8x1000xf32>
    %c88_134 = arith.constant 88 : index
    %c0_135 = arith.constant 0 : index
    %121 = vector.load %arg8[%c88_134, %c0_135] : memref<216x1000xf32, #tpu.memory_space<vmem>>, vector<8x1000xf32>
    tpu.vector_store %arg8[%c88_134, %c0_135], %120 {strides = array<i32>} : memref<216x1000xf32, #tpu.memory_space<vmem>>, vector<8x1000xf32>,
    %c0_136 = arith.constant 0 : index
    %c127 = arith.constant 127 : index
    %122 = vector.load %arg9[%c0_136, %c127] : memref<8x1239xf32, #tpu.memory_space<vmem>>, vector<8x1000xf32>
    %c96_137 = arith.constant 96 : index
    %c0_138 = arith.constant 0 : index
    %123 = vector.load %arg8[%c96_137, %c0_138] : memref<216x1000xf32, #tpu.memory_space<vmem>>, vector<8x1000xf32>
    tpu.vector_store %arg8[%c96_137, %c0_138], %122 {strides = array<i32>} : memref<216x1000xf32, #tpu.memory_space<vmem>>, vector<8x1000xf32>,
    %c0_139 = arith.constant 0 : index
    %c128_140 = arith.constant 128 : index
    %124 = vector.load %arg9[%c0_139, %c128_140] : memref<8x1239xf32, #tpu.memory_space<vmem>>, vector<8x1000xf32>
    %c104_141 = arith.constant 104 : index
    %c0_142 = arith.constant 0 : index
    %125 = vector.load %arg8[%c104_141, %c0_142] : memref<216x1000xf32, #tpu.memory_space<vmem>>, vector<8x1000xf32>
    tpu.vector_store %arg8[%c104_141, %c0_142], %124 {strides = array<i32>} : memref<216x1000xf32, #tpu.memory_space<vmem>>, vector<8x1000xf32>,
    %c0_143 = arith.constant 0 : index
    %c129 = arith.constant 129 : index
    %126 = vector.load %arg9[%c0_143, %c129] : memref<8x1239xf32, #tpu.memory_space<vmem>>, vector<8x1000xf32>
    %c112_144 = arith.constant 112 : index
    %c0_145 = arith.constant 0 : index
    %127 = vector.load %arg8[%c112_144, %c0_145] : memref<216x1000xf32, #tpu.memory_space<vmem>>, vector<8x1000xf32>
    tpu.vector_store %arg8[%c112_144, %c0_145], %126 {strides = array<i32>} : memref<216x1000xf32, #tpu.memory_space<vmem>>, vector<8x1000xf32>,
    %c0_146 = arith.constant 0 : index
    %c137 = arith.constant 137 : index
    %128 = vector.load %arg9[%c0_146, %c137] : memref<8x1239xf32, #tpu.memory_space<vmem>>, vector<8x1000xf32>
    %c120_147 = arith.constant 120 : index
    %c0_148 = arith.constant 0 : index
    %129 = vector.load %arg8[%c120_147, %c0_148] : memref<216x1000xf32, #tpu.memory_space<vmem>>, vector<8x1000xf32>
    tpu.vector_store %arg8[%c120_147, %c0_148], %128 {strides = array<i32>} : memref<216x1000xf32, #tpu.memory_space<vmem>>, vector<8x1000xf32>,
    %c0_149 = arith.constant 0 : index
    %c138 = arith.constant 138 : index
    %130 = vector.load %arg9[%c0_149, %c138] : memref<8x1239xf32, #tpu.memory_space<vmem>>, vector<8x1000xf32>
    %c128_150 = arith.constant 128 : index
    %c0_151 = arith.constant 0 : index
    %131 = vector.load %arg8[%c128_150, %c0_151] : memref<216x1000xf32, #tpu.memory_space<vmem>>, vector<8x1000xf32>
    tpu.vector_store %arg8[%c128_150, %c0_151], %130 {strides = array<i32>} : memref<216x1000xf32, #tpu.memory_space<vmem>>, vector<8x1000xf32>,
    %c0_152 = arith.constant 0 : index
    %c139 = arith.constant 139 : index
    %132 = vector.load %arg9[%c0_152, %c139] : memref<8x1239xf32, #tpu.memory_space<vmem>>, vector<8x1000xf32>
    %c136 = arith.constant 136 : index
    %c0_153 = arith.constant 0 : index
    %133 = vector.load %arg8[%c136, %c0_153] : memref<216x1000xf32, #tpu.memory_space<vmem>>, vector<8x1000xf32>
    tpu.vector_store %arg8[%c136, %c0_153], %132 {strides = array<i32>} : memref<216x1000xf32, #tpu.memory_space<vmem>>, vector<8x1000xf32>,
    %c0_154 = arith.constant 0 : index
    %c217 = arith.constant 217 : index
    %134 = vector.load %arg9[%c0_154, %c217] : memref<8x1239xf32, #tpu.memory_space<vmem>>, vector<8x1000xf32>
    %c144 = arith.constant 144 : index
    %c0_155 = arith.constant 0 : index
    %135 = vector.load %arg8[%c144, %c0_155] : memref<216x1000xf32, #tpu.memory_space<vmem>>, vector<8x1000xf32>
    tpu.vector_store %arg8[%c144, %c0_155], %134 {strides = array<i32>} : memref<216x1000xf32, #tpu.memory_space<vmem>>, vector<8x1000xf32>,
    %c0_156 = arith.constant 0 : index
    %c218 = arith.constant 218 : index
    %136 = vector.load %arg9[%c0_156, %c218] : memref<8x1239xf32, #tpu.memory_space<vmem>>, vector<8x1000xf32>
    %c152 = arith.constant 152 : index
    %c0_157 = arith.constant 0 : index
    %137 = vector.load %arg8[%c152, %c0_157] : memref<216x1000xf32, #tpu.memory_space<vmem>>, vector<8x1000xf32>
    tpu.vector_store %arg8[%c152, %c0_157], %136 {strides = array<i32>} : memref<216x1000xf32, #tpu.memory_space<vmem>>, vector<8x1000xf32>,
    %c0_158 = arith.constant 0 : index
    %c219 = arith.constant 219 : index
    %138 = vector.load %arg9[%c0_158, %c219] : memref<8x1239xf32, #tpu.memory_space<vmem>>, vector<8x1000xf32>
    %c160 = arith.constant 160 : index
    %c0_159 = arith.constant 0 : index
    %139 = vector.load %arg8[%c160, %c0_159] : memref<216x1000xf32, #tpu.memory_space<vmem>>, vector<8x1000xf32>
    tpu.vector_store %arg8[%c160, %c0_159], %138 {strides = array<i32>} : memref<216x1000xf32, #tpu.memory_space<vmem>>, vector<8x1000xf32>,
    %c0_160 = arith.constant 0 : index
    %c227 = arith.constant 227 : index
    %140 = vector.load %arg9[%c0_160, %c227] : memref<8x1239xf32, #tpu.memory_space<vmem>>, vector<8x1000xf32>
    %c168 = arith.constant 168 : index
    %c0_161 = arith.constant 0 : index
    %141 = vector.load %arg8[%c168, %c0_161] : memref<216x1000xf32, #tpu.memory_space<vmem>>, vector<8x1000xf32>
    tpu.vector_store %arg8[%c168, %c0_161], %140 {strides = array<i32>} : memref<216x1000xf32, #tpu.memory_space<vmem>>, vector<8x1000xf32>,
    %c0_162 = arith.constant 0 : index
    %c228 = arith.constant 228 : index
    %142 = vector.load %arg9[%c0_162, %c228] : memref<8x1239xf32, #tpu.memory_space<vmem>>, vector<8x1000xf32>
    %c176 = arith.constant 176 : index
    %c0_163 = arith.constant 0 : index
    %143 = vector.load %arg8[%c176, %c0_163] : memref<216x1000xf32, #tpu.memory_space<vmem>>, vector<8x1000xf32>
    tpu.vector_store %arg8[%c176, %c0_163], %142 {strides = array<i32>} : memref<216x1000xf32, #tpu.memory_space<vmem>>, vector<8x1000xf32>,
    %c0_164 = arith.constant 0 : index
    %c229 = arith.constant 229 : index
    %144 = vector.load %arg9[%c0_164, %c229] : memref<8x1239xf32, #tpu.memory_space<vmem>>, vector<8x1000xf32>
    %c184 = arith.constant 184 : index
    %c0_165 = arith.constant 0 : index
    %145 = vector.load %arg8[%c184, %c0_165] : memref<216x1000xf32, #tpu.memory_space<vmem>>, vector<8x1000xf32>
    tpu.vector_store %arg8[%c184, %c0_165], %144 {strides = array<i32>} : memref<216x1000xf32, #tpu.memory_space<vmem>>, vector<8x1000xf32>,
    %c0_166 = arith.constant 0 : index
    %c237 = arith.constant 237 : index
    %146 = vector.load %arg9[%c0_166, %c237] : memref<8x1239xf32, #tpu.memory_space<vmem>>, vector<8x1000xf32>
    %c192 = arith.constant 192 : index
    %c0_167 = arith.constant 0 : index
    %147 = vector.load %arg8[%c192, %c0_167] : memref<216x1000xf32, #tpu.memory_space<vmem>>, vector<8x1000xf32>
    tpu.vector_store %arg8[%c192, %c0_167], %146 {strides = array<i32>} : memref<216x1000xf32, #tpu.memory_space<vmem>>, vector<8x1000xf32>,
    %c0_168 = arith.constant 0 : index
    %c238 = arith.constant 238 : index
    %148 = vector.load %arg9[%c0_168, %c238] : memref<8x1239xf32, #tpu.memory_space<vmem>>, vector<8x1000xf32>
    %c200_169 = arith.constant 200 : index
    %c0_170 = arith.constant 0 : index
    %149 = vector.load %arg8[%c200_169, %c0_170] : memref<216x1000xf32, #tpu.memory_space<vmem>>, vector<8x1000xf32>
    tpu.vector_store %arg8[%c200_169, %c0_170], %148 {strides = array<i32>} : memref<216x1000xf32, #tpu.memory_space<vmem>>, vector<8x1000xf32>,
    %c0_171 = arith.constant 0 : index
    %c239 = arith.constant 239 : index
    %150 = vector.load %arg9[%c0_171, %c239] : memref<8x1239xf32, #tpu.memory_space<vmem>>, vector<8x1000xf32>
    %c208 = arith.constant 208 : index
    %c0_172 = arith.constant 0 : index
    %151 = vector.load %arg8[%c208, %c0_172] : memref<216x1000xf32, #tpu.memory_space<vmem>>, vector<8x1000xf32>
    tpu.vector_store %arg8[%c208, %c0_172], %150 {strides = array<i32>} : memref<216x1000xf32, #tpu.memory_space<vmem>>, vector<8x1000xf32>,
    %c0_173 = arith.constant 0 : index
    %c0_174 = arith.constant 0 : index
    %152 = vector.load %arg4[%c0_173, %c0_174] : memref<8x216xf32, #tpu.memory_space<vmem>>, vector<8x216xf32>
    %c0_175 = arith.constant 0 : index
    %c0_176 = arith.constant 0 : index
    %153 = vector.load %arg8[%c0_175, %c0_176] : memref<216x1000xf32, #tpu.memory_space<vmem>>, vector<216x1000xf32>
    %cst_177 = arith.constant dense<0.000000e+00> : vector<8x1000xf32>
    %154 = tpu.matmul %152, %153, %cst_177 {dimension_numbers = #tpu.dot_dimension_numbers<[1], [0], [0], [1], [0, 0, 1, 1], [], []>} : vector<8x216xf32>, vector<216x1000xf32>, vector<8x1000xf32> -> vector<8x1000xf32>
    %c0_178 = arith.constant 0 : index
    %c0_179 = arith.constant 0 : index
    %155 = vector.load %arg5[%c0_178, %c0_179] : memref<8x1xf32, #tpu.memory_space<vmem>>, vector<8x1xf32>
    %156 = vector.broadcast %155 : vector<8x1xf32> to vector<8x1000xf32>
    %157 = arith.addf %154, %156 : vector<8x1000xf32>
    %cst_180 = arith.constant 0.000000e+00 : f32
    %158 = vector.broadcast %cst_180 : f32 to vector<8x1000xf32>
    %159 = arith.cmpf oge, %157, %158 : vector<8x1000xf32>
    %cst_181 = arith.constant 0.00999999977 : f32
    %160 = vector.broadcast %cst_181 : f32 to vector<8x1000xf32>
    %161 = arith.mulf %160, %157 : vector<8x1000xf32>
    %162 = arith.select %159, %157, %161 : vector<8x1000xi1>, vector<8x1000xf32>
    %cst_182 = arith.constant 0.000000e+00 : f32
    %163 = vector.broadcast %cst_182 : f32 to vector<8x1239xf32>
    %c0_183 = arith.constant 0 : index
    %c0_184 = arith.constant 0 : index
    %164 = vector.load %arg9[%c0_183, %c0_184] : memref<8x1239xf32, #tpu.memory_space<vmem>>, vector<8x1239xf32>
    tpu.vector_store %arg9[%c0_183, %c0_184], %163 {strides = array<i32>} : memref<8x1239xf32, #tpu.memory_space<vmem>>, vector<8x1239xf32>,
    %c0_185 = arith.constant 0 : index
    %c0_186 = arith.constant 0 : index
    %165 = vector.load %arg9[%c0_185, %c0_186] : memref<8x1239xf32, #tpu.memory_space<vmem>>, vector<8x1000xf32>
    tpu.vector_store %arg9[%c0_185, %c0_186], %162 {strides = array<i32>} : memref<8x1239xf32, #tpu.memory_space<vmem>>, vector<8x1000xf32>,
    %c0_187 = arith.constant 0 : index
    %c1_188 = arith.constant 1 : index
    %166 = vector.load %arg9[%c0_187, %c1_188] : memref<8x1239xf32, #tpu.memory_space<vmem>>, vector<8x1000xf32>
    %167 = arith.addf %162, %166 : vector<8x1000xf32>
    %c0_189 = arith.constant 0 : index
    %c10_190 = arith.constant 10 : index
    %168 = vector.load %arg9[%c0_189, %c10_190] : memref<8x1239xf32, #tpu.memory_space<vmem>>, vector<8x1000xf32>
    %169 = arith.addf %167, %168 : vector<8x1000xf32>
    %c0_191 = arith.constant 0 : index
    %c11_192 = arith.constant 11 : index
    %170 = vector.load %arg9[%c0_191, %c11_192] : memref<8x1239xf32, #tpu.memory_space<vmem>>, vector<8x1000xf32>
    %171 = arith.addf %169, %170 : vector<8x1000xf32>
    %c0_193 = arith.constant 0 : index
    %c100_194 = arith.constant 100 : index
    %172 = vector.load %arg9[%c0_193, %c100_194] : memref<8x1239xf32, #tpu.memory_space<vmem>>, vector<8x1000xf32>
    %173 = arith.addf %171, %172 : vector<8x1000xf32>
    %c0_195 = arith.constant 0 : index
    %c101_196 = arith.constant 101 : index
    %174 = vector.load %arg9[%c0_195, %c101_196] : memref<8x1239xf32, #tpu.memory_space<vmem>>, vector<8x1000xf32>
    %175 = arith.addf %173, %174 : vector<8x1000xf32>
    %c0_197 = arith.constant 0 : index
    %c110_198 = arith.constant 110 : index
    %176 = vector.load %arg9[%c0_197, %c110_198] : memref<8x1239xf32, #tpu.memory_space<vmem>>, vector<8x1000xf32>
    %177 = arith.addf %175, %176 : vector<8x1000xf32>
    %c0_199 = arith.constant 0 : index
    %c111_200 = arith.constant 111 : index
    %178 = vector.load %arg9[%c0_199, %c111_200] : memref<8x1239xf32, #tpu.memory_space<vmem>>, vector<8x1000xf32>
    %179 = arith.addf %177, %178 : vector<8x1000xf32>
    %cst_201 = arith.constant 1.250000e-01 : f32
    %180 = vector.broadcast %cst_201 : f32 to vector<8x1000xf32>
    %181 = arith.mulf %179, %180 : vector<8x1000xf32>
    %c0_202 = arith.constant 0 : index
    %c0_203 = arith.constant 0 : index
    %c0_204 = arith.constant 0 : index
    %182 = vector.load %arg7[%c0_202, %c0_203, %c0_204] : memref<1x8x1000xf32, #tpu.memory_space<vmem>>, vector<1x8x1000xf32>
    %183 = vector.shape_cast %182 : vector<1x8x1000xf32> to vector<8x1000xf32>
    %184 = vector.shape_cast %181 : vector<8x1000xf32> to vector<1x8x1000xf32>
    tpu.vector_store %arg7[%c0_202, %c0_203, %c0_204], %184 {strides = array<i32>} : memref<1x8x1000xf32, #tpu.memory_space<vmem>>, vector<1x8x1000xf32>,
    return
  }
  func.func @transform_0(%arg0: i32) -> (i32, i32, i32) {
    %c0_i32 = arith.constant 0 : i32
    %c0_i32_0 = arith.constant 0 : i32
    %c0_i32_1 = arith.constant 0 : i32
    return %arg0, %c0_i32, %c0_i32_0 : i32, i32, i32
  }
  func.func @transform_1(%arg0: i32) -> (i32, i32) {
    %c0_i32 = arith.constant 0 : i32
    %c0_i32_0 = arith.constant 0 : i32
    %c0_i32_1 = arith.constant 0 : i32
    return %c0_i32, %c0_i32_0 : i32, i32
  }
  func.func @transform_2(%arg0: i32) -> (i32, i32) {
    %c0_i32 = arith.constant 0 : i32
    %c0_i32_0 = arith.constant 0 : i32
    %c0_i32_1 = arith.constant 0 : i32
    return %c0_i32, %c0_i32_0 : i32, i32
  }
  func.func @transform_3(%arg0: i32) -> (i32, i32) {
    %c0_i32 = arith.constant 0 : i32
    %c0_i32_0 = arith.constant 0 : i32
    %c0_i32_1 = arith.constant 0 : i32
    return %c0_i32, %c0_i32_0 : i32, i32
  }
  func.func @transform_4(%arg0: i32) -> (i32, i32) {
    %c0_i32 = arith.constant 0 : i32
    %c0_i32_0 = arith.constant 0 : i32
    %c0_i32_1 = arith.constant 0 : i32
    return %c0_i32, %c0_i32_0 : i32, i32
  }
  func.func @transform_5(%arg0: i32) -> (i32, i32) {
    %c0_i32 = arith.constant 0 : i32
    %c0_i32_0 = arith.constant 0 : i32
    %c0_i32_1 = arith.constant 0 : i32
    return %c0_i32, %c0_i32_0 : i32, i32
  }
  func.func @transform_6(%arg0: i32) -> (i32, i32, i32) {
    %c0_i32 = arith.constant 0 : i32
    %c0_i32_0 = arith.constant 0 : i32
    %c0_i32_1 = arith.constant 0 : i32
    return %arg0, %c0_i32, %c0_i32_0 : i32, i32, i32
  }
}

</mosaic_0001>

<llo_original>
// kernel: tpu_custom_call.1
$region0: #{tpu_custom_call.1}
  #allocation0 [shape = 'u32[]', space=smem, size = 0x4, offset = 0x4, fixed_abs, tag = 'smem constant byte address 0x4 - core index']
  #allocation1 [shape = 'u32[144,128]{1,0:T(1,128)}', space=vmem, size = 0x12000, scoped, tag = 'internal scratch']
  #allocation2 [shape = 'f32[216,1000]{1,0:T(8,128)}', space=vmem, size = 0xd8000, scoped, tag = 'scratch operand']
  #allocation3 [shape = 'f32[8,1239]{1,0:T(8,128)}', space=vmem, size = 0xa000, scoped, tag = 'scratch operand']
  %s0 = inlined_call_operand.hbm [shape: f32[2,4,1222], index: 0, kind: input, shape index: {}]
  %s1 = inlined_call_operand.vmem [shape: f32[8,108], index: 1, kind: input, shape index: {}]
  %s2 = inlined_call_operand.vmem [shape: f32[8,1], index: 2, kind: input, shape index: {}]
  %s3 = inlined_call_operand.vmem [shape: f32[8,216], index: 3, kind: input, shape index: {}]
  %s4 = inlined_call_operand.vmem [shape: f32[8,1], index: 4, kind: input, shape index: {}]
  %s5 = inlined_call_operand.vmem [shape: f32[1,1000], index: 5, kind: input, shape index: {}]
  %s6 = inlined_call_operand.hbm [shape: f32[2,8,1000], index: 6, kind: output, shape index: {}]
  %s7 = sld [smem:[#allocation0]]
  $region61: #{tpu_custom_call.1} parent=0
    _
  %s9 = ssub.s32 1, %s7
  %s10 = scalar_select 0, %s9, %s7
  $region1: #{tpu_custom_call.1} parent=0
    #allocation4 [shape = 'u8[40960]{0}', space=vmem, size = 0xa000, scoped, tag = 'input window, operand 0']
    #allocation5 [shape = 's32[2]{0}', space=sflag, size = 0x8, scoped, tag = 'scoped memory for tpu_custom_call.1']
    #allocation6 [shape = 's32[2]{0}', space=sflag, size = 0x8, scoped, tag = 'scoped memory for tpu_custom_call.1']
    #allocation7 [shape = 'u8[65536]{0}', space=vmem, size = 0x10000, scoped, tag = 'output window, operand 0']
    %11 = vsyncpa [#allocation5], 0
    %s12 = scalar_lea.sflag [#allocation5], 1
    %13 = vsyncpa %s12, 0
    %14 = vsyncpa [#allocation6], 0
    %s15 = scalar_lea.sflag [#allocation6], 1
    %16 = vsyncpa %s15, 0
    loop: start=0, step=1, limit=4
    $region2: #{tpu_custom_call.1} parent=1 // loop_pre_header
      _
    $region3: #{tpu_custom_call.1} parent=1 // loop_header
      %s18 = sphi 0, %s22
      %p19 = scmp.ge.s32.totalorder %s18, 4
      %s28 = sphi 0, %s30
      %s31 = sphi 0, %s28
      %s32 = sphi 0, %s31
      %s48 = sphi 0, %s32
      %s52 = sphi 0, %s52
      %s54 = sphi 0, %s52
      %s55 = sphi 0, %s54
      %s69 = sphi 0, %s55
      %s73 = sphi 0, %s73
      %s75 = sphi 0, %s73
      %s76 = sphi 0, %s75
      %s90 = sphi 0, %s76
      %s94 = sphi 0, %s94
      %s96 = sphi 0, %s94
      %s97 = sphi 0, %s96
      %s111 = sphi 0, %s97
      %s115 = sphi 0, %s115
      %s117 = sphi 0, %s115
      %s118 = sphi 0, %s117
      %s132 = sphi 0, %s118
      %s136 = sphi 0, %s136
      %s138 = sphi 0, %s136
      %s139 = sphi 0, %s138
      %s153 = sphi 0, %s139
      %s159 = sphi 0, %s161
      %s162 = sphi 0, %s159
      %s163 = sphi 0, %s162
      %s179 = sphi 0, %s163
    $region4: #{tpu_custom_call.1} parent=1 // loop_header_branch
      %21 = sbr.rel (%p19) target = $region8
    $region5: #{tpu_custom_call.1} parent=1 // loop_body
      %s23 = ssub.s32 %s18, 1
      %s24 = ssub.s32 %s18, 2
      %s25 = sadd.s32 %s18, 1
      %s26 = ssub.s32 %s18, %s25
      %p27 = scmp.eq.s32.totalorder %s26, 0
      %s29 = sadd.s32 %s28, 1
      %s30 = scalar_select %p27, %s28, %s29
      %p33 = pneg %p27
      %p34 = scmp.eq.s32.totalorder %s18, 1
      %p35 = por %p33, %p34
      %p36 = scmp.ne.s32.totalorder %s28, %s31
      %p37 = scmp.eq.s32.totalorder %s18, 0
      %p38 = por %p36, %p37
      %p39 = scmp.ne.s32.totalorder %s28, %s31
      %p40 = scmp.eq.s32.totalorder %s23, 1
      %p41 = por %p39, %p40
      %p42 = scmp.ne.s32.totalorder %s31, %s32
      %p43 = scmp.eq.s32.totalorder %s23, 0
      %p44 = por %p42, %p43
      %p45 = scmp.ne.s32.totalorder %s31, %s32
      %p46 = scmp.eq.s32.totalorder %s24, 1
      %p47 = por %p45, %p46
      %p49 = scmp.ne.s32.totalorder %s32, %s48
      %p50 = scmp.eq.s32.totalorder %s24, 0
      %p51 = por %p49, %p50
      %s53 = sadd.s32 %s52, 1
      %p56 = scmp.eq.s32.totalorder %s18, 1
      %p57 = scmp.ne.s32.totalorder %s52, %s54
      %p58 = scmp.eq.s32.totalorder %s18, 0
      %p59 = por %p57, %p58
      %p60 = scmp.ne.s32.totalorder %s52, %s54
      %p61 = scmp.eq.s32.totalorder %s23, 1
      %p62 = por %p60, %p61
      %p63 = scmp.ne.s32.totalorder %s54, %s55
      %p64 = scmp.eq.s32.totalorder %s23, 0
      %p65 = por %p63, %p64
      %p66 = scmp.ne.s32.totalorder %s54, %s55
      %p67 = scmp.eq.s32.totalorder %s24, 1
      %p68 = por %p66, %p67
      %p70 = scmp.ne.s32.totalorder %s55, %s69
      %p71 = scmp.eq.s32.totalorder %s24, 0
      %p72 = por %p70, %p71
      %s74 = sadd.s32 %s73, 1
      %p77 = scmp.eq.s32.totalorder %s18, 1
      %p78 = scmp.ne.s32.totalorder %s73, %s75
      %p79 = scmp.eq.s32.totalorder %s18, 0
      %p80 = por %p78, %p79
      %p81 = scmp.ne.s32.totalorder %s73, %s75
      %p82 = scmp.eq.s32.totalorder %s23, 1
      %p83 = por %p81, %p82
      %p84 = scmp.ne.s32.totalorder %s75, %s76
      %p85 = scmp.eq.s32.totalorder %s23, 0
      %p86 = por %p84, %p85
      %p87 = scmp.ne.s32.totalorder %s75, %s76
      %p88 = scmp.eq.s32.totalorder %s24, 1
      %p89 = por %p87, %p88
      %p91 = scmp.ne.s32.totalorder %s76, %s90
      %p92 = scmp.eq.s32.totalorder %s24, 0
      %p93 = por %p91, %p92
      %s95 = sadd.s32 %s94, 1
      %p98 = scmp.eq.s32.totalorder %s18, 1
      %p99 = scmp.ne.s32.totalorder %s94, %s96
      %p100 = scmp.eq.s32.totalorder %s18, 0
      %p101 = por %p99, %p100
      %p102 = scmp.ne.s32.totalorder %s94, %s96
      %p103 = scmp.eq.s32.totalorder %s23, 1
      %p104 = por %p102, %p103
      %p105 = scmp.ne.s32.totalorder %s96, %s97
      %p106 = scmp.eq.s32.totalorder %s23, 0
      %p107 = por %p105, %p106
      %p108 = scmp.ne.s32.totalorder %s96, %s97
      %p109 = scmp.eq.s32.totalorder %s24, 1
      %p110 = por %p108, %p109
      %p112 = scmp.ne.s32.totalorder %s97, %s111
      %p113 = scmp.eq.s32.totalorder %s24, 0
      %p114 = por %p112, %p113
      %s116 = sadd.s32 %s115, 1
      %p119 = scmp.eq.s32.totalorder %s18, 1
      %p120 = scmp.ne.s32.totalorder %s115, %s117
      %p121 = scmp.eq.s32.totalorder %s18, 0
      %p122 = por %p120, %p121
      %p123 = scmp.ne.s32.totalorder %s115, %s117
      %p124 = scmp.eq.s32.totalorder %s23, 1
      %p125 = por %p123, %p124
      %p126 = scmp.ne.s32.totalorder %s117, %s118
      %p127 = scmp.eq.s32.totalorder %s23, 0
      %p128 = por %p126, %p127
      %p129 = scmp.ne.s32.totalorder %s117, %s118
      %p130 = scmp.eq.s32.totalorder %s24, 1
      %p131 = por %p129, %p130
      %p133 = scmp.ne.s32.totalorder %s118, %s132
      %p134 = scmp.eq.s32.totalorder %s24, 0
      %p135 = por %p133, %p134
      %s137 = sadd.s32 %s136, 1
      %p140 = scmp.eq.s32.totalorder %s18, 1
      %p141 = scmp.ne.s32.totalorder %s136, %s138
      %p142 = scmp.eq.s32.totalorder %s18, 0
      %p143 = por %p141, %p142
      %p144 = scmp.ne.s32.totalorder %s136, %s138
      %p145 = scmp.eq.s32.totalorder %s23, 1
      %p146 = por %p144, %p145
      %p147 = scmp.ne.s32.totalorder %s138, %s139
      %p148 = scmp.eq.s32.totalorder %s23, 0
      %p149 = por %p147, %p148
      %p150 = scmp.ne.s32.totalorder %s138, %s139
      %p151 = scmp.eq.s32.totalorder %s24, 1
      %p152 = por %p150, %p151
      %p154 = scmp.ne.s32.totalorder %s139, %s153
      %p155 = scmp.eq.s32.totalorder %s24, 0
      %p156 = por %p154, %p155
      %s157 = ssub.s32 %s18, %s25
      %p158 = scmp.eq.s32.totalorder %s157, 0
      %s160 = sadd.s32 %s159, 1
      %s161 = scalar_select %p158, %s159, %s160
      %p164 = pneg %p158
      %p165 = scmp.eq.s32.totalorder %s18, 1
      %p166 = por %p164, %p165
      %p167 = scmp.ne.s32.totalorder %s159, %s162
      %p168 = scmp.eq.s32.totalorder %s18, 0
      %p169 = por %p167, %p168
      %p170 = scmp.ne.s32.totalorder %s159, %s162
      %p171 = scmp.eq.s32.totalorder %s23, 1
      %p172 = por %p170, %p171
      %p173 = scmp.ne.s32.totalorder %s162, %s163
      %p174 = scmp.eq.s32.totalorder %s23, 0
      %p175 = por %p173, %p174
      %p176 = scmp.ne.s32.totalorder %s162, %s163
      %p177 = scmp.eq.s32.totalorder %s24, 1
      %p178 = por %p176, %p177
      %p180 = scmp.ne.s32.totalorder %s163, %s179
      %p181 = scmp.eq.s32.totalorder %s24, 0
      %p182 = por %p180, %p181
      %p183 = scmp.le.s32.totalorder 1, %s18
      %p184 = scmp.lt.s32.totalorder %s18, 3
      %p185 = pnand %p183, %p184
      %p186 = pneg %p185
      // Predicated region
      $region9: #{tpu_custom_call.1} parent=5 // pred_check
        _
      $region10: #{tpu_custom_call.1} parent=5 // pred_check_branch
        %188 = sbr.rel (%p185) target = $region12
      $region11: #{tpu_custom_call.1} parent=5 // pred_region
        %s189 = ssub.s32 %s18, 1
        // Predicated region
        $region13: #{tpu_custom_call.1} parent=11 // pred_check
          %p190 = pneg %p65
        $region14: #{tpu_custom_call.1} parent=11 // pred_check_branch
          %192 = sbr.rel (%p190) target = $region16
        $region15: #{tpu_custom_call.1} parent=11 // pred_region
          _
        $region16: #{tpu_custom_call.1} parent=11 // pred_fallthru
          _
        // Predicated region
        $region17: #{tpu_custom_call.1} parent=11 // pred_check
          %p193 = pneg %p86
        $region18: #{tpu_custom_call.1} parent=11 // pred_check_branch
          %195 = sbr.rel (%p193) target = $region20
        $region19: #{tpu_custom_call.1} parent=11 // pred_region
          _
        $region20: #{tpu_custom_call.1} parent=11 // pred_fallthru
          _
        // Predicated region
        $region21: #{tpu_custom_call.1} parent=11 // pred_check
          %p196 = pneg %p107
        $region22: #{tpu_custom_call.1} parent=11 // pred_check_branch
          %198 = sbr.rel (%p196) target = $region24
        $region23: #{tpu_custom_call.1} parent=11 // pred_region
          _
        $region24: #{tpu_custom_call.1} parent=11 // pred_fallthru
          _
        // Predicated region
        $region25: #{tpu_custom_call.1} parent=11 // pred_check
          %p199 = pneg %p128
        $region26: #{tpu_custom_call.1} parent=11 // pred_check_branch
          %201 = sbr.rel (%p199) target = $region28
        $region27: #{tpu_custom_call.1} parent=11 // pred_region
          _
        $region28: #{tpu_custom_call.1} parent=11 // pred_fallthru
          _
        // Predicated region
        $region29: #{tpu_custom_call.1} parent=11 // pred_check
          %p202 = pneg %p149
        $region30: #{tpu_custom_call.1} parent=11 // pred_check_branch
          %204 = sbr.rel (%p202) target = $region32
        $region31: #{tpu_custom_call.1} parent=11 // pred_region
          _
        $region32: #{tpu_custom_call.1} parent=11 // pred_fallthru
          _
      $region12: #{tpu_custom_call.1} parent=5 // pred_fallthru
        _
      %p205 = scmp.lt.s32.totalorder %s18, 2
      // Predicated region
      $region33: #{tpu_custom_call.1} parent=5 // pred_check
        %p206 = pneg %p205
      $region34: #{tpu_custom_call.1} parent=5 // pred_check_branch
        %208 = sbr.rel (%p206) target = $region36
      $region35: #{tpu_custom_call.1} parent=5 // pred_region
        // Predicated region
        $region37: #{tpu_custom_call.1} parent=35 // pred_check
          %p209 = pneg %p38
        $region38: #{tpu_custom_call.1} parent=35 // pred_check_branch
          %211 = sbr.rel (%p209) target = $region40
        $region39: #{tpu_custom_call.1} parent=35 // pred_region
          %s212 = sand.u32 %s28, 1
          %s213 = scalar_lea.sflag [#allocation5], %s212
          %s214 = sand.u32 %s28, 1
          %s215 = smul.addr %s214, 40
          %s216 = scalar_lea.vmem [#allocation4], %s215
          %s218 = ssub.s32 640, 640
          %219 = vsyncadd %s213, %s218
          %s220 = smul.addr %s18, 10
          %s221 = smul.addr %s220, 64
          %s222 = scalar_lea.hbm %s0, %s221
          %s224 = sshll.u32 %s216, 4
          %s225 = int_to_ptr.vmem [resolvable:$true] %s224
          %227 = dma.hbm_to_vmem [thread:$0]  %s222, 640, %s225, %s213
        $region40: #{tpu_custom_call.1} parent=35 // pred_fallthru
          _
      $region36: #{tpu_custom_call.1} parent=5 // pred_fallthru
        _
      %p228 = scmp.le.s32.totalorder 1, %s18
      %p229 = scmp.lt.s32.totalorder %s18, 3
      %p230 = pnand %p228, %p229
      %p231 = pneg %p230
      // Predicated region
      $region41: #{tpu_custom_call.1} parent=5 // pred_check
        _
      $region42: #{tpu_custom_call.1} parent=5 // pred_check_branch
        %233 = sbr.rel (%p230) target = $region44
      $region43: #{tpu_custom_call.1} parent=5 // pred_region
        %s234 = ssub.s32 %s18, 1
        %s235 = sand.u32 %s31, 1
        %s236 = scalar_lea.sflag [#allocation5], %s235
        %s237 = sand.u32 %s31, 1
        %s238 = smul.addr %s237, 40
        %s239 = scalar_lea.vmem [#allocation4], %s238
        // Predicated region
        $region45: #{tpu_custom_call.1} parent=43 // pred_check
          %p240 = pneg %p44
        $region46: #{tpu_custom_call.1} parent=43 // pred_check_branch
          %242 = sbr.rel (%p240) target = $region48
        $region47: #{tpu_custom_call.1} parent=43 // pred_region
          %243 = dma.done %s236, 640
        $region48: #{tpu_custom_call.1} parent=43 // pred_fallthru
          _
        %s244 = sand.u32 %s31, 1
        %s245 = scalar_lea.sflag [#allocation5], %s244
        %s246 = sand.u32 %s31, 1
        %s247 = smul.addr %s246, 40
        %s248 = scalar_lea.vmem [#allocation4], %s247
        %p249 = pneg %p44
        %p250 = pneg %p41
        %p251 = pneg %p65
        %p252 = pneg %p62
        %p253 = pneg %p86
        %p254 = pneg %p83
        %p255 = pneg %p107
        %p256 = pneg %p104
        %p257 = pneg %p128
        %p258 = pneg %p125
        %p259 = pneg %p149
        %p260 = pneg %p146
        %p261 = pneg %p175
        %p262 = pneg %p172
        %s263 = sand.u32 %s162, 1
        %s264 = scalar_lea.sflag [#allocation6], %s263
        %s265 = sand.u32 %s162, 1
        %s266 = smul.addr %s265, 64
        %s267 = scalar_lea.vmem [#allocation7], %s266
        %v268 = vld [vmem:[%s239] sm:$0xff]
        %v269 = vld [vmem:[%s239 + $0x8] sm:$0xff]
        %v270 = vld [vmem:[%s239 + $0x10] sm:$0xff]
        %v271 = vld [vmem:[%s239 + $0x18] sm:$0xff]
        %v276 = vcombine.high %v268, %v268
        %v277 = vcombine.high %v269, %v269
        %v278 = vcombine.high %v270, %v270
        %v279 = vcombine.high %v271, %v271
        %284 = vst [vmem:[#allocation2] sm:$0xf] %v268
        %285 = vst [vmem:[#allocation2 + $0x8] sm:$0xf] %v276
        %286 = vst [vmem:[#allocation2 + $0x10] sm:$0xf] %v269
        %287 = vst [vmem:[#allocation2 + $0x18] sm:$0xf] %v277
        %288 = vst [vmem:[#allocation2 + $0x20] sm:$0xf] %v270
        %289 = vst [vmem:[#allocation2 + $0x28] sm:$0xf] %v278
        %290 = vst [vmem:[#allocation2 + $0x30] sm:$0xf] %v271
        %vm291 = vcmask 846848
        %292 = vst.msk [vmem:[#allocation2 + $0x38] sm:$0xf] %vm291, %v279
        %v293 = vld [vmem:[%s239] sm:$0xff]
        %v294 = vld [vmem:[%s239 + $0x8] sm:$0xff]
        %v295 = vld [vmem:[%s239 + $0x10] sm:$0xff]
        %v296 = vld [vmem:[%s239 + $0x18] sm:$0xff]
        %v301 = vcombine.low %v293, %v293
        %v302 = vcombine.low %v294, %v294
        %v303 = vcombine.low %v295, %v295
        %v304 = vcombine.low %v296, %v296
        %305 = vrot.lane.b32.xlu0 %v301, 127
        %v306 = vpop.permute.xlu0 %305
        %307 = vrot.lane.b32.xlu0 %v293, 127
        %v308 = vpop.permute.xlu0 %307
        %309 = vrot.lane.b32.xlu0 %v302, 127
        %v310 = vpop.permute.xlu0 %309
        %311 = vrot.lane.b32.xlu0 %v294, 127
        %v312 = vpop.permute.xlu0 %311
        %313 = vrot.lane.b32.xlu0 %v303, 127
        %v314 = vpop.permute.xlu0 %313
        %315 = vrot.lane.b32.xlu0 %v295, 127
        %v316 = vpop.permute.xlu0 %315
        %317 = vrot.lane.b32.xlu0 %v304, 127
        %v318 = vpop.permute.xlu0 %317
        %319 = vrot.lane.b32.xlu0 %v296, 127
        %v320 = vpop.permute.xlu0 %319
        %vm321 = vcmask 1039360
        %v322 = vsel %vm321, %v306, %v308
        %v323 = vsel %vm321, %v308, %v310
        %v324 = vsel %vm321, %v310, %v312
        %v325 = vsel %vm321, %v312, %v314
        %v326 = vsel %vm321, %v314, %v316
        %v327 = vsel %vm321, %v316, %v318
        %v328 = vsel %vm321, %v318, %v320
        %337 = vst [vmem:[#allocation2] sm:$0xf0] %v322
        %338 = vst [vmem:[#allocation2 + $0x8] sm:$0xf0] %v323
        %339 = vst [vmem:[#allocation2 + $0x10] sm:$0xf0] %v324
        %340 = vst [vmem:[#allocation2 + $0x18] sm:$0xf0] %v325
        %341 = vst [vmem:[#allocation2 + $0x20] sm:$0xf0] %v326
        %342 = vst [vmem:[#allocation2 + $0x28] sm:$0xf0] %v327
        %343 = vst [vmem:[#allocation2 + $0x30] sm:$0xf0] %v328
        %vm344 = vcmask 850948
        %345 = vst.msk [vmem:[#allocation2 + $0x38] sm:$0xf0] %vm344, %v320
        %v346 = vld [vmem:[%s239] sm:$0xff]
        %v347 = vld [vmem:[%s239 + $0x8] sm:$0xff]
        %v348 = vld [vmem:[%s239 + $0x10] sm:$0xff]
        %v349 = vld [vmem:[%s239 + $0x18] sm:$0xff]
        %v354 = vcombine.high %v346, %v346
        %v355 = vcombine.high %v347, %v347
        %v356 = vcombine.high %v348, %v348
        %v357 = vcombine.high %v349, %v349
        %358 = vrot.lane.b32.xlu0 %v346, 126
        %v359 = vpop.permute.xlu0 %358
        %360 = vrot.lane.b32.xlu0 %v354, 126
        %v361 = vpop.permute.xlu0 %360
        %362 = vrot.lane.b32.xlu0 %v347, 126
        %v363 = vpop.permute.xlu0 %362
        %364 = vrot.lane.b32.xlu0 %v355, 126
        %v365 = vpop.permute.xlu0 %364
        %366 = vrot.lane.b32.xlu0 %v348, 126
        %v367 = vpop.permute.xlu0 %366
        %368 = vrot.lane.b32.xlu0 %v356, 126
        %v369 = vpop.permute.xlu0 %368
        %370 = vrot.lane.b32.xlu0 %v349, 126
        %v371 = vpop.permute.xlu0 %370
        %372 = vrot.lane.b32.xlu0 %v357, 126
        %v373 = vpop.permute.xlu0 %372
        %vm374 = vcmask 1031168
        %v375 = vsel %vm374, %v359, %v361
        %v376 = vsel %vm374, %v361, %v363
        %v377 = vsel %vm374, %v363, %v365
        %v378 = vsel %vm374, %v365, %v367
        %v379 = vsel %vm374, %v367, %v369
        %v380 = vsel %vm374, %v369, %v371
        %v381 = vsel %vm374, %v371, %v373
        %390 = vst [vmem:[#allocation2 + $0x40] sm:$0xf] %v375
        %391 = vst [vmem:[#allocation2 + $0x48] sm:$0xf] %v376
        %392 = vst [vmem:[#allocation2 + $0x50] sm:$0xf] %v377
        %393 = vst [vmem:[#allocation2 + $0x58] sm:$0xf] %v378
        %394 = vst [vmem:[#allocation2 + $0x60] sm:$0xf] %v379
        %395 = vst [vmem:[#allocation2 + $0x68] sm:$0xf] %v380
        %396 = vst [vmem:[#allocation2 + $0x70] sm:$0xf] %v381
        %397 = vst.msk [vmem:[#allocation2 + $0x78] sm:$0xf] %vm291, %v373
        %v398 = vld [vmem:[%s239] sm:$0xff]
        %v399 = vld [vmem:[%s239 + $0x8] sm:$0xff]
        %v400 = vld [vmem:[%s239 + $0x10] sm:$0xff]
        %v401 = vld [vmem:[%s239 + $0x18] sm:$0xff]
        %v406 = vcombine.low %v398, %v398
        %v407 = vcombine.low %v399, %v399
        %v408 = vcombine.low %v400, %v400
        %v409 = vcombine.low %v401, %v401
        %410 = vrot.lane.b32.xlu0 %v406, 118
        %v411 = vpop.permute.xlu0 %410
        %412 = vrot.lane.b32.xlu0 %v398, 118
        %v413 = vpop.permute.xlu0 %412
        %414 = vrot.lane.b32.xlu0 %v407, 118
        %v415 = vpop.permute.xlu0 %414
        %416 = vrot.lane.b32.xlu0 %v399, 118
        %v417 = vpop.permute.xlu0 %416
        %418 = vrot.lane.b32.xlu0 %v408, 118
        %v419 = vpop.permute.xlu0 %418
        %420 = vrot.lane.b32.xlu0 %v400, 118
        %v421 = vpop.permute.xlu0 %420
        %422 = vrot.lane.b32.xlu0 %v409, 118
        %v423 = vpop.permute.xlu0 %422
        %424 = vrot.lane.b32.xlu0 %v401, 118
        %v425 = vpop.permute.xlu0 %424
        %vm426 = vcmask 965632
        %v427 = vsel %vm426, %v411, %v413
        %v428 = vsel %vm426, %v413, %v415
        %v429 = vsel %vm426, %v415, %v417
        %v430 = vsel %vm426, %v417, %v419
        %v431 = vsel %vm426, %v419, %v421
        %v432 = vsel %vm426, %v421, %v423
        %v433 = vsel %vm426, %v423, %v425
        %442 = vst [vmem:[#allocation2 + $0x40] sm:$0xf0] %v427
        %443 = vst [vmem:[#allocation2 + $0x48] sm:$0xf0] %v428
        %444 = vst [vmem:[#allocation2 + $0x50] sm:$0xf0] %v429
        %445 = vst [vmem:[#allocation2 + $0x58] sm:$0xf0] %v430
        %446 = vst [vmem:[#allocation2 + $0x60] sm:$0xf0] %v431
        %447 = vst [vmem:[#allocation2 + $0x68] sm:$0xf0] %v432
        %448 = vst [vmem:[#allocation2 + $0x70] sm:$0xf0] %v433
        %449 = vst.msk [vmem:[#allocation2 + $0x78] sm:$0xf0] %vm344, %v425
        %v450 = vld [vmem:[%s239] sm:$0xff]
        %v451 = vld [vmem:[%s239 + $0x8] sm:$0xff]
        %v452 = vld [vmem:[%s239 + $0x10] sm:$0xff]
        %v453 = vld [vmem:[%s239 + $0x18] sm:$0xff]
        %v458 = vcombine.high %v450, %v450
        %v459 = vcombine.high %v451, %v451
        %v460 = vcombine.high %v452, %v452
        %v461 = vcombine.high %v453, %v453
        %462 = vrot.lane.b32.xlu0 %v450, 117
        %v463 = vpop.permute.xlu0 %462
        %464 = vrot.lane.b32.xlu0 %v458, 117
        %v465 = vpop.permute.xlu0 %464
        %466 = vrot.lane.b32.xlu0 %v451, 117
        %v467 = vpop.permute.xlu0 %466
        %468 = vrot.lane.b32.xlu0 %v459, 117
        %v469 = vpop.permute.xlu0 %468
        %470 = vrot.lane.b32.xlu0 %v452, 117
        %v471 = vpop.permute.xlu0 %470
        %472 = vrot.lane.b32.xlu0 %v460, 117
        %v473 = vpop.permute.xlu0 %472
        %474 = vrot.lane.b32.xlu0 %v453, 117
        %v475 = vpop.permute.xlu0 %474
        %476 = vrot.lane.b32.xlu0 %v461, 117
        %v477 = vpop.permute.xlu0 %476
        %vm478 = vcmask 957440
        %v479 = vsel %vm478, %v463, %v465
        %v480 = vsel %vm478, %v465, %v467
        %v481 = vsel %vm478, %v467, %v469
        %v482 = vsel %vm478, %v469, %v471
        %v483 = vsel %vm478, %v471, %v473
        %v484 = vsel %vm478, %v473, %v475
        %v485 = vsel %vm478, %v475, %v477
        %494 = vst [vmem:[#allocation2 + $0x80] sm:$0xf] %v479
        %495 = vst [vmem:[#allocation2 + $0x88] sm:$0xf] %v480
        %496 = vst [vmem:[#allocation2 + $0x90] sm:$0xf] %v481
        %497 = vst [vmem:[#allocation2 + $0x98] sm:$0xf] %v482
        %498 = vst [vmem:[#allocation2 + $0xa0] sm:$0xf] %v483
        %499 = vst [vmem:[#allocation2 + $0xa8] sm:$0xf] %v484
        %500 = vst [vmem:[#allocation2 + $0xb0] sm:$0xf] %v485
        %501 = vst.msk [vmem:[#allocation2 + $0xb8] sm:$0xf] %vm291, %v477
        %v502 = vld [vmem:[%s239] sm:$0xff]
        %v503 = vld [vmem:[%s239 + $0x8] sm:$0xff]
        %v504 = vld [vmem:[%s239 + $0x10] sm:$0xff]
        %v505 = vld [vmem:[%s239 + $0x18] sm:$0xff]
        %v510 = vcombine.low %v502, %v502
        %v511 = vcombine.low %v503, %v503
        %v512 = vcombine.low %v504, %v504
        %v513 = vcombine.low %v505, %v505
        %514 = vrot.lane.b32.xlu0 %v510, 116
        %v515 = vpop.permute.xlu0 %514
        %516 = vrot.lane.b32.xlu0 %v502, 116
        %v517 = vpop.permute.xlu0 %516
        %518 = vrot.lane.b32.xlu0 %v511, 116
        %v519 = vpop.permute.xlu0 %518
        %520 = vrot.lane.b32.xlu0 %v503, 116
        %v521 = vpop.permute.xlu0 %520
        %522 = vrot.lane.b32.xlu0 %v512, 116
        %v523 = vpop.permute.xlu0 %522
        %524 = vrot.lane.b32.xlu0 %v504, 116
        %v525 = vpop.permute.xlu0 %524
        %526 = vrot.lane.b32.xlu0 %v513, 116
        %v527 = vpop.permute.xlu0 %526
        %528 = vrot.lane.b32.xlu0 %v505, 116
        %v529 = vpop.permute.xlu0 %528
        %vm530 = vcmask 949248
        %v531 = vsel %vm530, %v515, %v517
        %v532 = vsel %vm530, %v517, %v519
        %v533 = vsel %vm530, %v519, %v521
        %v534 = vsel %vm530, %v521, %v523
        %v535 = vsel %vm530, %v523, %v525
        %v536 = vsel %vm530, %v525, %v527
        %v537 = vsel %vm530, %v527, %v529
        %546 = vst [vmem:[#allocation2 + $0x80] sm:$0xf0] %v531
        %547 = vst [vmem:[#allocation2 + $0x88] sm:$0xf0] %v532
        %548 = vst [vmem:[#allocation2 + $0x90] sm:$0xf0] %v533
        %549 = vst [vmem:[#allocation2 + $0x98] sm:$0xf0] %v534
        %550 = vst [vmem:[#allocation2 + $0xa0] sm:$0xf0] %v535
        %551 = vst [vmem:[#allocation2 + $0xa8] sm:$0xf0] %v536
        %552 = vst [vmem:[#allocation2 + $0xb0] sm:$0xf0] %v537
        %553 = vst.msk [vmem:[#allocation2 + $0xb8] sm:$0xf0] %vm344, %v529
        %v554 = vld [vmem:[%s239] sm:$0xff]
        %v555 = vld [vmem:[%s239 + $0x8] sm:$0xff]
        %v556 = vld [vmem:[%s239 + $0x10] sm:$0xff]
        %v557 = vld [vmem:[%s239 + $0x18] sm:$0xff]
        %v562 = vcombine.high %v554, %v554
        %v563 = vcombine.high %v555, %v555
        %v564 = vcombine.high %v556, %v556
        %v565 = vcombine.high %v557, %v557
        %566 = vrot.lane.b32.xlu0 %v554, 108
        %v567 = vpop.permute.xlu0 %566
        %568 = vrot.lane.b32.xlu0 %v562, 108
        %v569 = vpop.permute.xlu0 %568
        %570 = vrot.lane.b32.xlu0 %v555, 108
        %v571 = vpop.permute.xlu0 %570
        %572 = vrot.lane.b32.xlu0 %v563, 108
        %v573 = vpop.permute.xlu0 %572
        %574 = vrot.lane.b32.xlu0 %v556, 108
        %v575 = vpop.permute.xlu0 %574
        %576 = vrot.lane.b32.xlu0 %v564, 108
        %v577 = vpop.permute.xlu0 %576
        %578 = vrot.lane.b32.xlu0 %v557, 108
        %v579 = vpop.permute.xlu0 %578
        %580 = vrot.lane.b32.xlu0 %v565, 108
        %v581 = vpop.permute.xlu0 %580
        %vm582 = vcmask 883712
        %v583 = vsel %vm582, %v567, %v569
        %v584 = vsel %vm582, %v569, %v571
        %v585 = vsel %vm582, %v571, %v573
        %v586 = vsel %vm582, %v573, %v575
        %v587 = vsel %vm582, %v575, %v577
        %v588 = vsel %vm582, %v577, %v579
        %v589 = vsel %vm582, %v579, %v581
        %598 = vst [vmem:[#allocation2 + $0xc0] sm:$0xf] %v583
        %599 = vst [vmem:[#allocation2 + $0xc8] sm:$0xf] %v584
        %600 = vst [vmem:[#allocation2 + $0xd0] sm:$0xf] %v585
        %601 = vst [vmem:[#allocation2 + $0xd8] sm:$0xf] %v586
        %602 = vst [vmem:[#allocation2 + $0xe0] sm:$0xf] %v587
        %603 = vst [vmem:[#allocation2 + $0xe8] sm:$0xf] %v588
        %604 = vst [vmem:[#allocation2 + $0xf0] sm:$0xf] %v589
        %605 = vst.msk [vmem:[#allocation2 + $0xf8] sm:$0xf] %vm291, %v581
        %v606 = vld [vmem:[%s239] sm:$0xff]
        %v607 = vld [vmem:[%s239 + $0x8] sm:$0xff]
        %v608 = vld [vmem:[%s239 + $0x10] sm:$0xff]
        %v609 = vld [vmem:[%s239 + $0x18] sm:$0xff]
        %v614 = vcombine.low %v606, %v606
        %v615 = vcombine.low %v607, %v607
        %v616 = vcombine.low %v608, %v608
        %v617 = vcombine.low %v609, %v609
        %618 = vrot.lane.b32.xlu0 %v614, 107
        %v619 = vpop.permute.xlu0 %618
        %620 = vrot.lane.b32.xlu0 %v606, 107
        %v621 = vpop.permute.xlu0 %620
        %622 = vrot.lane.b32.xlu0 %v615, 107
        %v623 = vpop.permute.xlu0 %622
        %624 = vrot.lane.b32.xlu0 %v607, 107
        %v625 = vpop.permute.xlu0 %624
        %626 = vrot.lane.b32.xlu0 %v616, 107
        %v627 = vpop.permute.xlu0 %626
        %628 = vrot.lane.b32.xlu0 %v608, 107
        %v629 = vpop.permute.xlu0 %628
        %630 = vrot.lane.b32.xlu0 %v617, 107
        %v631 = vpop.permute.xlu0 %630
        %632 = vrot.lane.b32.xlu0 %v609, 107
        %v633 = vpop.permute.xlu0 %632
        %vm634 = vcmask 875520
        %v635 = vsel %vm634, %v619, %v621
        %v636 = vsel %vm634, %v621, %v623
        %v637 = vsel %vm634, %v623, %v625
        %v638 = vsel %vm634, %v625, %v627
        %v639 = vsel %vm634, %v627, %v629
        %v640 = vsel %vm634, %v629, %v631
        %v641 = vsel %vm634, %v631, %v633
        %650 = vst [vmem:[#allocation2 + $0xc0] sm:$0xf0] %v635
        %651 = vst [vmem:[#allocation2 + $0xc8] sm:$0xf0] %v636
        %652 = vst [vmem:[#allocation2 + $0xd0] sm:$0xf0] %v637
        %653 = vst [vmem:[#allocation2 + $0xd8] sm:$0xf0] %v638
        %654 = vst [vmem:[#allocation2 + $0xe0] sm:$0xf0] %v639
        %655 = vst [vmem:[#allocation2 + $0xe8] sm:$0xf0] %v640
        %656 = vst [vmem:[#allocation2 + $0xf0] sm:$0xf0] %v641
        %657 = vst.msk [vmem:[#allocation2 + $0xf8] sm:$0xf0] %vm344, %v633
        %v658 = vld [vmem:[%s239] sm:$0xff]
        %v659 = vld [vmem:[%s239 + $0x8] sm:$0xff]
        %v660 = vld [vmem:[%s239 + $0x10] sm:$0xff]
        %v661 = vld [vmem:[%s239 + $0x18] sm:$0xff]
        %v666 = vcombine.high %v658, %v658
        %v667 = vcombine.high %v659, %v659
        %v668 = vcombine.high %v660, %v660
        %v669 = vcombine.high %v661, %v661
        %670 = vrot.lane.b32.xlu0 %v658, 106
        %v671 = vpop.permute.xlu0 %670
        %672 = vrot.lane.b32.xlu0 %v666, 106
        %v673 = vpop.permute.xlu0 %672
        %674 = vrot.lane.b32.xlu0 %v659, 106
        %v675 = vpop.permute.xlu0 %674
        %676 = vrot.lane.b32.xlu0 %v667, 106
        %v677 = vpop.permute.xlu0 %676
        %678 = vrot.lane.b32.xlu0 %v660, 106
        %v679 = vpop.permute.xlu0 %678
        %680 = vrot.lane.b32.xlu0 %v668, 106
        %v681 = vpop.permute.xlu0 %680
        %682 = vrot.lane.b32.xlu0 %v661, 106
        %v683 = vpop.permute.xlu0 %682
        %684 = vrot.lane.b32.xlu0 %v669, 106
        %v685 = vpop.permute.xlu0 %684
        %vm686 = vcmask 867328
        %v687 = vsel %vm686, %v671, %v673
        %v688 = vsel %vm686, %v673, %v675
        %v689 = vsel %vm686, %v675, %v677
        %v690 = vsel %vm686, %v677, %v679
        %v691 = vsel %vm686, %v679, %v681
        %v692 = vsel %vm686, %v681, %v683
        %v693 = vsel %vm686, %v683, %v685
        %702 = vst [vmem:[#allocation2 + $0x100] sm:$0xf] %v687
        %703 = vst [vmem:[#allocation2 + $0x108] sm:$0xf] %v688
        %704 = vst [vmem:[#allocation2 + $0x110] sm:$0xf] %v689
        %705 = vst [vmem:[#allocation2 + $0x118] sm:$0xf] %v690
        %706 = vst [vmem:[#allocation2 + $0x120] sm:$0xf] %v691
        %707 = vst [vmem:[#allocation2 + $0x128] sm:$0xf] %v692
        %708 = vst [vmem:[#allocation2 + $0x130] sm:$0xf] %v693
        %709 = vst.msk [vmem:[#allocation2 + $0x138] sm:$0xf] %vm291, %v685
        %v710 = vld [vmem:[%s239] sm:$0xff]
        %v711 = vld [vmem:[%s239 + $0x8] sm:$0xff]
        %v712 = vld [vmem:[%s239 + $0x10] sm:$0xff]
        %v713 = vld [vmem:[%s239 + $0x18] sm:$0xff]
        %v714 = vld [vmem:[%s239 + $0x20] sm:$0xf]
        %v720 = vcombine.low %v710, %v710
        %v721 = vcombine.low %v711, %v711
        %v722 = vcombine.low %v712, %v712
        %v723 = vcombine.low %v713, %v713
        %v724 = vcombine.low %v714, %v714
        %725 = vrot.lane.b32.xlu0 %v720, 28
        %v726 = vpop.permute.xlu0 %725
        %727 = vrot.lane.b32.xlu0 %v710, 28
        %v728 = vpop.permute.xlu0 %727
        %729 = vrot.lane.b32.xlu0 %v721, 28
        %v730 = vpop.permute.xlu0 %729
        %731 = vrot.lane.b32.xlu0 %v711, 28
        %v732 = vpop.permute.xlu0 %731
        %733 = vrot.lane.b32.xlu0 %v722, 28
        %v734 = vpop.permute.xlu0 %733
        %735 = vrot.lane.b32.xlu0 %v712, 28
        %v736 = vpop.permute.xlu0 %735
        %737 = vrot.lane.b32.xlu0 %v723, 28
        %v738 = vpop.permute.xlu0 %737
        %739 = vrot.lane.b32.xlu0 %v713, 28
        %v740 = vpop.permute.xlu0 %739
        %741 = vrot.lane.b32.xlu0 %v724, 28
        %v742 = vpop.permute.xlu0 %741
        %vm743 = vcmask 228352
        %v744 = vsel %vm743, %v726, %v728
        %v745 = vsel %vm743, %v728, %v730
        %v746 = vsel %vm743, %v730, %v732
        %v747 = vsel %vm743, %v732, %v734
        %v748 = vsel %vm743, %v734, %v736
        %v749 = vsel %vm743, %v736, %v738
        %v750 = vsel %vm743, %v738, %v740
        %v751 = vsel %vm743, %v740, %v742
        %760 = vst [vmem:[#allocation2 + $0x100] sm:$0xf0] %v744
        %761 = vst [vmem:[#allocation2 + $0x108] sm:$0xf0] %v745
        %762 = vst [vmem:[#allocation2 + $0x110] sm:$0xf0] %v746
        %763 = vst [vmem:[#allocation2 + $0x118] sm:$0xf0] %v747
        %764 = vst [vmem:[#allocation2 + $0x120] sm:$0xf0] %v748
        %765 = vst [vmem:[#allocation2 + $0x128] sm:$0xf0] %v749
        %766 = vst [vmem:[#allocation2 + $0x130] sm:$0xf0] %v750
        %767 = vst.msk [vmem:[#allocation2 + $0x138] sm:$0xf0] %vm344, %v751
        %v768 = vld [vmem:[%s239] sm:$0xff]
        %v769 = vld [vmem:[%s239 + $0x8] sm:$0xff]
        %v770 = vld [vmem:[%s239 + $0x10] sm:$0xff]
        %v771 = vld [vmem:[%s239 + $0x18] sm:$0xff]
        %v772 = vld [vmem:[%s239 + $0x20] sm:$0xf]
        %v778 = vcombine.high %v768, %v768
        %v779 = vcombine.high %v769, %v769
        %v780 = vcombine.high %v770, %v770
        %v781 = vcombine.high %v771, %v771
        %782 = vrot.lane.b32.xlu0 %v768, 27
        %v783 = vpop.permute.xlu0 %782
        %784 = vrot.lane.b32.xlu0 %v778, 27
        %v785 = vpop.permute.xlu0 %784
        %786 = vrot.lane.b32.xlu0 %v769, 27
        %v787 = vpop.permute.xlu0 %786
        %788 = vrot.lane.b32.xlu0 %v779, 27
        %v789 = vpop.permute.xlu0 %788
        %790 = vrot.lane.b32.xlu0 %v770, 27
        %v791 = vpop.permute.xlu0 %790
        %792 = vrot.lane.b32.xlu0 %v780, 27
        %v793 = vpop.permute.xlu0 %792
        %794 = vrot.lane.b32.xlu0 %v771, 27
        %v795 = vpop.permute.xlu0 %794
        %796 = vrot.lane.b32.xlu0 %v781, 27
        %v797 = vpop.permute.xlu0 %796
        %798 = vrot.lane.b32.xlu0 %v772, 27
        %v799 = vpop.permute.xlu0 %798
        %vm800 = vcmask 220160
        %v801 = vsel %vm800, %v783, %v785
        %v802 = vsel %vm800, %v785, %v787
        %v803 = vsel %vm800, %v787, %v789
        %v804 = vsel %vm800, %v789, %v791
        %v805 = vsel %vm800, %v791, %v793
        %v806 = vsel %vm800, %v793, %v795
        %v807 = vsel %vm800, %v795, %v797
        %v808 = vsel %vm800, %v797, %v799
        %817 = vst [vmem:[#allocation2 + $0x140] sm:$0xf] %v801
        %818 = vst [vmem:[#allocation2 + $0x148] sm:$0xf] %v802
        %819 = vst [vmem:[#allocation2 + $0x150] sm:$0xf] %v803
        %820 = vst [vmem:[#allocation2 + $0x158] sm:$0xf] %v804
        %821 = vst [vmem:[#allocation2 + $0x160] sm:$0xf] %v805
        %822 = vst [vmem:[#allocation2 + $0x168] sm:$0xf] %v806
        %823 = vst [vmem:[#allocation2 + $0x170] sm:$0xf] %v807
        %824 = vst.msk [vmem:[#allocation2 + $0x178] sm:$0xf] %vm291, %v808
        %v825 = vld [vmem:[%s239] sm:$0xff]
        %v826 = vld [vmem:[%s239 + $0x8] sm:$0xff]
        %v827 = vld [vmem:[%s239 + $0x10] sm:$0xff]
        %v828 = vld [vmem:[%s239 + $0x18] sm:$0xff]
        %v829 = vld [vmem:[%s239 + $0x20] sm:$0xf]
        %v835 = vcombine.low %v825, %v825
        %v836 = vcombine.low %v826, %v826
        %v837 = vcombine.low %v827, %v827
        %v838 = vcombine.low %v828, %v828
        %v839 = vcombine.low %v829, %v829
        %840 = vrot.lane.b32.xlu0 %v835, 26
        %v841 = vpop.permute.xlu0 %840
        %842 = vrot.lane.b32.xlu0 %v825, 26
        %v843 = vpop.permute.xlu0 %842
        %844 = vrot.lane.b32.xlu0 %v836, 26
        %v845 = vpop.permute.xlu0 %844
        %846 = vrot.lane.b32.xlu0 %v826, 26
        %v847 = vpop.permute.xlu0 %846
        %848 = vrot.lane.b32.xlu0 %v837, 26
        %v849 = vpop.permute.xlu0 %848
        %850 = vrot.lane.b32.xlu0 %v827, 26
        %v851 = vpop.permute.xlu0 %850
        %852 = vrot.lane.b32.xlu0 %v838, 26
        %v853 = vpop.permute.xlu0 %852
        %854 = vrot.lane.b32.xlu0 %v828, 26
        %v855 = vpop.permute.xlu0 %854
        %856 = vrot.lane.b32.xlu0 %v839, 26
        %v857 = vpop.permute.xlu0 %856
        %vm858 = vcmask 211968
        %v859 = vsel %vm858, %v841, %v843
        %v860 = vsel %vm858, %v843, %v845
        %v861 = vsel %vm858, %v845, %v847
        %v862 = vsel %vm858, %v847, %v849
        %v863 = vsel %vm858, %v849, %v851
        %v864 = vsel %vm858, %v851, %v853
        %v865 = vsel %vm858, %v853, %v855
        %v866 = vsel %vm858, %v855, %v857
        %875 = vst [vmem:[#allocation2 + $0x140] sm:$0xf0] %v859
        %876 = vst [vmem:[#allocation2 + $0x148] sm:$0xf0] %v860
        %877 = vst [vmem:[#allocation2 + $0x150] sm:$0xf0] %v861
        %878 = vst [vmem:[#allocation2 + $0x158] sm:$0xf0] %v862
        %879 = vst [vmem:[#allocation2 + $0x160] sm:$0xf0] %v863
        %880 = vst [vmem:[#allocation2 + $0x168] sm:$0xf0] %v864
        %881 = vst [vmem:[#allocation2 + $0x170] sm:$0xf0] %v865
        %882 = vst.msk [vmem:[#allocation2 + $0x178] sm:$0xf0] %vm344, %v866
        %v883 = vld [vmem:[%s239] sm:$0xff]
        %v884 = vld [vmem:[%s239 + $0x8] sm:$0xff]
        %v885 = vld [vmem:[%s239 + $0x10] sm:$0xff]
        %v886 = vld [vmem:[%s239 + $0x18] sm:$0xff]
        %v887 = vld [vmem:[%s239 + $0x20] sm:$0xf]
        %v893 = vcombine.high %v883, %v883
        %v894 = vcombine.high %v884, %v884
        %v895 = vcombine.high %v885, %v885
        %v896 = vcombine.high %v886, %v886
        %897 = vrot.lane.b32.xlu0 %v883, 18
        %v898 = vpop.permute.xlu0 %897
        %899 = vrot.lane.b32.xlu0 %v893, 18
        %v900 = vpop.permute.xlu0 %899
        %901 = vrot.lane.b32.xlu0 %v884, 18
        %v902 = vpop.permute.xlu0 %901
        %903 = vrot.lane.b32.xlu0 %v894, 18
        %v904 = vpop.permute.xlu0 %903
        %905 = vrot.lane.b32.xlu0 %v885, 18
        %v906 = vpop.permute.xlu0 %905
        %907 = vrot.lane.b32.xlu0 %v895, 18
        %v908 = vpop.permute.xlu0 %907
        %909 = vrot.lane.b32.xlu0 %v886, 18
        %v910 = vpop.permute.xlu0 %909
        %911 = vrot.lane.b32.xlu0 %v896, 18
        %v912 = vpop.permute.xlu0 %911
        %913 = vrot.lane.b32.xlu0 %v887, 18
        %v914 = vpop.permute.xlu0 %913
        %vm915 = vcmask 146432
        %v916 = vsel %vm915, %v898, %v900
        %v917 = vsel %vm915, %v900, %v902
        %v918 = vsel %vm915, %v902, %v904
        %v919 = vsel %vm915, %v904, %v906
        %v920 = vsel %vm915, %v906, %v908
        %v921 = vsel %vm915, %v908, %v910
        %v922 = vsel %vm915, %v910, %v912
        %v923 = vsel %vm915, %v912, %v914
        %932 = vst [vmem:[#allocation2 + $0x180] sm:$0xf] %v916
        %933 = vst [vmem:[#allocation2 + $0x188] sm:$0xf] %v917
        %934 = vst [vmem:[#allocation2 + $0x190] sm:$0xf] %v918
        %935 = vst [vmem:[#allocation2 + $0x198] sm:$0xf] %v919
        %936 = vst [vmem:[#allocation2 + $0x1a0] sm:$0xf] %v920
        %937 = vst [vmem:[#allocation2 + $0x1a8] sm:$0xf] %v921
        %938 = vst [vmem:[#allocation2 + $0x1b0] sm:$0xf] %v922
        %939 = vst.msk [vmem:[#allocation2 + $0x1b8] sm:$0xf] %vm291, %v923
        %v940 = vld [vmem:[%s239] sm:$0xff]
        %v941 = vld [vmem:[%s239 + $0x8] sm:$0xff]
        %v942 = vld [vmem:[%s239 + $0x10] sm:$0xff]
        %v943 = vld [vmem:[%s239 + $0x18] sm:$0xff]
        %v944 = vld [vmem:[%s239 + $0x20] sm:$0xf]
        %v950 = vcombine.low %v940, %v940
        %v951 = vcombine.low %v941, %v941
        %v952 = vcombine.low %v942, %v942
        %v953 = vcombine.low %v943, %v943
        %v954 = vcombine.low %v944, %v944
        %955 = vrot.lane.b32.xlu0 %v950, 17
        %v956 = vpop.permute.xlu0 %955
        %957 = vrot.lane.b32.xlu0 %v940, 17
        %v958 = vpop.permute.xlu0 %957
        %959 = vrot.lane.b32.xlu0 %v951, 17
        %v960 = vpop.permute.xlu0 %959
        %961 = vrot.lane.b32.xlu0 %v941, 17
        %v962 = vpop.permute.xlu0 %961
        %963 = vrot.lane.b32.xlu0 %v952, 17
        %v964 = vpop.permute.xlu0 %963
        %965 = vrot.lane.b32.xlu0 %v942, 17
        %v966 = vpop.permute.xlu0 %965
        %967 = vrot.lane.b32.xlu0 %v953, 17
        %v968 = vpop.permute.xlu0 %967
        %969 = vrot.lane.b32.xlu0 %v943, 17
        %v970 = vpop.permute.xlu0 %969
        %971 = vrot.lane.b32.xlu0 %v954, 17
        %v972 = vpop.permute.xlu0 %971
        %vm973 = vcmask 138240
        %v974 = vsel %vm973, %v956, %v958
        %v975 = vsel %vm973, %v958, %v960
        %v976 = vsel %vm973, %v960, %v962
        %v977 = vsel %vm973, %v962, %v964
        %v978 = vsel %vm973, %v964, %v966
        %v979 = vsel %vm973, %v966, %v968
        %v980 = vsel %vm973, %v968, %v970
        %v981 = vsel %vm973, %v970, %v972
        %990 = vst [vmem:[#allocation2 + $0x180] sm:$0xf0] %v974
        %991 = vst [vmem:[#allocation2 + $0x188] sm:$0xf0] %v975
        %992 = vst [vmem:[#allocation2 + $0x190] sm:$0xf0] %v976
        %993 = vst [vmem:[#allocation2 + $0x198] sm:$0xf0] %v977
        %994 = vst [vmem:[#allocation2 + $0x1a0] sm:$0xf0] %v978
        %995 = vst [vmem:[#allocation2 + $0x1a8] sm:$0xf0] %v979
        %996 = vst [vmem:[#allocation2 + $0x1b0] sm:$0xf0] %v980
        %997 = vst.msk [vmem:[#allocation2 + $0x1b8] sm:$0xf0] %vm344, %v981
        %v998 = vld [vmem:[%s239] sm:$0xff]
        %v999 = vld [vmem:[%s239 + $0x8] sm:$0xff]
        %v1000 = vld [vmem:[%s239 + $0x10] sm:$0xff]
        %v1001 = vld [vmem:[%s239 + $0x18] sm:$0xff]
        %v1002 = vld [vmem:[%s239 + $0x20] sm:$0xf]
        %v1008 = vcombine.high %v998, %v998
        %v1009 = vcombine.high %v999, %v999
        %v1010 = vcombine.high %v1000, %v1000
        %v1011 = vcombine.high %v1001, %v1001
        %1012 = vrot.lane.b32.xlu0 %v998, 16
        %v1013 = vpop.permute.xlu0 %1012
        %1014 = vrot.lane.b32.xlu0 %v1008, 16
        %v1015 = vpop.permute.xlu0 %1014
        %1016 = vrot.lane.b32.xlu0 %v999, 16
        %v1017 = vpop.permute.xlu0 %1016
        %1018 = vrot.lane.b32.xlu0 %v1009, 16
        %v1019 = vpop.permute.xlu0 %1018
        %1020 = vrot.lane.b32.xlu0 %v1000, 16
        %v1021 = vpop.permute.xlu0 %1020
        %1022 = vrot.lane.b32.xlu0 %v1010, 16
        %v1023 = vpop.permute.xlu0 %1022
        %1024 = vrot.lane.b32.xlu0 %v1001, 16
        %v1025 = vpop.permute.xlu0 %1024
        %1026 = vrot.lane.b32.xlu0 %v1011, 16
        %v1027 = vpop.permute.xlu0 %1026
        %1028 = vrot.lane.b32.xlu0 %v1002, 16
        %v1029 = vpop.permute.xlu0 %1028
        %vm1030 = vcmask 130048
        %v1031 = vsel %vm1030, %v1013, %v1015
        %v1032 = vsel %vm1030, %v1015, %v1017
        %v1033 = vsel %vm1030, %v1017, %v1019
        %v1034 = vsel %vm1030, %v1019, %v1021
        %v1035 = vsel %vm1030, %v1021, %v1023
        %v1036 = vsel %vm1030, %v1023, %v1025
        %v1037 = vsel %vm1030, %v1025, %v1027
        %v1038 = vsel %vm1030, %v1027, %v1029
        %1047 = vst [vmem:[#allocation2 + $0x1c0] sm:$0xf] %v1031
        %1048 = vst [vmem:[#allocation2 + $0x1c8] sm:$0xf] %v1032
        %1049 = vst [vmem:[#allocation2 + $0x1d0] sm:$0xf] %v1033
        %1050 = vst [vmem:[#allocation2 + $0x1d8] sm:$0xf] %v1034
        %1051 = vst [vmem:[#allocation2 + $0x1e0] sm:$0xf] %v1035
        %1052 = vst [vmem:[#allocation2 + $0x1e8] sm:$0xf] %v1036
        %1053 = vst [vmem:[#allocation2 + $0x1f0] sm:$0xf] %v1037
        %1054 = vst.msk [vmem:[#allocation2 + $0x1f8] sm:$0xf] %vm291, %v1038
        %v1055 = vld [vmem:[%s239] sm:$0xff]
        %v1056 = vld [vmem:[%s239 + $0x8] sm:$0xff]
        %v1057 = vld [vmem:[%s239 + $0x10] sm:$0xff]
        %v1058 = vld [vmem:[%s239 + $0x18] sm:$0xff]
        %v1059 = vld [vmem:[%s239 + $0x20] sm:$0xf]
        %v1065 = vcombine.low %v1055, %v1055
        %v1066 = vcombine.low %v1056, %v1056
        %v1067 = vcombine.low %v1057, %v1057
        %v1068 = vcombine.low %v1058, %v1058
        %v1069 = vcombine.low %v1059, %v1059
        %1070 = vrot.lane.b32.xlu0 %v1065, 8
        %v1071 = vpop.permute.xlu0 %1070
        %1072 = vrot.lane.b32.xlu0 %v1055, 8
        %v1073 = vpop.permute.xlu0 %1072
        %1074 = vrot.lane.b32.xlu0 %v1066, 8
        %v1075 = vpop.permute.xlu0 %1074
        %1076 = vrot.lane.b32.xlu0 %v1056, 8
        %v1077 = vpop.permute.xlu0 %1076
        %1078 = vrot.lane.b32.xlu0 %v1067, 8
        %v1079 = vpop.permute.xlu0 %1078
        %1080 = vrot.lane.b32.xlu0 %v1057, 8
        %v1081 = vpop.permute.xlu0 %1080
        %1082 = vrot.lane.b32.xlu0 %v1068, 8
        %v1083 = vpop.permute.xlu0 %1082
        %1084 = vrot.lane.b32.xlu0 %v1058, 8
        %v1085 = vpop.permute.xlu0 %1084
        %1086 = vrot.lane.b32.xlu0 %v1069, 8
        %v1087 = vpop.permute.xlu0 %1086
        %vm1088 = vcmask 64512
        %v1089 = vsel %vm1088, %v1071, %v1073
        %v1090 = vsel %vm1088, %v1073, %v1075
        %v1091 = vsel %vm1088, %v1075, %v1077
        %v1092 = vsel %vm1088, %v1077, %v1079
        %v1093 = vsel %vm1088, %v1079, %v1081
        %v1094 = vsel %vm1088, %v1081, %v1083
        %v1095 = vsel %vm1088, %v1083, %v1085
        %v1096 = vsel %vm1088, %v1085, %v1087
        %1105 = vst [vmem:[#allocation2 + $0x1c0] sm:$0xf0] %v1089
        %1106 = vst [vmem:[#allocation2 + $0x1c8] sm:$0xf0] %v1090
        %1107 = vst [vmem:[#allocation2 + $0x1d0] sm:$0xf0] %v1091
        %1108 = vst [vmem:[#allocation2 + $0x1d8] sm:$0xf0] %v1092
        %1109 = vst [vmem:[#allocation2 + $0x1e0] sm:$0xf0] %v1093
        %1110 = vst [vmem:[#allocation2 + $0x1e8] sm:$0xf0] %v1094
        %1111 = vst [vmem:[#allocation2 + $0x1f0] sm:$0xf0] %v1095
        %1112 = vst.msk [vmem:[#allocation2 + $0x1f8] sm:$0xf0] %vm344, %v1096
        %v1113 = vld [vmem:[%s239] sm:$0xff]
        %v1114 = vld [vmem:[%s239 + $0x8] sm:$0xff]
        %v1115 = vld [vmem:[%s239 + $0x10] sm:$0xff]
        %v1116 = vld [vmem:[%s239 + $0x18] sm:$0xff]
        %v1117 = vld [vmem:[%s239 + $0x20] sm:$0xf]
        %v1123 = vcombine.high %v1113, %v1113
        %v1124 = vcombine.high %v1114, %v1114
        %v1125 = vcombine.high %v1115, %v1115
        %v1126 = vcombine.high %v1116, %v1116
        %1127 = vrot.lane.b32.xlu0 %v1113, 7
        %v1128 = vpop.permute.xlu0 %1127
        %1129 = vrot.lane.b32.xlu0 %v1123, 7
        %v1130 = vpop.permute.xlu0 %1129
        %1131 = vrot.lane.b32.xlu0 %v1114, 7
        %v1132 = vpop.permute.xlu0 %1131
        %1133 = vrot.lane.b32.xlu0 %v1124, 7
        %v1134 = vpop.permute.xlu0 %1133
        %1135 = vrot.lane.b32.xlu0 %v1115, 7
        %v1136 = vpop.permute.xlu0 %1135
        %1137 = vrot.lane.b32.xlu0 %v1125, 7
        %v1138 = vpop.permute.xlu0 %1137
        %1139 = vrot.lane.b32.xlu0 %v1116, 7
        %v1140 = vpop.permute.xlu0 %1139
        %1141 = vrot.lane.b32.xlu0 %v1126, 7
        %v1142 = vpop.permute.xlu0 %1141
        %1143 = vrot.lane.b32.xlu0 %v1117, 7
        %v1144 = vpop.permute.xlu0 %1143
        %vm1145 = vcmask 56320
        %v1146 = vsel %vm1145, %v1128, %v1130
        %v1147 = vsel %vm1145, %v1130, %v1132
        %v1148 = vsel %vm1145, %v1132, %v1134
        %v1149 = vsel %vm1145, %v1134, %v1136
        %v1150 = vsel %vm1145, %v1136, %v1138
        %v1151 = vsel %vm1145, %v1138, %v1140
        %v1152 = vsel %vm1145, %v1140, %v1142
        %v1153 = vsel %vm1145, %v1142, %v1144
        %1162 = vst [vmem:[#allocation2 + $0x200] sm:$0xf] %v1146
        %1163 = vst [vmem:[#allocation2 + $0x208] sm:$0xf] %v1147
        %1164 = vst [vmem:[#allocation2 + $0x210] sm:$0xf] %v1148
        %1165 = vst [vmem:[#allocation2 + $0x218] sm:$0xf] %v1149
        %1166 = vst [vmem:[#allocation2 + $0x220] sm:$0xf] %v1150
        %1167 = vst [vmem:[#allocation2 + $0x228] sm:$0xf] %v1151
        %1168 = vst [vmem:[#allocation2 + $0x230] sm:$0xf] %v1152
        %1169 = vst.msk [vmem:[#allocation2 + $0x238] sm:$0xf] %vm291, %v1153
        %v1170 = vld [vmem:[%s239] sm:$0xff]
        %v1171 = vld [vmem:[%s239 + $0x8] sm:$0xff]
        %v1172 = vld [vmem:[%s239 + $0x10] sm:$0xff]
        %v1173 = vld [vmem:[%s239 + $0x18] sm:$0xff]
        %v1174 = vld [vmem:[%s239 + $0x20] sm:$0xf]
        %v1180 = vcombine.low %v1170, %v1170
        %v1181 = vcombine.low %v1171, %v1171
        %v1182 = vcombine.low %v1172, %v1172
        %v1183 = vcombine.low %v1173, %v1173
        %v1184 = vcombine.low %v1174, %v1174
        %1185 = vrot.lane.b32.xlu0 %v1180, 6
        %v1186 = vpop.permute.xlu0 %1185
        %1187 = vrot.lane.b32.xlu0 %v1170, 6
        %v1188 = vpop.permute.xlu0 %1187
        %1189 = vrot.lane.b32.xlu0 %v1181, 6
        %v1190 = vpop.permute.xlu0 %1189
        %1191 = vrot.lane.b32.xlu0 %v1171, 6
        %v1192 = vpop.permute.xlu0 %1191
        %1193 = vrot.lane.b32.xlu0 %v1182, 6
        %v1194 = vpop.permute.xlu0 %1193
        %1195 = vrot.lane.b32.xlu0 %v1172, 6
        %v1196 = vpop.permute.xlu0 %1195
        %1197 = vrot.lane.b32.xlu0 %v1183, 6
        %v1198 = vpop.permute.xlu0 %1197
        %1199 = vrot.lane.b32.xlu0 %v1173, 6
        %v1200 = vpop.permute.xlu0 %1199
        %1201 = vrot.lane.b32.xlu0 %v1184, 6
        %v1202 = vpop.permute.xlu0 %1201
        %vm1203 = vcmask 48128
        %v1204 = vsel %vm1203, %v1186, %v1188
        %v1205 = vsel %vm1203, %v1188, %v1190
        %v1206 = vsel %vm1203, %v1190, %v1192
        %v1207 = vsel %vm1203, %v1192, %v1194
        %v1208 = vsel %vm1203, %v1194, %v1196
        %v1209 = vsel %vm1203, %v1196, %v1198
        %v1210 = vsel %vm1203, %v1198, %v1200
        %v1211 = vsel %vm1203, %v1200, %v1202
        %1220 = vst [vmem:[#allocation2 + $0x200] sm:$0xf0] %v1204
        %1221 = vst [vmem:[#allocation2 + $0x208] sm:$0xf0] %v1205
        %1222 = vst [vmem:[#allocation2 + $0x210] sm:$0xf0] %v1206
        %1223 = vst [vmem:[#allocation2 + $0x218] sm:$0xf0] %v1207
        %1224 = vst [vmem:[#allocation2 + $0x220] sm:$0xf0] %v1208
        %1225 = vst [vmem:[#allocation2 + $0x228] sm:$0xf0] %v1209
        %1226 = vst [vmem:[#allocation2 + $0x230] sm:$0xf0] %v1210
        %1227 = vst.msk [vmem:[#allocation2 + $0x238] sm:$0xf0] %vm344, %v1211
        %v1228 = vld [vmem:[%s239 + $0x4] sm:$0xff]
        %v1229 = vld [vmem:[%s239 + $0xc] sm:$0xff]
        %v1230 = vld [vmem:[%s239 + $0x14] sm:$0xff]
        %v1231 = vld [vmem:[%s239 + $0x1c] sm:$0xff]
        %v1232 = vld [vmem:[%s239 + $0x24] sm:$0xf]
        %v1238 = vcombine.high %v1228, %v1228
        %v1239 = vcombine.high %v1229, %v1229
        %v1240 = vcombine.high %v1230, %v1230
        %v1241 = vcombine.high %v1231, %v1231
        %1242 = vrot.lane.b32.xlu0 %v1228, 56
        %v1243 = vpop.permute.xlu0 %1242
        %1244 = vrot.lane.b32.xlu0 %v1238, 56
        %v1245 = vpop.permute.xlu0 %1244
        %1246 = vrot.lane.b32.xlu0 %v1229, 56
        %v1247 = vpop.permute.xlu0 %1246
        %1248 = vrot.lane.b32.xlu0 %v1239, 56
        %v1249 = vpop.permute.xlu0 %1248
        %1250 = vrot.lane.b32.xlu0 %v1230, 56
        %v1251 = vpop.permute.xlu0 %1250
        %1252 = vrot.lane.b32.xlu0 %v1240, 56
        %v1253 = vpop.permute.xlu0 %1252
        %1254 = vrot.lane.b32.xlu0 %v1231, 56
        %v1255 = vpop.permute.xlu0 %1254
        %1256 = vrot.lane.b32.xlu0 %v1241, 56
        %v1257 = vpop.permute.xlu0 %1256
        %1258 = vrot.lane.b32.xlu0 %v1232, 56
        %v1259 = vpop.permute.xlu0 %1258
        %vm1260 = vcmask 457728
        %v1261 = vsel %vm1260, %v1243, %v1245
        %v1262 = vsel %vm1260, %v1245, %v1247
        %v1263 = vsel %vm1260, %v1247, %v1249
        %v1264 = vsel %vm1260, %v1249, %v1251
        %v1265 = vsel %vm1260, %v1251, %v1253
        %v1266 = vsel %vm1260, %v1253, %v1255
        %v1267 = vsel %vm1260, %v1255, %v1257
        %v1268 = vsel %vm1260, %v1257, %v1259
        %1277 = vst [vmem:[#allocation2 + $0x240] sm:$0xf] %v1261
        %1278 = vst [vmem:[#allocation2 + $0x248] sm:$0xf] %v1262
        %1279 = vst [vmem:[#allocation2 + $0x250] sm:$0xf] %v1263
        %1280 = vst [vmem:[#allocation2 + $0x258] sm:$0xf] %v1264
        %1281 = vst [vmem:[#allocation2 + $0x260] sm:$0xf] %v1265
        %1282 = vst [vmem:[#allocation2 + $0x268] sm:$0xf] %v1266
        %1283 = vst [vmem:[#allocation2 + $0x270] sm:$0xf] %v1267
        %1284 = vst.msk [vmem:[#allocation2 + $0x278] sm:$0xf] %vm291, %v1268
        %v1285 = vld [vmem:[%s239 + $0x4] sm:$0xff]
        %v1286 = vld [vmem:[%s239 + $0xc] sm:$0xff]
        %v1287 = vld [vmem:[%s239 + $0x14] sm:$0xff]
        %v1288 = vld [vmem:[%s239 + $0x1c] sm:$0xff]
        %v1289 = vld [vmem:[%s239 + $0x24] sm:$0xf]
        %v1295 = vcombine.low %v1285, %v1285
        %v1296 = vcombine.low %v1286, %v1286
        %v1297 = vcombine.low %v1287, %v1287
        %v1298 = vcombine.low %v1288, %v1288
        %v1299 = vcombine.low %v1289, %v1289
        %1300 = vrot.lane.b32.xlu0 %v1295, 55
        %v1301 = vpop.permute.xlu0 %1300
        %1302 = vrot.lane.b32.xlu0 %v1285, 55
        %v1303 = vpop.permute.xlu0 %1302
        %1304 = vrot.lane.b32.xlu0 %v1296, 55
        %v1305 = vpop.permute.xlu0 %1304
        %1306 = vrot.lane.b32.xlu0 %v1286, 55
        %v1307 = vpop.permute.xlu0 %1306
        %1308 = vrot.lane.b32.xlu0 %v1297, 55
        %v1309 = vpop.permute.xlu0 %1308
        %1310 = vrot.lane.b32.xlu0 %v1287, 55
        %v1311 = vpop.permute.xlu0 %1310
        %1312 = vrot.lane.b32.xlu0 %v1298, 55
        %v1313 = vpop.permute.xlu0 %1312
        %1314 = vrot.lane.b32.xlu0 %v1288, 55
        %v1315 = vpop.permute.xlu0 %1314
        %1316 = vrot.lane.b32.xlu0 %v1299, 55
        %v1317 = vpop.permute.xlu0 %1316
        %vm1318 = vcmask 449536
        %v1319 = vsel %vm1318, %v1301, %v1303
        %v1320 = vsel %vm1318, %v1303, %v1305
        %v1321 = vsel %vm1318, %v1305, %v1307
        %v1322 = vsel %vm1318, %v1307, %v1309
        %v1323 = vsel %vm1318, %v1309, %v1311
        %v1324 = vsel %vm1318, %v1311, %v1313
        %v1325 = vsel %vm1318, %v1313, %v1315
        %v1326 = vsel %vm1318, %v1315, %v1317
        %1335 = vst [vmem:[#allocation2 + $0x240] sm:$0xf0] %v1319
        %1336 = vst [vmem:[#allocation2 + $0x248] sm:$0xf0] %v1320
        %1337 = vst [vmem:[#allocation2 + $0x250] sm:$0xf0] %v1321
        %1338 = vst [vmem:[#allocation2 + $0x258] sm:$0xf0] %v1322
        %1339 = vst [vmem:[#allocation2 + $0x260] sm:$0xf0] %v1323
        %1340 = vst [vmem:[#allocation2 + $0x268] sm:$0xf0] %v1324
        %1341 = vst [vmem:[#allocation2 + $0x270] sm:$0xf0] %v1325
        %1342 = vst.msk [vmem:[#allocation2 + $0x278] sm:$0xf0] %vm344, %v1326
        %v1343 = vld [vmem:[%s239 + $0x4] sm:$0xff]
        %v1344 = vld [vmem:[%s239 + $0xc] sm:$0xff]
        %v1345 = vld [vmem:[%s239 + $0x14] sm:$0xff]
        %v1346 = vld [vmem:[%s239 + $0x1c] sm:$0xff]
        %v1347 = vld [vmem:[%s239 + $0x24] sm:$0xf]
        %v1353 = vcombine.high %v1343, %v1343
        %v1354 = vcombine.high %v1344, %v1344
        %v1355 = vcombine.high %v1345, %v1345
        %v1356 = vcombine.high %v1346, %v1346
        %1357 = vrot.lane.b32.xlu0 %v1343, 54
        %v1358 = vpop.permute.xlu0 %1357
        %1359 = vrot.lane.b32.xlu0 %v1353, 54
        %v1360 = vpop.permute.xlu0 %1359
        %1361 = vrot.lane.b32.xlu0 %v1344, 54
        %v1362 = vpop.permute.xlu0 %1361
        %1363 = vrot.lane.b32.xlu0 %v1354, 54
        %v1364 = vpop.permute.xlu0 %1363
        %1365 = vrot.lane.b32.xlu0 %v1345, 54
        %v1366 = vpop.permute.xlu0 %1365
        %1367 = vrot.lane.b32.xlu0 %v1355, 54
        %v1368 = vpop.permute.xlu0 %1367
        %1369 = vrot.lane.b32.xlu0 %v1346, 54
        %v1370 = vpop.permute.xlu0 %1369
        %1371 = vrot.lane.b32.xlu0 %v1356, 54
        %v1372 = vpop.permute.xlu0 %1371
        %1373 = vrot.lane.b32.xlu0 %v1347, 54
        %v1374 = vpop.permute.xlu0 %1373
        %vm1375 = vcmask 441344
        %v1376 = vsel %vm1375, %v1358, %v1360
        %v1377 = vsel %vm1375, %v1360, %v1362
        %v1378 = vsel %vm1375, %v1362, %v1364
        %v1379 = vsel %vm1375, %v1364, %v1366
        %v1380 = vsel %vm1375, %v1366, %v1368
        %v1381 = vsel %vm1375, %v1368, %v1370
        %v1382 = vsel %vm1375, %v1370, %v1372
        %v1383 = vsel %vm1375, %v1372, %v1374
        %1392 = vst [vmem:[#allocation2 + $0x280] sm:$0xf] %v1376
        %1393 = vst [vmem:[#allocation2 + $0x288] sm:$0xf] %v1377
        %1394 = vst [vmem:[#allocation2 + $0x290] sm:$0xf] %v1378
        %1395 = vst [vmem:[#allocation2 + $0x298] sm:$0xf] %v1379
        %1396 = vst [vmem:[#allocation2 + $0x2a0] sm:$0xf] %v1380
        %1397 = vst [vmem:[#allocation2 + $0x2a8] sm:$0xf] %v1381
        %1398 = vst [vmem:[#allocation2 + $0x2b0] sm:$0xf] %v1382
        %1399 = vst.msk [vmem:[#allocation2 + $0x2b8] sm:$0xf] %vm291, %v1383
        %v1400 = vld [vmem:[%s239 + $0x4] sm:$0xff]
        %v1401 = vld [vmem:[%s239 + $0xc] sm:$0xff]
        %v1402 = vld [vmem:[%s239 + $0x14] sm:$0xff]
        %v1403 = vld [vmem:[%s239 + $0x1c] sm:$0xff]
        %v1404 = vld [vmem:[%s239 + $0x24] sm:$0xf]
        %v1410 = vcombine.low %v1400, %v1400
        %v1411 = vcombine.low %v1401, %v1401
        %v1412 = vcombine.low %v1402, %v1402
        %v1413 = vcombine.low %v1403, %v1403
        %v1414 = vcombine.low %v1404, %v1404
        %1415 = vrot.lane.b32.xlu0 %v1410, 46
        %v1416 = vpop.permute.xlu0 %1415
        %1417 = vrot.lane.b32.xlu0 %v1400, 46
        %v1418 = vpop.permute.xlu0 %1417
        %1419 = vrot.lane.b32.xlu0 %v1411, 46
        %v1420 = vpop.permute.xlu0 %1419
        %1421 = vrot.lane.b32.xlu0 %v1401, 46
        %v1422 = vpop.permute.xlu0 %1421
        %1423 = vrot.lane.b32.xlu0 %v1412, 46
        %v1424 = vpop.permute.xlu0 %1423
        %1425 = vrot.lane.b32.xlu0 %v1402, 46
        %v1426 = vpop.permute.xlu0 %1425
        %1427 = vrot.lane.b32.xlu0 %v1413, 46
        %v1428 = vpop.permute.xlu0 %1427
        %1429 = vrot.lane.b32.xlu0 %v1403, 46
        %v1430 = vpop.permute.xlu0 %1429
        %1431 = vrot.lane.b32.xlu0 %v1414, 46
        %v1432 = vpop.permute.xlu0 %1431
        %vm1433 = vcmask 375808
        %v1434 = vsel %vm1433, %v1416, %v1418
        %v1435 = vsel %vm1433, %v1418, %v1420
        %v1436 = vsel %vm1433, %v1420, %v1422
        %v1437 = vsel %vm1433, %v1422, %v1424
        %v1438 = vsel %vm1433, %v1424, %v1426
        %v1439 = vsel %vm1433, %v1426, %v1428
        %v1440 = vsel %vm1433, %v1428, %v1430
        %v1441 = vsel %vm1433, %v1430, %v1432
        %1450 = vst [vmem:[#allocation2 + $0x280] sm:$0xf0] %v1434
        %1451 = vst [vmem:[#allocation2 + $0x288] sm:$0xf0] %v1435
        %1452 = vst [vmem:[#allocation2 + $0x290] sm:$0xf0] %v1436
        %1453 = vst [vmem:[#allocation2 + $0x298] sm:$0xf0] %v1437
        %1454 = vst [vmem:[#allocation2 + $0x2a0] sm:$0xf0] %v1438
        %1455 = vst [vmem:[#allocation2 + $0x2a8] sm:$0xf0] %v1439
        %1456 = vst [vmem:[#allocation2 + $0x2b0] sm:$0xf0] %v1440
        %1457 = vst.msk [vmem:[#allocation2 + $0x2b8] sm:$0xf0] %vm344, %v1441
        %v1458 = vld [vmem:[%s239 + $0x4] sm:$0xff]
        %v1459 = vld [vmem:[%s239 + $0xc] sm:$0xff]
        %v1460 = vld [vmem:[%s239 + $0x14] sm:$0xff]
        %v1461 = vld [vmem:[%s239 + $0x1c] sm:$0xff]
        %v1462 = vld [vmem:[%s239 + $0x24] sm:$0xf]
        %v1468 = vcombine.high %v1458, %v1458
        %v1469 = vcombine.high %v1459, %v1459
        %v1470 = vcombine.high %v1460, %v1460
        %v1471 = vcombine.high %v1461, %v1461
        %1472 = vrot.lane.b32.xlu0 %v1458, 45
        %v1473 = vpop.permute.xlu0 %1472
        %1474 = vrot.lane.b32.xlu0 %v1468, 45
        %v1475 = vpop.permute.xlu0 %1474
        %1476 = vrot.lane.b32.xlu0 %v1459, 45
        %v1477 = vpop.permute.xlu0 %1476
        %1478 = vrot.lane.b32.xlu0 %v1469, 45
        %v1479 = vpop.permute.xlu0 %1478
        %1480 = vrot.lane.b32.xlu0 %v1460, 45
        %v1481 = vpop.permute.xlu0 %1480
        %1482 = vrot.lane.b32.xlu0 %v1470, 45
        %v1483 = vpop.permute.xlu0 %1482
        %1484 = vrot.lane.b32.xlu0 %v1461, 45
        %v1485 = vpop.permute.xlu0 %1484
        %1486 = vrot.lane.b32.xlu0 %v1471, 45
        %v1487 = vpop.permute.xlu0 %1486
        %1488 = vrot.lane.b32.xlu0 %v1462, 45
        %v1489 = vpop.permute.xlu0 %1488
        %vm1490 = vcmask 367616
        %v1491 = vsel %vm1490, %v1473, %v1475
        %v1492 = vsel %vm1490, %v1475, %v1477
        %v1493 = vsel %vm1490, %v1477, %v1479
        %v1494 = vsel %vm1490, %v1479, %v1481
        %v1495 = vsel %vm1490, %v1481, %v1483
        %v1496 = vsel %vm1490, %v1483, %v1485
        %v1497 = vsel %vm1490, %v1485, %v1487
        %v1498 = vsel %vm1490, %v1487, %v1489
        %1507 = vst [vmem:[#allocation2 + $0x2c0] sm:$0xf] %v1491
        %1508 = vst [vmem:[#allocation2 + $0x2c8] sm:$0xf] %v1492
        %1509 = vst [vmem:[#allocation2 + $0x2d0] sm:$0xf] %v1493
        %1510 = vst [vmem:[#allocation2 + $0x2d8] sm:$0xf] %v1494
        %1511 = vst [vmem:[#allocation2 + $0x2e0] sm:$0xf] %v1495
        %1512 = vst [vmem:[#allocation2 + $0x2e8] sm:$0xf] %v1496
        %1513 = vst [vmem:[#allocation2 + $0x2f0] sm:$0xf] %v1497
        %1514 = vst.msk [vmem:[#allocation2 + $0x2f8] sm:$0xf] %vm291, %v1498
        %v1515 = vld [vmem:[%s239 + $0x4] sm:$0xff]
        %v1516 = vld [vmem:[%s239 + $0xc] sm:$0xff]
        %v1517 = vld [vmem:[%s239 + $0x14] sm:$0xff]
        %v1518 = vld [vmem:[%s239 + $0x1c] sm:$0xff]
        %v1519 = vld [vmem:[%s239 + $0x24] sm:$0xf]
        %v1525 = vcombine.low %v1515, %v1515
        %v1526 = vcombine.low %v1516, %v1516
        %v1527 = vcombine.low %v1517, %v1517
        %v1528 = vcombine.low %v1518, %v1518
        %v1529 = vcombine.low %v1519, %v1519
        %1530 = vrot.lane.b32.xlu0 %v1525, 44
        %v1531 = vpop.permute.xlu0 %1530
        %1532 = vrot.lane.b32.xlu0 %v1515, 44
        %v1533 = vpop.permute.xlu0 %1532
        %1534 = vrot.lane.b32.xlu0 %v1526, 44
        %v1535 = vpop.permute.xlu0 %1534
        %1536 = vrot.lane.b32.xlu0 %v1516, 44
        %v1537 = vpop.permute.xlu0 %1536
        %1538 = vrot.lane.b32.xlu0 %v1527, 44
        %v1539 = vpop.permute.xlu0 %1538
        %1540 = vrot.lane.b32.xlu0 %v1517, 44
        %v1541 = vpop.permute.xlu0 %1540
        %1542 = vrot.lane.b32.xlu0 %v1528, 44
        %v1543 = vpop.permute.xlu0 %1542
        %1544 = vrot.lane.b32.xlu0 %v1518, 44
        %v1545 = vpop.permute.xlu0 %1544
        %1546 = vrot.lane.b32.xlu0 %v1529, 44
        %v1547 = vpop.permute.xlu0 %1546
        %vm1548 = vcmask 359424
        %v1549 = vsel %vm1548, %v1531, %v1533
        %v1550 = vsel %vm1548, %v1533, %v1535
        %v1551 = vsel %vm1548, %v1535, %v1537
        %v1552 = vsel %vm1548, %v1537, %v1539
        %v1553 = vsel %vm1548, %v1539, %v1541
        %v1554 = vsel %vm1548, %v1541, %v1543
        %v1555 = vsel %vm1548, %v1543, %v1545
        %v1556 = vsel %vm1548, %v1545, %v1547
        %1565 = vst [vmem:[#allocation2 + $0x2c0] sm:$0xf0] %v1549
        %1566 = vst [vmem:[#allocation2 + $0x2c8] sm:$0xf0] %v1550
        %1567 = vst [vmem:[#allocation2 + $0x2d0] sm:$0xf0] %v1551
        %1568 = vst [vmem:[#allocation2 + $0x2d8] sm:$0xf0] %v1552
        %1569 = vst [vmem:[#allocation2 + $0x2e0] sm:$0xf0] %v1553
        %1570 = vst [vmem:[#allocation2 + $0x2e8] sm:$0xf0] %v1554
        %1571 = vst [vmem:[#allocation2 + $0x2f0] sm:$0xf0] %v1555
        %1572 = vst.msk [vmem:[#allocation2 + $0x2f8] sm:$0xf0] %vm344, %v1556
        %v1573 = vld [vmem:[%s239 + $0x4] sm:$0xff]
        %v1574 = vld [vmem:[%s239 + $0xc] sm:$0xff]
        %v1575 = vld [vmem:[%s239 + $0x14] sm:$0xff]
        %v1576 = vld [vmem:[%s239 + $0x1c] sm:$0xff]
        %v1577 = vld [vmem:[%s239 + $0x24] sm:$0xf]
        %v1583 = vcombine.high %v1573, %v1573
        %v1584 = vcombine.high %v1574, %v1574
        %v1585 = vcombine.high %v1575, %v1575
        %v1586 = vcombine.high %v1576, %v1576
        %1587 = vrot.lane.b32.xlu0 %v1573, 36
        %v1588 = vpop.permute.xlu0 %1587
        %1589 = vrot.lane.b32.xlu0 %v1583, 36
        %v1590 = vpop.permute.xlu0 %1589
        %1591 = vrot.lane.b32.xlu0 %v1574, 36
        %v1592 = vpop.permute.xlu0 %1591
        %1593 = vrot.lane.b32.xlu0 %v1584, 36
        %v1594 = vpop.permute.xlu0 %1593
        %1595 = vrot.lane.b32.xlu0 %v1575, 36
        %v1596 = vpop.permute.xlu0 %1595
        %1597 = vrot.lane.b32.xlu0 %v1585, 36
        %v1598 = vpop.permute.xlu0 %1597
        %1599 = vrot.lane.b32.xlu0 %v1576, 36
        %v1600 = vpop.permute.xlu0 %1599
        %1601 = vrot.lane.b32.xlu0 %v1586, 36
        %v1602 = vpop.permute.xlu0 %1601
        %1603 = vrot.lane.b32.xlu0 %v1577, 36
        %v1604 = vpop.permute.xlu0 %1603
        %vm1605 = vcmask 293888
        %v1606 = vsel %vm1605, %v1588, %v1590
        %v1607 = vsel %vm1605, %v1590, %v1592
        %v1608 = vsel %vm1605, %v1592, %v1594
        %v1609 = vsel %vm1605, %v1594, %v1596
        %v1610 = vsel %vm1605, %v1596, %v1598
        %v1611 = vsel %vm1605, %v1598, %v1600
        %v1612 = vsel %vm1605, %v1600, %v1602
        %v1613 = vsel %vm1605, %v1602, %v1604
        %1622 = vst [vmem:[#allocation2 + $0x300] sm:$0xf] %v1606
        %1623 = vst [vmem:[#allocation2 + $0x308] sm:$0xf] %v1607
        %1624 = vst [vmem:[#allocation2 + $0x310] sm:$0xf] %v1608
        %1625 = vst [vmem:[#allocation2 + $0x318] sm:$0xf] %v1609
        %1626 = vst [vmem:[#allocation2 + $0x320] sm:$0xf] %v1610
        %1627 = vst [vmem:[#allocation2 + $0x328] sm:$0xf] %v1611
        %1628 = vst [vmem:[#allocation2 + $0x330] sm:$0xf] %v1612
        %1629 = vst.msk [vmem:[#allocation2 + $0x338] sm:$0xf] %vm291, %v1613
        %v1630 = vld [vmem:[%s239 + $0x4] sm:$0xff]
        %v1631 = vld [vmem:[%s239 + $0xc] sm:$0xff]
        %v1632 = vld [vmem:[%s239 + $0x14] sm:$0xff]
        %v1633 = vld [vmem:[%s239 + $0x1c] sm:$0xff]
        %v1634 = vld [vmem:[%s239 + $0x24] sm:$0xf]
        %v1640 = vcombine.low %v1630, %v1630
        %v1641 = vcombine.low %v1631, %v1631
        %v1642 = vcombine.low %v1632, %v1632
        %v1643 = vcombine.low %v1633, %v1633
        %v1644 = vcombine.low %v1634, %v1634
        %1645 = vrot.lane.b32.xlu0 %v1640, 35
        %v1646 = vpop.permute.xlu0 %1645
        %1647 = vrot.lane.b32.xlu0 %v1630, 35
        %v1648 = vpop.permute.xlu0 %1647
        %1649 = vrot.lane.b32.xlu0 %v1641, 35
        %v1650 = vpop.permute.xlu0 %1649
        %1651 = vrot.lane.b32.xlu0 %v1631, 35
        %v1652 = vpop.permute.xlu0 %1651
        %1653 = vrot.lane.b32.xlu0 %v1642, 35
        %v1654 = vpop.permute.xlu0 %1653
        %1655 = vrot.lane.b32.xlu0 %v1632, 35
        %v1656 = vpop.permute.xlu0 %1655
        %1657 = vrot.lane.b32.xlu0 %v1643, 35
        %v1658 = vpop.permute.xlu0 %1657
        %1659 = vrot.lane.b32.xlu0 %v1633, 35
        %v1660 = vpop.permute.xlu0 %1659
        %1661 = vrot.lane.b32.xlu0 %v1644, 35
        %v1662 = vpop.permute.xlu0 %1661
        %vm1663 = vcmask 285696
        %v1664 = vsel %vm1663, %v1646, %v1648
        %v1665 = vsel %vm1663, %v1648, %v1650
        %v1666 = vsel %vm1663, %v1650, %v1652
        %v1667 = vsel %vm1663, %v1652, %v1654
        %v1668 = vsel %vm1663, %v1654, %v1656
        %v1669 = vsel %vm1663, %v1656, %v1658
        %v1670 = vsel %vm1663, %v1658, %v1660
        %v1671 = vsel %vm1663, %v1660, %v1662
        %1680 = vst [vmem:[#allocation2 + $0x300] sm:$0xf0] %v1664
        %1681 = vst [vmem:[#allocation2 + $0x308] sm:$0xf0] %v1665
        %1682 = vst [vmem:[#allocation2 + $0x310] sm:$0xf0] %v1666
        %1683 = vst [vmem:[#allocation2 + $0x318] sm:$0xf0] %v1667
        %1684 = vst [vmem:[#allocation2 + $0x320] sm:$0xf0] %v1668
        %1685 = vst [vmem:[#allocation2 + $0x328] sm:$0xf0] %v1669
        %1686 = vst [vmem:[#allocation2 + $0x330] sm:$0xf0] %v1670
        %1687 = vst.msk [vmem:[#allocation2 + $0x338] sm:$0xf0] %vm344, %v1671
        %v1688 = vld [vmem:[%s239 + $0x4] sm:$0xff]
        %v1689 = vld [vmem:[%s239 + $0xc] sm:$0xff]
        %v1690 = vld [vmem:[%s239 + $0x14] sm:$0xff]
        %v1691 = vld [vmem:[%s239 + $0x1c] sm:$0xff]
        %v1692 = vld [vmem:[%s239 + $0x24] sm:$0xf]
        %v1698 = vcombine.high %v1688, %v1688
        %v1699 = vcombine.high %v1689, %v1689
        %v1700 = vcombine.high %v1690, %v1690
        %v1701 = vcombine.high %v1691, %v1691
        %1702 = vrot.lane.b32.xlu0 %v1688, 34
        %v1703 = vpop.permute.xlu0 %1702
        %1704 = vrot.lane.b32.xlu0 %v1698, 34
        %v1705 = vpop.permute.xlu0 %1704
        %1706 = vrot.lane.b32.xlu0 %v1689, 34
        %v1707 = vpop.permute.xlu0 %1706
        %1708 = vrot.lane.b32.xlu0 %v1699, 34
        %v1709 = vpop.permute.xlu0 %1708
        %1710 = vrot.lane.b32.xlu0 %v1690, 34
        %v1711 = vpop.permute.xlu0 %1710
        %1712 = vrot.lane.b32.xlu0 %v1700, 34
        %v1713 = vpop.permute.xlu0 %1712
        %1714 = vrot.lane.b32.xlu0 %v1691, 34
        %v1715 = vpop.permute.xlu0 %1714
        %1716 = vrot.lane.b32.xlu0 %v1701, 34
        %v1717 = vpop.permute.xlu0 %1716
        %1718 = vrot.lane.b32.xlu0 %v1692, 34
        %v1719 = vpop.permute.xlu0 %1718
        %vm1720 = vcmask 277504
        %v1721 = vsel %vm1720, %v1703, %v1705
        %v1722 = vsel %vm1720, %v1705, %v1707
        %v1723 = vsel %vm1720, %v1707, %v1709
        %v1724 = vsel %vm1720, %v1709, %v1711
        %v1725 = vsel %vm1720, %v1711, %v1713
        %v1726 = vsel %vm1720, %v1713, %v1715
        %v1727 = vsel %vm1720, %v1715, %v1717
        %v1728 = vsel %vm1720, %v1717, %v1719
        %1737 = vst [vmem:[#allocation2 + $0x340] sm:$0xf] %v1721
        %1738 = vst [vmem:[#allocation2 + $0x348] sm:$0xf] %v1722
        %1739 = vst [vmem:[#allocation2 + $0x350] sm:$0xf] %v1723
        %1740 = vst [vmem:[#allocation2 + $0x358] sm:$0xf] %v1724
        %1741 = vst [vmem:[#allocation2 + $0x360] sm:$0xf] %v1725
        %1742 = vst [vmem:[#allocation2 + $0x368] sm:$0xf] %v1726
        %1743 = vst [vmem:[#allocation2 + $0x370] sm:$0xf] %v1727
        %1744 = vst.msk [vmem:[#allocation2 + $0x378] sm:$0xf] %vm291, %v1728
        %v1745 = vld [vmem:[%s1] sm:$0xff]
        %v1746 = vld [vmem:[#allocation2] sm:$0xff]
        %v1747 = vld [vmem:[#allocation2 + $0x8] sm:$0xff]
        %v1748 = vld [vmem:[#allocation2 + $0x10] sm:$0xff]
        %v1749 = vld [vmem:[#allocation2 + $0x18] sm:$0xff]
        %v1750 = vld [vmem:[#allocation2 + $0x20] sm:$0xff]
        %v1751 = vld [vmem:[#allocation2 + $0x28] sm:$0xff]
        %v1752 = vld [vmem:[#allocation2 + $0x30] sm:$0xff]
        %v1753 = vld [vmem:[#allocation2 + $0x38] sm:$0xff]
        %v1754 = vld [vmem:[#allocation2 + $0x40] sm:$0xff]
        %v1755 = vld [vmem:[#allocation2 + $0x48] sm:$0xff]
        %v1756 = vld [vmem:[#allocation2 + $0x50] sm:$0xff]
        %v1757 = vld [vmem:[#allocation2 + $0x58] sm:$0xff]
        %v1758 = vld [vmem:[#allocation2 + $0x60] sm:$0xff]
        %v1759 = vld [vmem:[#allocation2 + $0x68] sm:$0xff]
        %v1760 = vld [vmem:[#allocation2 + $0x70] sm:$0xff]
        %v1761 = vld [vmem:[#allocation2 + $0x78] sm:$0xff]
        %v1762 = vld [vmem:[#allocation2 + $0x80] sm:$0xff]
        %v1763 = vld [vmem:[#allocation2 + $0x88] sm:$0xff]
        %v1764 = vld [vmem:[#allocation2 + $0x90] sm:$0xff]
        %v1765 = vld [vmem:[#allocation2 + $0x98] sm:$0xff]
        %v1766 = vld [vmem:[#allocation2 + $0xa0] sm:$0xff]
        %v1767 = vld [vmem:[#allocation2 + $0xa8] sm:$0xff]
        %v1768 = vld [vmem:[#allocation2 + $0xb0] sm:$0xff]
        %v1769 = vld [vmem:[#allocation2 + $0xb8] sm:$0xff]
        %v1770 = vld [vmem:[#allocation2 + $0xc0] sm:$0xff]
        %v1771 = vld [vmem:[#allocation2 + $0xc8] sm:$0xff]
        %v1772 = vld [vmem:[#allocation2 + $0xd0] sm:$0xff]
        %v1773 = vld [vmem:[#allocation2 + $0xd8] sm:$0xff]
        %v1774 = vld [vmem:[#allocation2 + $0xe0] sm:$0xff]
        %v1775 = vld [vmem:[#allocation2 + $0xe8] sm:$0xff]
        %v1776 = vld [vmem:[#allocation2 + $0xf0] sm:$0xff]
        %v1777 = vld [vmem:[#allocation2 + $0xf8] sm:$0xff]
        %v1778 = vld [vmem:[#allocation2 + $0x100] sm:$0xff]
        %v1779 = vld [vmem:[#allocation2 + $0x108] sm:$0xff]
        %v1780 = vld [vmem:[#allocation2 + $0x110] sm:$0xff]
        %v1781 = vld [vmem:[#allocation2 + $0x118] sm:$0xff]
        %v1782 = vld [vmem:[#allocation2 + $0x120] sm:$0xff]
        %v1783 = vld [vmem:[#allocation2 + $0x128] sm:$0xff]
        %v1784 = vld [vmem:[#allocation2 + $0x130] sm:$0xff]
        %v1785 = vld [vmem:[#allocation2 + $0x138] sm:$0xff]
        %v1786 = vld [vmem:[#allocation2 + $0x140] sm:$0xff]
        %v1787 = vld [vmem:[#allocation2 + $0x148] sm:$0xff]
        %v1788 = vld [vmem:[#allocation2 + $0x150] sm:$0xff]
        %v1789 = vld [vmem:[#allocation2 + $0x158] sm:$0xff]
        %v1790 = vld [vmem:[#allocation2 + $0x160] sm:$0xff]
        %v1791 = vld [vmem:[#allocation2 + $0x168] sm:$0xff]
        %v1792 = vld [vmem:[#allocation2 + $0x170] sm:$0xff]
        %v1793 = vld [vmem:[#allocation2 + $0x178] sm:$0xff]
        %v1794 = vld [vmem:[#allocation2 + $0x180] sm:$0xff]
        %v1795 = vld [vmem:[#allocation2 + $0x188] sm:$0xff]
        %v1796 = vld [vmem:[#allocation2 + $0x190] sm:$0xff]
        %v1797 = vld [vmem:[#allocation2 + $0x198] sm:$0xff]
        %v1798 = vld [vmem:[#allocation2 + $0x1a0] sm:$0xff]
        %v1799 = vld [vmem:[#allocation2 + $0x1a8] sm:$0xff]
        %v1800 = vld [vmem:[#allocation2 + $0x1b0] sm:$0xff]
        %v1801 = vld [vmem:[#allocation2 + $0x1b8] sm:$0xff]
        %v1802 = vld [vmem:[#allocation2 + $0x1c0] sm:$0xff]
        %v1803 = vld [vmem:[#allocation2 + $0x1c8] sm:$0xff]
        %v1804 = vld [vmem:[#allocation2 + $0x1d0] sm:$0xff]
        %v1805 = vld [vmem:[#allocation2 + $0x1d8] sm:$0xff]
        %v1806 = vld [vmem:[#allocation2 + $0x1e0] sm:$0xff]
        %v1807 = vld [vmem:[#allocation2 + $0x1e8] sm:$0xff]
        %v1808 = vld [vmem:[#allocation2 + $0x1f0] sm:$0xff]
        %v1809 = vld [vmem:[#allocation2 + $0x1f8] sm:$0xff]
        %v1810 = vld [vmem:[#allocation2 + $0x200] sm:$0xff]
        %v1811 = vld [vmem:[#allocation2 + $0x208] sm:$0xff]
        %v1812 = vld [vmem:[#allocation2 + $0x210] sm:$0xff]
        %v1813 = vld [vmem:[#allocation2 + $0x218] sm:$0xff]
        %v1814 = vld [vmem:[#allocation2 + $0x220] sm:$0xff]
        %v1815 = vld [vmem:[#allocation2 + $0x228] sm:$0xff]
        %v1816 = vld [vmem:[#allocation2 + $0x230] sm:$0xff]
        %v1817 = vld [vmem:[#allocation2 + $0x238] sm:$0xff]
        %v1818 = vld [vmem:[#allocation2 + $0x240] sm:$0xff]
        %v1819 = vld [vmem:[#allocation2 + $0x248] sm:$0xff]
        %v1820 = vld [vmem:[#allocation2 + $0x250] sm:$0xff]
        %v1821 = vld [vmem:[#allocation2 + $0x258] sm:$0xff]
        %v1822 = vld [vmem:[#allocation2 + $0x260] sm:$0xff]
        %v1823 = vld [vmem:[#allocation2 + $0x268] sm:$0xff]
        %v1824 = vld [vmem:[#allocation2 + $0x270] sm:$0xff]
        %v1825 = vld [vmem:[#allocation2 + $0x278] sm:$0xff]
        %v1826 = vld [vmem:[#allocation2 + $0x280] sm:$0xff]
        %v1827 = vld [vmem:[#allocation2 + $0x288] sm:$0xff]
        %v1828 = vld [vmem:[#allocation2 + $0x290] sm:$0xff]
        %v1829 = vld [vmem:[#allocation2 + $0x298] sm:$0xff]
        %v1830 = vld [vmem:[#allocation2 + $0x2a0] sm:$0xff]
        %v1831 = vld [vmem:[#allocation2 + $0x2a8] sm:$0xff]
        %v1832 = vld [vmem:[#allocation2 + $0x2b0] sm:$0xff]
        %v1833 = vld [vmem:[#allocation2 + $0x2b8] sm:$0xff]
        %v1834 = vld [vmem:[#allocation2 + $0x2c0] sm:$0xff]
        %v1835 = vld [vmem:[#allocation2 + $0x2c8] sm:$0xff]
        %v1836 = vld [vmem:[#allocation2 + $0x2d0] sm:$0xff]
        %v1837 = vld [vmem:[#allocation2 + $0x2d8] sm:$0xff]
        %v1838 = vld [vmem:[#allocation2 + $0x2e0] sm:$0xff]
        %v1839 = vld [vmem:[#allocation2 + $0x2e8] sm:$0xff]
        %v1840 = vld [vmem:[#allocation2 + $0x2f0] sm:$0xff]
        %v1841 = vld [vmem:[#allocation2 + $0x2f8] sm:$0xff]
        %v1842 = vld [vmem:[#allocation2 + $0x300] sm:$0xff]
        %v1843 = vld [vmem:[#allocation2 + $0x308] sm:$0xff]
        %v1844 = vld [vmem:[#allocation2 + $0x310] sm:$0xff]
        %v1845 = vld [vmem:[#allocation2 + $0x318] sm:$0xff]
        %v1846 = vld [vmem:[#allocation2 + $0x320] sm:$0xff]
        %v1847 = vld [vmem:[#allocation2 + $0x328] sm:$0xff]
        %v1848 = vld [vmem:[#allocation2 + $0x330] sm:$0xff]
        %v1849 = vld [vmem:[#allocation2 + $0x338] sm:$0xff]
        %v1850 = vld [vmem:[#allocation2 + $0x340] sm:$0xf]
        %v1851 = vld [vmem:[#allocation2 + $0x348] sm:$0xf]
        %v1852 = vld [vmem:[#allocation2 + $0x350] sm:$0xf]
        %v1853 = vld [vmem:[#allocation2 + $0x358] sm:$0xf]
        %v1854 = vld [vmem:[#allocation2 + $0x360] sm:$0xf]
        %v1855 = vld [vmem:[#allocation2 + $0x368] sm:$0xf]
        %v1856 = vld [vmem:[#allocation2 + $0x370] sm:$0xf]
        %v1857 = vld [vmem:[#allocation2 + $0x378] sm:$0xf]
        %v1858 = vld [vmem:[%s2] sm:$0xff]
        %1860 = vset.pattern.permute.xlu0 0
        %1861 = vperm.xlu0 %1860, %v1858
        %v1862 = vpop.permute.xlu0 %1861
        %v1865 = vsel %vm582, %v1745, 0
        %vm1867 = vcmask 1043456
        %v1869 = vsel %vm1867, %v1850, 0
        %v1872 = vsel %vm1867, %v1851, 0
        %v1875 = vsel %vm1867, %v1852, 0
        %v1878 = vsel %vm1867, %v1853, 0
        %v1881 = vsel %vm1867, %v1854, 0
        %v1884 = vsel %vm1867, %v1855, 0
        %v1887 = vsel %vm1867, %v1856, 0
        %v1890 = vsel %vm1867, %v1857, 0
        %1892 = vmatprep.subr.mxu0 %v1747
        %1893 = vmatpush1.msra.mxu0 %v1746
        %1894 = vmatprep.subr.mxu0 %v1755
        %1895 = vmatpush1.msra.mxu0 %v1754
        %1896 = vmatprep.subr.mxu0 %v1763
        %1897 = vmatpush1.msra.mxu0 %v1762
        %1898 = vmatprep.subr.mxu0 %v1771
        %1899 = vmatpush1.msra.mxu0 %v1770
        %1900 = vmatprep.subr.mxu0 %v1779
        %1901 = vmatpush1.msra.mxu0 %v1778
        %1902 = vmatprep.subr.mxu0 %v1787
        %1903 = vmatpush1.msra.mxu0 %v1786
        %1904 = vmatprep.subr.mxu0 %v1795
        %1905 = vmatpush1.msra.mxu0 %v1794
        %1906 = vmatprep.subr.mxu0 %v1803
        %1907 = vmatpush1.msra.mxu0 %v1802
        %1908 = vmatprep.subr.mxu0 %v1811
        %1909 = vmatpush1.msra.mxu0 %v1810
        %1910 = vmatprep.subr.mxu0 %v1819
        %1911 = vmatpush1.msra.mxu0 %v1818
        %1912 = vmatprep.subr.mxu0 %v1827
        %1913 = vmatpush1.msra.mxu0 %v1826
        %1914 = vmatprep.subr.mxu0 %v1835
        %1915 = vmatpush1.msra.mxu0 %v1834
        %1916 = vmatprep.subr.mxu0 %v1843
        %1917 = vmatpush1.msra.mxu0 %v1842
        %1918 = vmatprep.subr.mxu0 %v1872
        %1919 = vmatpush1.msra.mxu0 %v1869
        %1920 = vmatprep.subr.mxu0 0.0
        %1921 = vmatpush1.msra.mxu0 0.0
        %1922 = vmatprep.subr.mxu0 0.0
        %1923 = vmatpush1.msra.mxu0 0.0
        %1924 = vmatprep.subr.mxu0 0.0
        %1925 = vmatpush1.msra.mxu0 0.0
        %1926 = vmatprep.subr.mxu0 0.0
        %1927 = vmatpush1.msra.mxu0 0.0
        %1928 = vmatprep.subr.mxu0 0.0
        %1929 = vmatpush1.msra.mxu0 0.0
        %1930 = vmatprep.subr.mxu0 0.0
        %1931 = vmatpush1.msra.mxu0 0.0
        %1932 = vmatprep.subr.mxu0 0.0
        %1933 = vmatpush1.msra.mxu0 0.0
        %1934 = vmatprep.subr.mxu0 0.0
        %1935 = vmatpush1.msra.mxu0 0.0
        %1936 = vmatprep.subr.mxu0 0.0
        %1937 = vmatpush1.msra.mxu0 0.0
        %1938 = vmatprep.subr.mxu0 0.0
        %1939 = vmatpush1.msra.mxu0 0.0
        %1940 = vmatprep.subr.mxu0 0.0
        %1941 = vmatpush1.msra.mxu0 0.0
        %1942 = vmatprep.subr.mxu0 0.0
        %1943 = vmatpush1.msra.mxu0 0.0
        %1944 = vmatprep.subr.mxu0 0.0
        %1945 = vmatpush1.msra.mxu0 0.0
        %1946 = vmatprep.subr.mxu0 0.0
        %1947 = vmatpush1.msra.mxu0 0.0
        %1948 = vmatprep.subr.mxu0 0.0
        %1949 = vmatpush1.msra.mxu0 0.0
        %1950 = vmatprep.subr.mxu0 0.0
        %1951 = vmatpush1.msra.mxu0 0.0
        %1952 = vmatprep.subr.mxu0 0.0
        %1953 = vmatpush1.msra.mxu0 0.0
        %1954 = vmatprep.subr.mxu0 0.0
        %1955 = vmatpush1.msra.mxu0 0.0
        %1956 = vmatprep.mubr.f32.mxu0 0.0
        %1957 = vmatmul.mubr.f32.gmra.mrb[0].mxu0 %v1865
        %v1958 = vpop.f32.mrb[0].mxu0
        %v1959 = vadd.f32 %v1862, %v1958
        %v1960 = vpop.f32.mrb[0].mxu0
        %v1961 = vadd.f32 %v1862, %v1960
        %1962 = vdwg.mxu0
        %1963 = vmatprep.subr.mxu0 %v1749
        %1964 = vmatpush1.msra.mxu0 %v1748
        %1965 = vmatprep.subr.mxu0 %v1757
        %1966 = vmatpush1.msra.mxu0 %v1756
        %1967 = vmatprep.subr.mxu0 %v1765
        %1968 = vmatpush1.msra.mxu0 %v1764
        %1969 = vmatprep.subr.mxu0 %v1773
        %1970 = vmatpush1.msra.mxu0 %v1772
        %1971 = vmatprep.subr.mxu0 %v1781
        %1972 = vmatpush1.msra.mxu0 %v1780
        %1973 = vmatprep.subr.mxu0 %v1789
        %1974 = vmatpush1.msra.mxu0 %v1788
        %1975 = vmatprep.subr.mxu0 %v1797
        %1976 = vmatpush1.msra.mxu0 %v1796
        %1977 = vmatprep.subr.mxu0 %v1805
        %1978 = vmatpush1.msra.mxu0 %v1804
        %1979 = vmatprep.subr.mxu0 %v1813
        %1980 = vmatpush1.msra.mxu0 %v1812
        %1981 = vmatprep.subr.mxu0 %v1821
        %1982 = vmatpush1.msra.mxu0 %v1820
        %1983 = vmatprep.subr.mxu0 %v1829
        %1984 = vmatpush1.msra.mxu0 %v1828
        %1985 = vmatprep.subr.mxu0 %v1837
        %1986 = vmatpush1.msra.mxu0 %v1836
        %1987 = vmatprep.subr.mxu0 %v1845
        %1988 = vmatpush1.msra.mxu0 %v1844
        %1989 = vmatprep.subr.mxu0 %v1878
        %1990 = vmatpush1.msra.mxu0 %v1875
        %1991 = vmatprep.subr.mxu0 0.0
        %1992 = vmatpush1.msra.mxu0 0.0
        %1993 = vmatprep.subr.mxu0 0.0
        %1994 = vmatpush1.msra.mxu0 0.0
        %1995 = vmatprep.subr.mxu0 0.0
        %1996 = vmatpush1.msra.mxu0 0.0
        %1997 = vmatprep.subr.mxu0 0.0
        %1998 = vmatpush1.msra.mxu0 0.0
        %1999 = vmatprep.subr.mxu0 0.0
        %2000 = vmatpush1.msra.mxu0 0.0
        %2001 = vmatprep.subr.mxu0 0.0
        %2002 = vmatpush1.msra.mxu0 0.0
        %2003 = vmatprep.subr.mxu0 0.0
        %2004 = vmatpush1.msra.mxu0 0.0
        %2005 = vmatprep.subr.mxu0 0.0
        %2006 = vmatpush1.msra.mxu0 0.0
        %2007 = vmatprep.subr.mxu0 0.0
        %2008 = vmatpush1.msra.mxu0 0.0
        %2009 = vmatprep.subr.mxu0 0.0
        %2010 = vmatpush1.msra.mxu0 0.0
        %2011 = vmatprep.subr.mxu0 0.0
        %2012 = vmatpush1.msra.mxu0 0.0
        %2013 = vmatprep.subr.mxu0 0.0
        %2014 = vmatpush1.msra.mxu0 0.0
        %2015 = vmatprep.subr.mxu0 0.0
        %2016 = vmatpush1.msra.mxu0 0.0
        %2017 = vmatprep.subr.mxu0 0.0
        %2018 = vmatpush1.msra.mxu0 0.0
        %2019 = vmatprep.subr.mxu0 0.0
        %2020 = vmatpush1.msra.mxu0 0.0
        %2021 = vmatprep.subr.mxu0 0.0
        %2022 = vmatpush1.msra.mxu0 0.0
        %2023 = vmatprep.subr.mxu0 0.0
        %2024 = vmatpush1.msra.mxu0 0.0
        %2025 = vmatprep.subr.mxu0 0.0
        %2026 = vmatpush1.msra.mxu0 0.0
        %2027 = vmatprep.mubr.f32.mxu0 0.0
        %2028 = vmatmul.mubr.f32.gmra.mrb[0].mxu0 %v1865
        %v2029 = vpop.f32.mrb[0].mxu0
        %v2030 = vadd.f32 %v1862, %v2029
        %v2031 = vpop.f32.mrb[0].mxu0
        %v2032 = vadd.f32 %v1862, %v2031
        %2033 = vdwg.mxu0
        %2034 = vmatprep.subr.mxu0 %v1751
        %2035 = vmatpush1.msra.mxu0 %v1750
        %2036 = vmatprep.subr.mxu0 %v1759
        %2037 = vmatpush1.msra.mxu0 %v1758
        %2038 = vmatprep.subr.mxu0 %v1767
        %2039 = vmatpush1.msra.mxu0 %v1766
        %2040 = vmatprep.subr.mxu0 %v1775
        %2041 = vmatpush1.msra.mxu0 %v1774
        %2042 = vmatprep.subr.mxu0 %v1783
        %2043 = vmatpush1.msra.mxu0 %v1782
        %2044 = vmatprep.subr.mxu0 %v1791
        %2045 = vmatpush1.msra.mxu0 %v1790
        %2046 = vmatprep.subr.mxu0 %v1799
        %2047 = vmatpush1.msra.mxu0 %v1798
        %2048 = vmatprep.subr.mxu0 %v1807
        %2049 = vmatpush1.msra.mxu0 %v1806
        %2050 = vmatprep.subr.mxu0 %v1815
        %2051 = vmatpush1.msra.mxu0 %v1814
        %2052 = vmatprep.subr.mxu0 %v1823
        %2053 = vmatpush1.msra.mxu0 %v1822
        %2054 = vmatprep.subr.mxu0 %v1831
        %2055 = vmatpush1.msra.mxu0 %v1830
        %2056 = vmatprep.subr.mxu0 %v1839
        %2057 = vmatpush1.msra.mxu0 %v1838
        %2058 = vmatprep.subr.mxu0 %v1847
        %2059 = vmatpush1.msra.mxu0 %v1846
        %2060 = vmatprep.subr.mxu0 %v1884
        %2061 = vmatpush1.msra.mxu0 %v1881
        %2062 = vmatprep.subr.mxu0 0.0
        %2063 = vmatpush1.msra.mxu0 0.0
        %2064 = vmatprep.subr.mxu0 0.0
        %2065 = vmatpush1.msra.mxu0 0.0
        %2066 = vmatprep.subr.mxu0 0.0
        %2067 = vmatpush1.msra.mxu0 0.0
        %2068 = vmatprep.subr.mxu0 0.0
        %2069 = vmatpush1.msra.mxu0 0.0
        %2070 = vmatprep.subr.mxu0 0.0
        %2071 = vmatpush1.msra.mxu0 0.0
        %2072 = vmatprep.subr.mxu0 0.0
        %2073 = vmatpush1.msra.mxu0 0.0
        %2074 = vmatprep.subr.mxu0 0.0
        %2075 = vmatpush1.msra.mxu0 0.0
        %2076 = vmatprep.subr.mxu0 0.0
        %2077 = vmatpush1.msra.mxu0 0.0
        %2078 = vmatprep.subr.mxu0 0.0
        %2079 = vmatpush1.msra.mxu0 0.0
        %2080 = vmatprep.subr.mxu0 0.0
        %2081 = vmatpush1.msra.mxu0 0.0
        %2082 = vmatprep.subr.mxu0 0.0
        %2083 = vmatpush1.msra.mxu0 0.0
        %2084 = vmatprep.subr.mxu0 0.0
        %2085 = vmatpush1.msra.mxu0 0.0
        %2086 = vmatprep.subr.mxu0 0.0
        %2087 = vmatpush1.msra.mxu0 0.0
        %2088 = vmatprep.subr.mxu0 0.0
        %2089 = vmatpush1.msra.mxu0 0.0
        %2090 = vmatprep.subr.mxu0 0.0
        %2091 = vmatpush1.msra.mxu0 0.0
        %2092 = vmatprep.subr.mxu0 0.0
        %2093 = vmatpush1.msra.mxu0 0.0
        %2094 = vmatprep.subr.mxu0 0.0
        %2095 = vmatpush1.msra.mxu0 0.0
        %2096 = vmatprep.subr.mxu0 0.0
        %2097 = vmatpush1.msra.mxu0 0.0
        %2098 = vmatprep.mubr.f32.mxu0 0.0
        %2099 = vmatmul.mubr.f32.gmra.mrb[0].mxu0 %v1865
        %v2100 = vpop.f32.mrb[0].mxu0
        %v2101 = vadd.f32 %v1862, %v2100
        %v2102 = vpop.f32.mrb[0].mxu0
        %v2103 = vadd.f32 %v1862, %v2102
        %2104 = vdwg.mxu0
        %2105 = vmatprep.subr.mxu0 %v1753
        %2106 = vmatpush1.msra.mxu0 %v1752
        %2107 = vmatprep.subr.mxu0 %v1761
        %2108 = vmatpush1.msra.mxu0 %v1760
        %2109 = vmatprep.subr.mxu0 %v1769
        %2110 = vmatpush1.msra.mxu0 %v1768
        %2111 = vmatprep.subr.mxu0 %v1777
        %2112 = vmatpush1.msra.mxu0 %v1776
        %2113 = vmatprep.subr.mxu0 %v1785
        %2114 = vmatpush1.msra.mxu0 %v1784
        %2115 = vmatprep.subr.mxu0 %v1793
        %2116 = vmatpush1.msra.mxu0 %v1792
        %2117 = vmatprep.subr.mxu0 %v1801
        %2118 = vmatpush1.msra.mxu0 %v1800
        %2119 = vmatprep.subr.mxu0 %v1809
        %2120 = vmatpush1.msra.mxu0 %v1808
        %2121 = vmatprep.subr.mxu0 %v1817
        %2122 = vmatpush1.msra.mxu0 %v1816
        %2123 = vmatprep.subr.mxu0 %v1825
        %2124 = vmatpush1.msra.mxu0 %v1824
        %2125 = vmatprep.subr.mxu0 %v1833
        %2126 = vmatpush1.msra.mxu0 %v1832
        %2127 = vmatprep.subr.mxu0 %v1841
        %2128 = vmatpush1.msra.mxu0 %v1840
        %2129 = vmatprep.subr.mxu0 %v1849
        %2130 = vmatpush1.msra.mxu0 %v1848
        %2131 = vmatprep.subr.mxu0 %v1890
        %2132 = vmatpush1.msra.mxu0 %v1887
        %2133 = vmatprep.subr.mxu0 0.0
        %2134 = vmatpush1.msra.mxu0 0.0
        %2135 = vmatprep.subr.mxu0 0.0
        %2136 = vmatpush1.msra.mxu0 0.0
        %2137 = vmatprep.subr.mxu0 0.0
        %2138 = vmatpush1.msra.mxu0 0.0
        %2139 = vmatprep.subr.mxu0 0.0
        %2140 = vmatpush1.msra.mxu0 0.0
        %2141 = vmatprep.subr.mxu0 0.0
        %2142 = vmatpush1.msra.mxu0 0.0
        %2143 = vmatprep.subr.mxu0 0.0
        %2144 = vmatpush1.msra.mxu0 0.0
        %2145 = vmatprep.subr.mxu0 0.0
        %2146 = vmatpush1.msra.mxu0 0.0
        %2147 = vmatprep.subr.mxu0 0.0
        %2148 = vmatpush1.msra.mxu0 0.0
        %2149 = vmatprep.subr.mxu0 0.0
        %2150 = vmatpush1.msra.mxu0 0.0
        %2151 = vmatprep.subr.mxu0 0.0
        %2152 = vmatpush1.msra.mxu0 0.0
        %2153 = vmatprep.subr.mxu0 0.0
        %2154 = vmatpush1.msra.mxu0 0.0
        %2155 = vmatprep.subr.mxu0 0.0
        %2156 = vmatpush1.msra.mxu0 0.0
        %2157 = vmatprep.subr.mxu0 0.0
        %2158 = vmatpush1.msra.mxu0 0.0
        %2159 = vmatprep.subr.mxu0 0.0
        %2160 = vmatpush1.msra.mxu0 0.0
        %2161 = vmatprep.subr.mxu0 0.0
        %2162 = vmatpush1.msra.mxu0 0.0
        %2163 = vmatprep.subr.mxu0 0.0
        %2164 = vmatpush1.msra.mxu0 0.0
        %2165 = vmatprep.subr.mxu0 0.0
        %2166 = vmatpush1.msra.mxu0 0.0
        %2167 = vmatprep.subr.mxu0 0.0
        %2168 = vmatpush1.msra.mxu0 0.0
        %2169 = vmatprep.mubr.f32.mxu0 0.0
        %2170 = vmatmul.mubr.f32.gmra.mrb[0].mxu0 %v1865
        %v2171 = vpop.f32.mrb[0].mxu0
        %v2172 = vadd.f32 %v1862, %v2171
        %v2173 = vpop.f32.mrb[0].mxu0
        %v2174 = vadd.f32 %v1862, %v2173
        %2175 = vdwg.mxu0
        %vm2176 = vcmp.ge.f32.partialorder %v1959, 0.0
        %vm2177 = vcmp.ge.f32.partialorder %v1961, 0.0
        %vm2178 = vcmp.ge.f32.partialorder %v2030, 0.0
        %vm2179 = vcmp.ge.f32.partialorder %v2032, 0.0
        %vm2180 = vcmp.ge.f32.partialorder %v2101, 0.0
        %vm2181 = vcmp.ge.f32.partialorder %v2103, 0.0
        %vm2182 = vcmp.ge.f32.partialorder %v2172, 0.0
        %vm2183 = vcmp.ge.f32.partialorder %v2174, 0.0
        %v2184 = vmul.f32 %v1959, 0.01
        %v2185 = vmul.f32 %v1961, 0.01
        %v2186 = vmul.f32 %v2030, 0.01
        %v2187 = vmul.f32 %v2032, 0.01
        %v2188 = vmul.f32 %v2101, 0.01
        %v2189 = vmul.f32 %v2103, 0.01
        %v2190 = vmul.f32 %v2172, 0.01
        %v2191 = vmul.f32 %v2174, 0.01
        %v2192 = vsel %vm2176, %v1959, %v2184
        %v2193 = vsel %vm2177, %v1961, %v2185
        %v2194 = vsel %vm2178, %v2030, %v2186
        %v2195 = vsel %vm2179, %v2032, %v2187
        %v2196 = vsel %vm2180, %v2101, %v2188
        %v2197 = vsel %vm2181, %v2103, %v2189
        %v2198 = vsel %vm2182, %v2172, %v2190
        %v2199 = vsel %vm2183, %v2174, %v2191
        %v2200 = vld [vmem:[%s5] sm:$0xff]
        %v2202 = vlaneseq
        %v2203 = vshrl.u32 %v2202, 7
        %v2204 = vsub.s32 0, %v2203
        %v2205 = vrot.slane %v2200, %v2204
        %v2206 = vlaneseq
        %v2207 = vshrl.u32 %v2206, 7
        %v2208 = vsub.s32 1, %v2207
        %v2209 = vrot.slane %v2200, %v2208
        %v2210 = vlaneseq
        %v2211 = vshrl.u32 %v2210, 7
        %v2212 = vsub.s32 2, %v2211
        %v2213 = vrot.slane %v2200, %v2212
        %v2214 = vlaneseq
        %v2215 = vshrl.u32 %v2214, 7
        %v2216 = vsub.s32 3, %v2215
        %v2217 = vrot.slane %v2200, %v2216
        %v2218 = vlaneseq
        %v2219 = vshrl.u32 %v2218, 7
        %v2220 = vsub.s32 4, %v2219
        %v2221 = vrot.slane %v2200, %v2220
        %v2222 = vlaneseq
        %v2223 = vshrl.u32 %v2222, 7
        %v2224 = vsub.s32 5, %v2223
        %v2225 = vrot.slane %v2200, %v2224
        %v2226 = vlaneseq
        %v2227 = vshrl.u32 %v2226, 7
        %v2228 = vsub.s32 6, %v2227
        %v2229 = vrot.slane %v2200, %v2228
        %v2230 = vlaneseq
        %v2231 = vshrl.u32 %v2230, 7
        %v2232 = vsub.s32 7, %v2231
        %v2233 = vrot.slane %v2200, %v2232
        %v2242 = vmul.f32 %v2192, %v2205
        %v2243 = vmul.f32 %v2193, %v2209
        %v2244 = vmul.f32 %v2194, %v2213
        %v2245 = vmul.f32 %v2195, %v2217
        %v2246 = vmul.f32 %v2196, %v2221
        %v2247 = vmul.f32 %v2197, %v2225
        %v2248 = vmul.f32 %v2198, %v2229
        %v2249 = vmul.f32 %v2199, %v2233
        %2250 = vst [vmem:[#allocation3] sm:$0xff] 0.0
        %2251 = vst [vmem:[#allocation3 + $0x8] sm:$0xff] 0.0
        %2252 = vst [vmem:[#allocation3 + $0x10] sm:$0xff] 0.0
        %2253 = vst [vmem:[#allocation3 + $0x18] sm:$0xff] 0.0
        %2254 = vst [vmem:[#allocation3 + $0x20] sm:$0xff] 0.0
        %2255 = vst [vmem:[#allocation3 + $0x28] sm:$0xff] 0.0
        %2256 = vst [vmem:[#allocation3 + $0x30] sm:$0xff] 0.0
        %2257 = vst [vmem:[#allocation3 + $0x38] sm:$0xff] 0.0
        %2258 = vst [vmem:[#allocation3 + $0x40] sm:$0xff] 0.0
        %vm2259 = vcmask 711680
        %2260 = vst.msk [vmem:[#allocation3 + $0x48] sm:$0xff] %vm2259, 0.0
        %2261 = vst [vmem:[#allocation3 + $0x8] sm:$0xff] %v2242
        %2262 = vst [vmem:[#allocation3 + $0x10] sm:$0xff] %v2243
        %2263 = vst [vmem:[#allocation3 + $0x18] sm:$0xff] %v2244
        %2264 = vst [vmem:[#allocation3 + $0x20] sm:$0xff] %v2245
        %2265 = vst [vmem:[#allocation3 + $0x28] sm:$0xff] %v2246
        %2266 = vst [vmem:[#allocation3 + $0x30] sm:$0xff] %v2247
        %2267 = vst [vmem:[#allocation3 + $0x38] sm:$0xff] %v2248
        %vm2268 = vcmask 850944
        %2269 = vst.msk [vmem:[#allocation3 + $0x40] sm:$0xff] %vm2268, %v2249
        %v2270 = vld [vmem:[#allocation3] sm:$0xff]
        %v2271 = vld [vmem:[#allocation3 + $0x8] sm:$0xff]
        %v2272 = vld [vmem:[#allocation3 + $0x10] sm:$0xff]
        %v2273 = vld [vmem:[#allocation3 + $0x18] sm:$0xff]
        %v2274 = vld [vmem:[#allocation3 + $0x20] sm:$0xff]
        %v2275 = vld [vmem:[#allocation3 + $0x28] sm:$0xff]
        %v2276 = vld [vmem:[#allocation3 + $0x30] sm:$0xff]
        %v2277 = vld [vmem:[#allocation3 + $0x38] sm:$0xff]
        %2286 = vrot.lane.b32.xlu0 %v2270, 111
        %v2287 = vpop.permute.xlu0 %2286
        %2288 = vrot.lane.b32.xlu0 %v2271, 111
        %v2289 = vpop.permute.xlu0 %2288
        %2290 = vrot.lane.b32.xlu0 %v2272, 111
        %v2291 = vpop.permute.xlu0 %2290
        %2292 = vrot.lane.b32.xlu0 %v2273, 111
        %v2293 = vpop.permute.xlu0 %2292
        %2294 = vrot.lane.b32.xlu0 %v2274, 111
        %v2295 = vpop.permute.xlu0 %2294
        %2296 = vrot.lane.b32.xlu0 %v2275, 111
        %v2297 = vpop.permute.xlu0 %2296
        %2298 = vrot.lane.b32.xlu0 %v2276, 111
        %v2299 = vpop.permute.xlu0 %2298
        %2300 = vrot.lane.b32.xlu0 %v2277, 111
        %v2301 = vpop.permute.xlu0 %2300
        %vm2302 = vcmask 908288
        %v2303 = vsel %vm2302, %v2287, %v2289
        %v2304 = vsel %vm2302, %v2289, %v2291
        %v2305 = vsel %vm2302, %v2291, %v2293
        %v2306 = vsel %vm2302, %v2293, %v2295
        %v2307 = vsel %vm2302, %v2295, %v2297
        %v2308 = vsel %vm2302, %v2297, %v2299
        %v2309 = vsel %vm2302, %v2299, %v2301
        %2318 = vst [vmem:[#allocation2] sm:$0xff] %v2303
        %2319 = vst [vmem:[#allocation2 + $0x8] sm:$0xff] %v2304
        %2320 = vst [vmem:[#allocation2 + $0x10] sm:$0xff] %v2305
        %2321 = vst [vmem:[#allocation2 + $0x18] sm:$0xff] %v2306
        %2322 = vst [vmem:[#allocation2 + $0x20] sm:$0xff] %v2307
        %2323 = vst [vmem:[#allocation2 + $0x28] sm:$0xff] %v2308
        %2324 = vst [vmem:[#allocation2 + $0x30] sm:$0xff] %v2309
        %2325 = vst.msk [vmem:[#allocation2 + $0x38] sm:$0xff] %vm2268, %v2301
        %v2326 = vld [vmem:[#allocation3] sm:$0xff]
        %v2327 = vld [vmem:[#allocation3 + $0x8] sm:$0xff]
        %v2328 = vld [vmem:[#allocation3 + $0x10] sm:$0xff]
        %v2329 = vld [vmem:[#allocation3 + $0x18] sm:$0xff]
        %v2330 = vld [vmem:[#allocation3 + $0x20] sm:$0xff]
        %v2331 = vld [vmem:[#allocation3 + $0x28] sm:$0xff]
        %v2332 = vld [vmem:[#allocation3 + $0x30] sm:$0xff]
        %v2333 = vld [vmem:[#allocation3 + $0x38] sm:$0xff]
        %2342 = vrot.lane.b32.xlu0 %v2326, 110
        %v2343 = vpop.permute.xlu0 %2342
        %2344 = vrot.lane.b32.xlu0 %v2327, 110
        %v2345 = vpop.permute.xlu0 %2344
        %2346 = vrot.lane.b32.xlu0 %v2328, 110
        %v2347 = vpop.permute.xlu0 %2346
        %2348 = vrot.lane.b32.xlu0 %v2329, 110
        %v2349 = vpop.permute.xlu0 %2348
        %2350 = vrot.lane.b32.xlu0 %v2330, 110
        %v2351 = vpop.permute.xlu0 %2350
        %2352 = vrot.lane.b32.xlu0 %v2331, 110
        %v2353 = vpop.permute.xlu0 %2352
        %2354 = vrot.lane.b32.xlu0 %v2332, 110
        %v2355 = vpop.permute.xlu0 %2354
        %2356 = vrot.lane.b32.xlu0 %v2333, 110
        %v2357 = vpop.permute.xlu0 %2356
        %vm2358 = vcmask 900096
        %v2359 = vsel %vm2358, %v2343, %v2345
        %v2360 = vsel %vm2358, %v2345, %v2347
        %v2361 = vsel %vm2358, %v2347, %v2349
        %v2362 = vsel %vm2358, %v2349, %v2351
        %v2363 = vsel %vm2358, %v2351, %v2353
        %v2364 = vsel %vm2358, %v2353, %v2355
        %v2365 = vsel %vm2358, %v2355, %v2357
        %2374 = vst [vmem:[#allocation2 + $0x40] sm:$0xff] %v2359
        %2375 = vst [vmem:[#allocation2 + $0x48] sm:$0xff] %v2360
        %2376 = vst [vmem:[#allocation2 + $0x50] sm:$0xff] %v2361
        %2377 = vst [vmem:[#allocation2 + $0x58] sm:$0xff] %v2362
        %2378 = vst [vmem:[#allocation2 + $0x60] sm:$0xff] %v2363
        %2379 = vst [vmem:[#allocation2 + $0x68] sm:$0xff] %v2364
        %2380 = vst [vmem:[#allocation2 + $0x70] sm:$0xff] %v2365
        %2381 = vst.msk [vmem:[#allocation2 + $0x78] sm:$0xff] %vm2268, %v2357
        %v2382 = vld [vmem:[#allocation3] sm:$0xff]
        %v2383 = vld [vmem:[#allocation3 + $0x8] sm:$0xff]
        %v2384 = vld [vmem:[#allocation3 + $0x10] sm:$0xff]
        %v2385 = vld [vmem:[#allocation3 + $0x18] sm:$0xff]
        %v2386 = vld [vmem:[#allocation3 + $0x20] sm:$0xff]
        %v2387 = vld [vmem:[#allocation3 + $0x28] sm:$0xff]
        %v2388 = vld [vmem:[#allocation3 + $0x30] sm:$0xff]
        %v2389 = vld [vmem:[#allocation3 + $0x38] sm:$0xff]
        %2398 = vrot.lane.b32.xlu0 %v2382, 109
        %v2399 = vpop.permute.xlu0 %2398
        %2400 = vrot.lane.b32.xlu0 %v2383, 109
        %v2401 = vpop.permute.xlu0 %2400
        %2402 = vrot.lane.b32.xlu0 %v2384, 109
        %v2403 = vpop.permute.xlu0 %2402
        %2404 = vrot.lane.b32.xlu0 %v2385, 109
        %v2405 = vpop.permute.xlu0 %2404
        %2406 = vrot.lane.b32.xlu0 %v2386, 109
        %v2407 = vpop.permute.xlu0 %2406
        %2408 = vrot.lane.b32.xlu0 %v2387, 109
        %v2409 = vpop.permute.xlu0 %2408
        %2410 = vrot.lane.b32.xlu0 %v2388, 109
        %v2411 = vpop.permute.xlu0 %2410
        %2412 = vrot.lane.b32.xlu0 %v2389, 109
        %v2413 = vpop.permute.xlu0 %2412
        %vm2414 = vcmask 891904
        %v2415 = vsel %vm2414, %v2399, %v2401
        %v2416 = vsel %vm2414, %v2401, %v2403
        %v2417 = vsel %vm2414, %v2403, %v2405
        %v2418 = vsel %vm2414, %v2405, %v2407
        %v2419 = vsel %vm2414, %v2407, %v2409
        %v2420 = vsel %vm2414, %v2409, %v2411
        %v2421 = vsel %vm2414, %v2411, %v2413
        %2430 = vst [vmem:[#allocation2 + $0x80] sm:$0xff] %v2415
        %2431 = vst [vmem:[#allocation2 + $0x88] sm:$0xff] %v2416
        %2432 = vst [vmem:[#allocation2 + $0x90] sm:$0xff] %v2417
        %2433 = vst [vmem:[#allocation2 + $0x98] sm:$0xff] %v2418
        %2434 = vst [vmem:[#allocation2 + $0xa0] sm:$0xff] %v2419
        %2435 = vst [vmem:[#allocation2 + $0xa8] sm:$0xff] %v2420
        %2436 = vst [vmem:[#allocation2 + $0xb0] sm:$0xff] %v2421
        %2437 = vst.msk [vmem:[#allocation2 + $0xb8] sm:$0xff] %vm2268, %v2413
        %v2438 = vld [vmem:[#allocation3] sm:$0xff]
        %v2439 = vld [vmem:[#allocation3 + $0x8] sm:$0xff]
        %v2440 = vld [vmem:[#allocation3 + $0x10] sm:$0xff]
        %v2441 = vld [vmem:[#allocation3 + $0x18] sm:$0xff]
        %v2442 = vld [vmem:[#allocation3 + $0x20] sm:$0xff]
        %v2443 = vld [vmem:[#allocation3 + $0x28] sm:$0xff]
        %v2444 = vld [vmem:[#allocation3 + $0x30] sm:$0xff]
        %v2445 = vld [vmem:[#allocation3 + $0x38] sm:$0xff]
        %v2446 = vld [vmem:[#allocation3 + $0x40] sm:$0xff]
        %2456 = vrot.lane.b32.xlu0 %v2438, 101
        %v2457 = vpop.permute.xlu0 %2456
        %2458 = vrot.lane.b32.xlu0 %v2439, 101
        %v2459 = vpop.permute.xlu0 %2458
        %2460 = vrot.lane.b32.xlu0 %v2440, 101
        %v2461 = vpop.permute.xlu0 %2460
        %2462 = vrot.lane.b32.xlu0 %v2441, 101
        %v2463 = vpop.permute.xlu0 %2462
        %2464 = vrot.lane.b32.xlu0 %v2442, 101
        %v2465 = vpop.permute.xlu0 %2464
        %2466 = vrot.lane.b32.xlu0 %v2443, 101
        %v2467 = vpop.permute.xlu0 %2466
        %2468 = vrot.lane.b32.xlu0 %v2444, 101
        %v2469 = vpop.permute.xlu0 %2468
        %2470 = vrot.lane.b32.xlu0 %v2445, 101
        %v2471 = vpop.permute.xlu0 %2470
        %2472 = vrot.lane.b32.xlu0 %v2446, 101
        %v2473 = vpop.permute.xlu0 %2472
        %vm2474 = vcmask 826368
        %v2475 = vsel %vm2474, %v2457, %v2459
        %v2476 = vsel %vm2474, %v2459, %v2461
        %v2477 = vsel %vm2474, %v2461, %v2463
        %v2478 = vsel %vm2474, %v2463, %v2465
        %v2479 = vsel %vm2474, %v2465, %v2467
        %v2480 = vsel %vm2474, %v2467, %v2469
        %v2481 = vsel %vm2474, %v2469, %v2471
        %v2482 = vsel %vm2474, %v2471, %v2473
        %2491 = vst [vmem:[#allocation2 + $0xc0] sm:$0xff] %v2475
        %2492 = vst [vmem:[#allocation2 + $0xc8] sm:$0xff] %v2476
        %2493 = vst [vmem:[#allocation2 + $0xd0] sm:$0xff] %v2477
        %2494 = vst [vmem:[#allocation2 + $0xd8] sm:$0xff] %v2478
        %2495 = vst [vmem:[#allocation2 + $0xe0] sm:$0xff] %v2479
        %2496 = vst [vmem:[#allocation2 + $0xe8] sm:$0xff] %v2480
        %2497 = vst [vmem:[#allocation2 + $0xf0] sm:$0xff] %v2481
        %2498 = vst.msk [vmem:[#allocation2 + $0xf8] sm:$0xff] %vm2268, %v2482
        %v2499 = vld [vmem:[#allocation3] sm:$0xff]
        %v2500 = vld [vmem:[#allocation3 + $0x8] sm:$0xff]
        %v2501 = vld [vmem:[#allocation3 + $0x10] sm:$0xff]
        %v2502 = vld [vmem:[#allocation3 + $0x18] sm:$0xff]
        %v2503 = vld [vmem:[#allocation3 + $0x20] sm:$0xff]
        %v2504 = vld [vmem:[#allocation3 + $0x28] sm:$0xff]
        %v2505 = vld [vmem:[#allocation3 + $0x30] sm:$0xff]
        %v2506 = vld [vmem:[#allocation3 + $0x38] sm:$0xff]
        %v2507 = vld [vmem:[#allocation3 + $0x40] sm:$0xff]
        %2517 = vrot.lane.b32.xlu0 %v2499, 100
        %v2518 = vpop.permute.xlu0 %2517
        %2519 = vrot.lane.b32.xlu0 %v2500, 100
        %v2520 = vpop.permute.xlu0 %2519
        %2521 = vrot.lane.b32.xlu0 %v2501, 100
        %v2522 = vpop.permute.xlu0 %2521
        %2523 = vrot.lane.b32.xlu0 %v2502, 100
        %v2524 = vpop.permute.xlu0 %2523
        %2525 = vrot.lane.b32.xlu0 %v2503, 100
        %v2526 = vpop.permute.xlu0 %2525
        %2527 = vrot.lane.b32.xlu0 %v2504, 100
        %v2528 = vpop.permute.xlu0 %2527
        %2529 = vrot.lane.b32.xlu0 %v2505, 100
        %v2530 = vpop.permute.xlu0 %2529
        %2531 = vrot.lane.b32.xlu0 %v2506, 100
        %v2532 = vpop.permute.xlu0 %2531
        %2533 = vrot.lane.b32.xlu0 %v2507, 100
        %v2534 = vpop.permute.xlu0 %2533
        %vm2535 = vcmask 818176
        %v2536 = vsel %vm2535, %v2518, %v2520
        %v2537 = vsel %vm2535, %v2520, %v2522
        %v2538 = vsel %vm2535, %v2522, %v2524
        %v2539 = vsel %vm2535, %v2524, %v2526
        %v2540 = vsel %vm2535, %v2526, %v2528
        %v2541 = vsel %vm2535, %v2528, %v2530
        %v2542 = vsel %vm2535, %v2530, %v2532
        %v2543 = vsel %vm2535, %v2532, %v2534
        %2552 = vst [vmem:[#allocation2 + $0x100] sm:$0xff] %v2536
        %2553 = vst [vmem:[#allocation2 + $0x108] sm:$0xff] %v2537
        %2554 = vst [vmem:[#allocation2 + $0x110] sm:$0xff] %v2538
        %2555 = vst [vmem:[#allocation2 + $0x118] sm:$0xff] %v2539
        %2556 = vst [vmem:[#allocation2 + $0x120] sm:$0xff] %v2540
        %2557 = vst [vmem:[#allocation2 + $0x128] sm:$0xff] %v2541
        %2558 = vst [vmem:[#allocation2 + $0x130] sm:$0xff] %v2542
        %2559 = vst.msk [vmem:[#allocation2 + $0x138] sm:$0xff] %vm2268, %v2543
        %v2560 = vld [vmem:[#allocation3] sm:$0xff]
        %v2561 = vld [vmem:[#allocation3 + $0x8] sm:$0xff]
        %v2562 = vld [vmem:[#allocation3 + $0x10] sm:$0xff]
        %v2563 = vld [vmem:[#allocation3 + $0x18] sm:$0xff]
        %v2564 = vld [vmem:[#allocation3 + $0x20] sm:$0xff]
        %v2565 = vld [vmem:[#allocation3 + $0x28] sm:$0xff]
        %v2566 = vld [vmem:[#allocation3 + $0x30] sm:$0xff]
        %v2567 = vld [vmem:[#allocation3 + $0x38] sm:$0xff]
        %v2568 = vld [vmem:[#allocation3 + $0x40] sm:$0xff]
        %2578 = vrot.lane.b32.xlu0 %v2560, 99
        %v2579 = vpop.permute.xlu0 %2578
        %2580 = vrot.lane.b32.xlu0 %v2561, 99
        %v2581 = vpop.permute.xlu0 %2580
        %2582 = vrot.lane.b32.xlu0 %v2562, 99
        %v2583 = vpop.permute.xlu0 %2582
        %2584 = vrot.lane.b32.xlu0 %v2563, 99
        %v2585 = vpop.permute.xlu0 %2584
        %2586 = vrot.lane.b32.xlu0 %v2564, 99
        %v2587 = vpop.permute.xlu0 %2586
        %2588 = vrot.lane.b32.xlu0 %v2565, 99
        %v2589 = vpop.permute.xlu0 %2588
        %2590 = vrot.lane.b32.xlu0 %v2566, 99
        %v2591 = vpop.permute.xlu0 %2590
        %2592 = vrot.lane.b32.xlu0 %v2567, 99
        %v2593 = vpop.permute.xlu0 %2592
        %2594 = vrot.lane.b32.xlu0 %v2568, 99
        %v2595 = vpop.permute.xlu0 %2594
        %vm2596 = vcmask 809984
        %v2597 = vsel %vm2596, %v2579, %v2581
        %v2598 = vsel %vm2596, %v2581, %v2583
        %v2599 = vsel %vm2596, %v2583, %v2585
        %v2600 = vsel %vm2596, %v2585, %v2587
        %v2601 = vsel %vm2596, %v2587, %v2589
        %v2602 = vsel %vm2596, %v2589, %v2591
        %v2603 = vsel %vm2596, %v2591, %v2593
        %v2604 = vsel %vm2596, %v2593, %v2595
        %2613 = vst [vmem:[#allocation2 + $0x140] sm:$0xff] %v2597
        %2614 = vst [vmem:[#allocation2 + $0x148] sm:$0xff] %v2598
        %2615 = vst [vmem:[#allocation2 + $0x150] sm:$0xff] %v2599
        %2616 = vst [vmem:[#allocation2 + $0x158] sm:$0xff] %v2600
        %2617 = vst [vmem:[#allocation2 + $0x160] sm:$0xff] %v2601
        %2618 = vst [vmem:[#allocation2 + $0x168] sm:$0xff] %v2602
        %2619 = vst [vmem:[#allocation2 + $0x170] sm:$0xff] %v2603
        %2620 = vst.msk [vmem:[#allocation2 + $0x178] sm:$0xff] %vm2268, %v2604
        %v2621 = vld [vmem:[#allocation3] sm:$0xff]
        %v2622 = vld [vmem:[#allocation3 + $0x8] sm:$0xff]
        %v2623 = vld [vmem:[#allocation3 + $0x10] sm:$0xff]
        %v2624 = vld [vmem:[#allocation3 + $0x18] sm:$0xff]
        %v2625 = vld [vmem:[#allocation3 + $0x20] sm:$0xff]
        %v2626 = vld [vmem:[#allocation3 + $0x28] sm:$0xff]
        %v2627 = vld [vmem:[#allocation3 + $0x30] sm:$0xff]
        %v2628 = vld [vmem:[#allocation3 + $0x38] sm:$0xff]
        %v2629 = vld [vmem:[#allocation3 + $0x40] sm:$0xff]
        %2639 = vrot.lane.b32.xlu0 %v2621, 91
        %v2640 = vpop.permute.xlu0 %2639
        %2641 = vrot.lane.b32.xlu0 %v2622, 91
        %v2642 = vpop.permute.xlu0 %2641
        %2643 = vrot.lane.b32.xlu0 %v2623, 91
        %v2644 = vpop.permute.xlu0 %2643
        %2645 = vrot.lane.b32.xlu0 %v2624, 91
        %v2646 = vpop.permute.xlu0 %2645
        %2647 = vrot.lane.b32.xlu0 %v2625, 91
        %v2648 = vpop.permute.xlu0 %2647
        %2649 = vrot.lane.b32.xlu0 %v2626, 91
        %v2650 = vpop.permute.xlu0 %2649
        %2651 = vrot.lane.b32.xlu0 %v2627, 91
        %v2652 = vpop.permute.xlu0 %2651
        %2653 = vrot.lane.b32.xlu0 %v2628, 91
        %v2654 = vpop.permute.xlu0 %2653
        %2655 = vrot.lane.b32.xlu0 %v2629, 91
        %v2656 = vpop.permute.xlu0 %2655
        %vm2657 = vcmask 744448
        %v2658 = vsel %vm2657, %v2640, %v2642
        %v2659 = vsel %vm2657, %v2642, %v2644
        %v2660 = vsel %vm2657, %v2644, %v2646
        %v2661 = vsel %vm2657, %v2646, %v2648
        %v2662 = vsel %vm2657, %v2648, %v2650
        %v2663 = vsel %vm2657, %v2650, %v2652
        %v2664 = vsel %vm2657, %v2652, %v2654
        %v2665 = vsel %vm2657, %v2654, %v2656
        %2674 = vst [vmem:[#allocation2 + $0x180] sm:$0xff] %v2658
        %2675 = vst [vmem:[#allocation2 + $0x188] sm:$0xff] %v2659
        %2676 = vst [vmem:[#allocation2 + $0x190] sm:$0xff] %v2660
        %2677 = vst [vmem:[#allocation2 + $0x198] sm:$0xff] %v2661
        %2678 = vst [vmem:[#allocation2 + $0x1a0] sm:$0xff] %v2662
        %2679 = vst [vmem:[#allocation2 + $0x1a8] sm:$0xff] %v2663
        %2680 = vst [vmem:[#allocation2 + $0x1b0] sm:$0xff] %v2664
        %2681 = vst.msk [vmem:[#allocation2 + $0x1b8] sm:$0xff] %vm2268, %v2665
        %v2682 = vld [vmem:[#allocation3] sm:$0xff]
        %v2683 = vld [vmem:[#allocation3 + $0x8] sm:$0xff]
        %v2684 = vld [vmem:[#allocation3 + $0x10] sm:$0xff]
        %v2685 = vld [vmem:[#allocation3 + $0x18] sm:$0xff]
        %v2686 = vld [vmem:[#allocation3 + $0x20] sm:$0xff]
        %v2687 = vld [vmem:[#allocation3 + $0x28] sm:$0xff]
        %v2688 = vld [vmem:[#allocation3 + $0x30] sm:$0xff]
        %v2689 = vld [vmem:[#allocation3 + $0x38] sm:$0xff]
        %v2690 = vld [vmem:[#allocation3 + $0x40] sm:$0xff]
        %2700 = vrot.lane.b32.xlu0 %v2682, 90
        %v2701 = vpop.permute.xlu0 %2700
        %2702 = vrot.lane.b32.xlu0 %v2683, 90
        %v2703 = vpop.permute.xlu0 %2702
        %2704 = vrot.lane.b32.xlu0 %v2684, 90
        %v2705 = vpop.permute.xlu0 %2704
        %2706 = vrot.lane.b32.xlu0 %v2685, 90
        %v2707 = vpop.permute.xlu0 %2706
        %2708 = vrot.lane.b32.xlu0 %v2686, 90
        %v2709 = vpop.permute.xlu0 %2708
        %2710 = vrot.lane.b32.xlu0 %v2687, 90
        %v2711 = vpop.permute.xlu0 %2710
        %2712 = vrot.lane.b32.xlu0 %v2688, 90
        %v2713 = vpop.permute.xlu0 %2712
        %2714 = vrot.lane.b32.xlu0 %v2689, 90
        %v2715 = vpop.permute.xlu0 %2714
        %2716 = vrot.lane.b32.xlu0 %v2690, 90
        %v2717 = vpop.permute.xlu0 %2716
        %vm2718 = vcmask 736256
        %v2719 = vsel %vm2718, %v2701, %v2703
        %v2720 = vsel %vm2718, %v2703, %v2705
        %v2721 = vsel %vm2718, %v2705, %v2707
        %v2722 = vsel %vm2718, %v2707, %v2709
        %v2723 = vsel %vm2718, %v2709, %v2711
        %v2724 = vsel %vm2718, %v2711, %v2713
        %v2725 = vsel %vm2718, %v2713, %v2715
        %v2726 = vsel %vm2718, %v2715, %v2717
        %2735 = vst [vmem:[#allocation2 + $0x1c0] sm:$0xff] %v2719
        %2736 = vst [vmem:[#allocation2 + $0x1c8] sm:$0xff] %v2720
        %2737 = vst [vmem:[#allocation2 + $0x1d0] sm:$0xff] %v2721
        %2738 = vst [vmem:[#allocation2 + $0x1d8] sm:$0xff] %v2722
        %2739 = vst [vmem:[#allocation2 + $0x1e0] sm:$0xff] %v2723
        %2740 = vst [vmem:[#allocation2 + $0x1e8] sm:$0xff] %v2724
        %2741 = vst [vmem:[#allocation2 + $0x1f0] sm:$0xff] %v2725
        %2742 = vst.msk [vmem:[#allocation2 + $0x1f8] sm:$0xff] %vm2268, %v2726
        %v2743 = vld [vmem:[#allocation3] sm:$0xff]
        %v2744 = vld [vmem:[#allocation3 + $0x8] sm:$0xff]
        %v2745 = vld [vmem:[#allocation3 + $0x10] sm:$0xff]
        %v2746 = vld [vmem:[#allocation3 + $0x18] sm:$0xff]
        %v2747 = vld [vmem:[#allocation3 + $0x20] sm:$0xff]
        %v2748 = vld [vmem:[#allocation3 + $0x28] sm:$0xff]
        %v2749 = vld [vmem:[#allocation3 + $0x30] sm:$0xff]
        %v2750 = vld [vmem:[#allocation3 + $0x38] sm:$0xff]
        %v2751 = vld [vmem:[#allocation3 + $0x40] sm:$0xff]
        %2761 = vrot.lane.b32.xlu0 %v2743, 89
        %v2762 = vpop.permute.xlu0 %2761
        %2763 = vrot.lane.b32.xlu0 %v2744, 89
        %v2764 = vpop.permute.xlu0 %2763
        %2765 = vrot.lane.b32.xlu0 %v2745, 89
        %v2766 = vpop.permute.xlu0 %2765
        %2767 = vrot.lane.b32.xlu0 %v2746, 89
        %v2768 = vpop.permute.xlu0 %2767
        %2769 = vrot.lane.b32.xlu0 %v2747, 89
        %v2770 = vpop.permute.xlu0 %2769
        %2771 = vrot.lane.b32.xlu0 %v2748, 89
        %v2772 = vpop.permute.xlu0 %2771
        %2773 = vrot.lane.b32.xlu0 %v2749, 89
        %v2774 = vpop.permute.xlu0 %2773
        %2775 = vrot.lane.b32.xlu0 %v2750, 89
        %v2776 = vpop.permute.xlu0 %2775
        %2777 = vrot.lane.b32.xlu0 %v2751, 89
        %v2778 = vpop.permute.xlu0 %2777
        %vm2779 = vcmask 728064
        %v2780 = vsel %vm2779, %v2762, %v2764
        %v2781 = vsel %vm2779, %v2764, %v2766
        %v2782 = vsel %vm2779, %v2766, %v2768
        %v2783 = vsel %vm2779, %v2768, %v2770
        %v2784 = vsel %vm2779, %v2770, %v2772
        %v2785 = vsel %vm2779, %v2772, %v2774
        %v2786 = vsel %vm2779, %v2774, %v2776
        %v2787 = vsel %vm2779, %v2776, %v2778
        %2796 = vst [vmem:[#allocation2 + $0x200] sm:$0xff] %v2780
        %2797 = vst [vmem:[#allocation2 + $0x208] sm:$0xff] %v2781
        %2798 = vst [vmem:[#allocation2 + $0x210] sm:$0xff] %v2782
        %2799 = vst [vmem:[#allocation2 + $0x218] sm:$0xff] %v2783
        %2800 = vst [vmem:[#allocation2 + $0x220] sm:$0xff] %v2784
        %2801 = vst [vmem:[#allocation2 + $0x228] sm:$0xff] %v2785
        %2802 = vst [vmem:[#allocation2 + $0x230] sm:$0xff] %v2786
        %2803 = vst.msk [vmem:[#allocation2 + $0x238] sm:$0xff] %vm2268, %v2787
        %v2804 = vld [vmem:[#allocation3] sm:$0xff]
        %v2805 = vld [vmem:[#allocation3 + $0x8] sm:$0xff]
        %v2806 = vld [vmem:[#allocation3 + $0x10] sm:$0xff]
        %v2807 = vld [vmem:[#allocation3 + $0x18] sm:$0xff]
        %v2808 = vld [vmem:[#allocation3 + $0x20] sm:$0xff]
        %v2809 = vld [vmem:[#allocation3 + $0x28] sm:$0xff]
        %v2810 = vld [vmem:[#allocation3 + $0x30] sm:$0xff]
        %v2811 = vld [vmem:[#allocation3 + $0x38] sm:$0xff]
        %v2812 = vld [vmem:[#allocation3 + $0x40] sm:$0xff]
        %2822 = vrot.lane.b32.xlu0 %v2804, 11
        %v2823 = vpop.permute.xlu0 %2822
        %2824 = vrot.lane.b32.xlu0 %v2805, 11
        %v2825 = vpop.permute.xlu0 %2824
        %2826 = vrot.lane.b32.xlu0 %v2806, 11
        %v2827 = vpop.permute.xlu0 %2826
        %2828 = vrot.lane.b32.xlu0 %v2807, 11
        %v2829 = vpop.permute.xlu0 %2828
        %2830 = vrot.lane.b32.xlu0 %v2808, 11
        %v2831 = vpop.permute.xlu0 %2830
        %2832 = vrot.lane.b32.xlu0 %v2809, 11
        %v2833 = vpop.permute.xlu0 %2832
        %2834 = vrot.lane.b32.xlu0 %v2810, 11
        %v2835 = vpop.permute.xlu0 %2834
        %2836 = vrot.lane.b32.xlu0 %v2811, 11
        %v2837 = vpop.permute.xlu0 %2836
        %2838 = vrot.lane.b32.xlu0 %v2812, 11
        %v2839 = vpop.permute.xlu0 %2838
        %vm2840 = vcmask 89088
        %v2841 = vsel %vm2840, %v2823, %v2825
        %v2842 = vsel %vm2840, %v2825, %v2827
        %v2843 = vsel %vm2840, %v2827, %v2829
        %v2844 = vsel %vm2840, %v2829, %v2831
        %v2845 = vsel %vm2840, %v2831, %v2833
        %v2846 = vsel %vm2840, %v2833, %v2835
        %v2847 = vsel %vm2840, %v2835, %v2837
        %v2848 = vsel %vm2840, %v2837, %v2839
        %2857 = vst [vmem:[#allocation2 + $0x240] sm:$0xff] %v2841
        %2858 = vst [vmem:[#allocation2 + $0x248] sm:$0xff] %v2842
        %2859 = vst [vmem:[#allocation2 + $0x250] sm:$0xff] %v2843
        %2860 = vst [vmem:[#allocation2 + $0x258] sm:$0xff] %v2844
        %2861 = vst [vmem:[#allocation2 + $0x260] sm:$0xff] %v2845
        %2862 = vst [vmem:[#allocation2 + $0x268] sm:$0xff] %v2846
        %2863 = vst [vmem:[#allocation2 + $0x270] sm:$0xff] %v2847
        %2864 = vst.msk [vmem:[#allocation2 + $0x278] sm:$0xff] %vm2268, %v2848
        %v2865 = vld [vmem:[#allocation3] sm:$0xff]
        %v2866 = vld [vmem:[#allocation3 + $0x8] sm:$0xff]
        %v2867 = vld [vmem:[#allocation3 + $0x10] sm:$0xff]
        %v2868 = vld [vmem:[#allocation3 + $0x18] sm:$0xff]
        %v2869 = vld [vmem:[#allocation3 + $0x20] sm:$0xff]
        %v2870 = vld [vmem:[#allocation3 + $0x28] sm:$0xff]
        %v2871 = vld [vmem:[#allocation3 + $0x30] sm:$0xff]
        %v2872 = vld [vmem:[#allocation3 + $0x38] sm:$0xff]
        %v2873 = vld [vmem:[#allocation3 + $0x40] sm:$0xff]
        %2883 = vrot.lane.b32.xlu0 %v2865, 10
        %v2884 = vpop.permute.xlu0 %2883
        %2885 = vrot.lane.b32.xlu0 %v2866, 10
        %v2886 = vpop.permute.xlu0 %2885
        %2887 = vrot.lane.b32.xlu0 %v2867, 10
        %v2888 = vpop.permute.xlu0 %2887
        %2889 = vrot.lane.b32.xlu0 %v2868, 10
        %v2890 = vpop.permute.xlu0 %2889
        %2891 = vrot.lane.b32.xlu0 %v2869, 10
        %v2892 = vpop.permute.xlu0 %2891
        %2893 = vrot.lane.b32.xlu0 %v2870, 10
        %v2894 = vpop.permute.xlu0 %2893
        %2895 = vrot.lane.b32.xlu0 %v2871, 10
        %v2896 = vpop.permute.xlu0 %2895
        %2897 = vrot.lane.b32.xlu0 %v2872, 10
        %v2898 = vpop.permute.xlu0 %2897
        %2899 = vrot.lane.b32.xlu0 %v2873, 10
        %v2900 = vpop.permute.xlu0 %2899
        %vm2901 = vcmask 80896
        %v2902 = vsel %vm2901, %v2884, %v2886
        %v2903 = vsel %vm2901, %v2886, %v2888
        %v2904 = vsel %vm2901, %v2888, %v2890
        %v2905 = vsel %vm2901, %v2890, %v2892
        %v2906 = vsel %vm2901, %v2892, %v2894
        %v2907 = vsel %vm2901, %v2894, %v2896
        %v2908 = vsel %vm2901, %v2896, %v2898
        %v2909 = vsel %vm2901, %v2898, %v2900
        %2918 = vst [vmem:[#allocation2 + $0x280] sm:$0xff] %v2902
        %2919 = vst [vmem:[#allocation2 + $0x288] sm:$0xff] %v2903
        %2920 = vst [vmem:[#allocation2 + $0x290] sm:$0xff] %v2904
        %2921 = vst [vmem:[#allocation2 + $0x298] sm:$0xff] %v2905
        %2922 = vst [vmem:[#allocation2 + $0x2a0] sm:$0xff] %v2906
        %2923 = vst [vmem:[#allocation2 + $0x2a8] sm:$0xff] %v2907
        %2924 = vst [vmem:[#allocation2 + $0x2b0] sm:$0xff] %v2908
        %2925 = vst.msk [vmem:[#allocation2 + $0x2b8] sm:$0xff] %vm2268, %v2909
        %v2926 = vld [vmem:[#allocation3] sm:$0xff]
        %v2927 = vld [vmem:[#allocation3 + $0x8] sm:$0xff]
        %v2928 = vld [vmem:[#allocation3 + $0x10] sm:$0xff]
        %v2929 = vld [vmem:[#allocation3 + $0x18] sm:$0xff]
        %v2930 = vld [vmem:[#allocation3 + $0x20] sm:$0xff]
        %v2931 = vld [vmem:[#allocation3 + $0x28] sm:$0xff]
        %v2932 = vld [vmem:[#allocation3 + $0x30] sm:$0xff]
        %v2933 = vld [vmem:[#allocation3 + $0x38] sm:$0xff]
        %v2934 = vld [vmem:[#allocation3 + $0x40] sm:$0xff]
        %2944 = vrot.lane.b32.xlu0 %v2926, 9
        %v2945 = vpop.permute.xlu0 %2944
        %2946 = vrot.lane.b32.xlu0 %v2927, 9
        %v2947 = vpop.permute.xlu0 %2946
        %2948 = vrot.lane.b32.xlu0 %v2928, 9
        %v2949 = vpop.permute.xlu0 %2948
        %2950 = vrot.lane.b32.xlu0 %v2929, 9
        %v2951 = vpop.permute.xlu0 %2950
        %2952 = vrot.lane.b32.xlu0 %v2930, 9
        %v2953 = vpop.permute.xlu0 %2952
        %2954 = vrot.lane.b32.xlu0 %v2931, 9
        %v2955 = vpop.permute.xlu0 %2954
        %2956 = vrot.lane.b32.xlu0 %v2932, 9
        %v2957 = vpop.permute.xlu0 %2956
        %2958 = vrot.lane.b32.xlu0 %v2933, 9
        %v2959 = vpop.permute.xlu0 %2958
        %2960 = vrot.lane.b32.xlu0 %v2934, 9
        %v2961 = vpop.permute.xlu0 %2960
        %vm2962 = vcmask 72704
        %v2963 = vsel %vm2962, %v2945, %v2947
        %v2964 = vsel %vm2962, %v2947, %v2949
        %v2965 = vsel %vm2962, %v2949, %v2951
        %v2966 = vsel %vm2962, %v2951, %v2953
        %v2967 = vsel %vm2962, %v2953, %v2955
        %v2968 = vsel %vm2962, %v2955, %v2957
        %v2969 = vsel %vm2962, %v2957, %v2959
        %v2970 = vsel %vm2962, %v2959, %v2961
        %2979 = vst [vmem:[#allocation2 + $0x2c0] sm:$0xff] %v2963
        %2980 = vst [vmem:[#allocation2 + $0x2c8] sm:$0xff] %v2964
        %2981 = vst [vmem:[#allocation2 + $0x2d0] sm:$0xff] %v2965
        %2982 = vst [vmem:[#allocation2 + $0x2d8] sm:$0xff] %v2966
        %2983 = vst [vmem:[#allocation2 + $0x2e0] sm:$0xff] %v2967
        %2984 = vst [vmem:[#allocation2 + $0x2e8] sm:$0xff] %v2968
        %2985 = vst [vmem:[#allocation2 + $0x2f0] sm:$0xff] %v2969
        %2986 = vst.msk [vmem:[#allocation2 + $0x2f8] sm:$0xff] %vm2268, %v2970
        %v2987 = vld [vmem:[#allocation3] sm:$0xff]
        %v2988 = vld [vmem:[#allocation3 + $0x8] sm:$0xff]
        %v2989 = vld [vmem:[#allocation3 + $0x10] sm:$0xff]
        %v2990 = vld [vmem:[#allocation3 + $0x18] sm:$0xff]
        %v2991 = vld [vmem:[#allocation3 + $0x20] sm:$0xff]
        %v2992 = vld [vmem:[#allocation3 + $0x28] sm:$0xff]
        %v2993 = vld [vmem:[#allocation3 + $0x30] sm:$0xff]
        %v2994 = vld [vmem:[#allocation3 + $0x38] sm:$0xff]
        %v2995 = vld [vmem:[#allocation3 + $0x40] sm:$0xff]
        %3005 = vrot.lane.b32.xlu0 %v2987, 1
        %v3006 = vpop.permute.xlu0 %3005
        %3007 = vrot.lane.b32.xlu0 %v2988, 1
        %v3008 = vpop.permute.xlu0 %3007
        %3009 = vrot.lane.b32.xlu0 %v2989, 1
        %v3010 = vpop.permute.xlu0 %3009
        %3011 = vrot.lane.b32.xlu0 %v2990, 1
        %v3012 = vpop.permute.xlu0 %3011
        %3013 = vrot.lane.b32.xlu0 %v2991, 1
        %v3014 = vpop.permute.xlu0 %3013
        %3015 = vrot.lane.b32.xlu0 %v2992, 1
        %v3016 = vpop.permute.xlu0 %3015
        %3017 = vrot.lane.b32.xlu0 %v2993, 1
        %v3018 = vpop.permute.xlu0 %3017
        %3019 = vrot.lane.b32.xlu0 %v2994, 1
        %v3020 = vpop.permute.xlu0 %3019
        %3021 = vrot.lane.b32.xlu0 %v2995, 1
        %v3022 = vpop.permute.xlu0 %3021
        %vm3023 = vcmask 7168
        %v3024 = vsel %vm3023, %v3006, %v3008
        %v3025 = vsel %vm3023, %v3008, %v3010
        %v3026 = vsel %vm3023, %v3010, %v3012
        %v3027 = vsel %vm3023, %v3012, %v3014
        %v3028 = vsel %vm3023, %v3014, %v3016
        %v3029 = vsel %vm3023, %v3016, %v3018
        %v3030 = vsel %vm3023, %v3018, %v3020
        %v3031 = vsel %vm3023, %v3020, %v3022
        %3040 = vst [vmem:[#allocation2 + $0x300] sm:$0xff] %v3024
        %3041 = vst [vmem:[#allocation2 + $0x308] sm:$0xff] %v3025
        %3042 = vst [vmem:[#allocation2 + $0x310] sm:$0xff] %v3026
        %3043 = vst [vmem:[#allocation2 + $0x318] sm:$0xff] %v3027
        %3044 = vst [vmem:[#allocation2 + $0x320] sm:$0xff] %v3028
        %3045 = vst [vmem:[#allocation2 + $0x328] sm:$0xff] %v3029
        %3046 = vst [vmem:[#allocation2 + $0x330] sm:$0xff] %v3030
        %3047 = vst.msk [vmem:[#allocation2 + $0x338] sm:$0xff] %vm2268, %v3031
        %v3048 = vld [vmem:[#allocation3 + $0x8] sm:$0xff]
        %v3049 = vld [vmem:[#allocation3 + $0x10] sm:$0xff]
        %v3050 = vld [vmem:[#allocation3 + $0x18] sm:$0xff]
        %v3051 = vld [vmem:[#allocation3 + $0x20] sm:$0xff]
        %v3052 = vld [vmem:[#allocation3 + $0x28] sm:$0xff]
        %v3053 = vld [vmem:[#allocation3 + $0x30] sm:$0xff]
        %v3054 = vld [vmem:[#allocation3 + $0x38] sm:$0xff]
        %v3055 = vld [vmem:[#allocation3 + $0x40] sm:$0xff]
        %3056 = vst [vmem:[#allocation2 + $0x340] sm:$0xff] %v3048
        %3057 = vst [vmem:[#allocation2 + $0x348] sm:$0xff] %v3049
        %3058 = vst [vmem:[#allocation2 + $0x350] sm:$0xff] %v3050
        %3059 = vst [vmem:[#allocation2 + $0x358] sm:$0xff] %v3051
        %3060 = vst [vmem:[#allocation2 + $0x360] sm:$0xff] %v3052
        %3061 = vst [vmem:[#allocation2 + $0x368] sm:$0xff] %v3053
        %3062 = vst [vmem:[#allocation2 + $0x370] sm:$0xff] %v3054
        %3063 = vst.msk [vmem:[#allocation2 + $0x378] sm:$0xff] %vm2268, %v3055
        %v3064 = vld [vmem:[#allocation3 + $0x8] sm:$0xff]
        %v3065 = vld [vmem:[#allocation3 + $0x10] sm:$0xff]
        %v3066 = vld [vmem:[#allocation3 + $0x18] sm:$0xff]
        %v3067 = vld [vmem:[#allocation3 + $0x20] sm:$0xff]
        %v3068 = vld [vmem:[#allocation3 + $0x28] sm:$0xff]
        %v3069 = vld [vmem:[#allocation3 + $0x30] sm:$0xff]
        %v3070 = vld [vmem:[#allocation3 + $0x38] sm:$0xff]
        %v3071 = vld [vmem:[#allocation3 + $0x40] sm:$0xff]
        %3080 = vrot.lane.b32.xlu0 %v3064, 127
        %v3081 = vpop.permute.xlu0 %3080
        %3082 = vrot.lane.b32.xlu0 %v3065, 127
        %v3083 = vpop.permute.xlu0 %3082
        %3084 = vrot.lane.b32.xlu0 %v3066, 127
        %v3085 = vpop.permute.xlu0 %3084
        %3086 = vrot.lane.b32.xlu0 %v3067, 127
        %v3087 = vpop.permute.xlu0 %3086
        %3088 = vrot.lane.b32.xlu0 %v3068, 127
        %v3089 = vpop.permute.xlu0 %3088
        %3090 = vrot.lane.b32.xlu0 %v3069, 127
        %v3091 = vpop.permute.xlu0 %3090
        %3092 = vrot.lane.b32.xlu0 %v3070, 127
        %v3093 = vpop.permute.xlu0 %3092
        %3094 = vrot.lane.b32.xlu0 %v3071, 127
        %v3095 = vpop.permute.xlu0 %3094
        %v3096 = vsel %vm321, %v3081, %v3083
        %v3097 = vsel %vm321, %v3083, %v3085
        %v3098 = vsel %vm321, %v3085, %v3087
        %v3099 = vsel %vm321, %v3087, %v3089
        %v3100 = vsel %vm321, %v3089, %v3091
        %v3101 = vsel %vm321, %v3091, %v3093
        %v3102 = vsel %vm321, %v3093, %v3095
        %3111 = vst [vmem:[#allocation2 + $0x380] sm:$0xff] %v3096
        %3112 = vst [vmem:[#allocation2 + $0x388] sm:$0xff] %v3097
        %3113 = vst [vmem:[#allocation2 + $0x390] sm:$0xff] %v3098
        %3114 = vst [vmem:[#allocation2 + $0x398] sm:$0xff] %v3099
        %3115 = vst [vmem:[#allocation2 + $0x3a0] sm:$0xff] %v3100
        %3116 = vst [vmem:[#allocation2 + $0x3a8] sm:$0xff] %v3101
        %3117 = vst [vmem:[#allocation2 + $0x3b0] sm:$0xff] %v3102
        %3118 = vst.msk [vmem:[#allocation2 + $0x3b8] sm:$0xff] %vm2268, %v3095
        %v3119 = vld [vmem:[#allocation3 + $0x8] sm:$0xff]
        %v3120 = vld [vmem:[#allocation3 + $0x10] sm:$0xff]
        %v3121 = vld [vmem:[#allocation3 + $0x18] sm:$0xff]
        %v3122 = vld [vmem:[#allocation3 + $0x20] sm:$0xff]
        %v3123 = vld [vmem:[#allocation3 + $0x28] sm:$0xff]
        %v3124 = vld [vmem:[#allocation3 + $0x30] sm:$0xff]
        %v3125 = vld [vmem:[#allocation3 + $0x38] sm:$0xff]
        %v3126 = vld [vmem:[#allocation3 + $0x40] sm:$0xff]
        %3135 = vrot.lane.b32.xlu0 %v3119, 119
        %v3136 = vpop.permute.xlu0 %3135
        %3137 = vrot.lane.b32.xlu0 %v3120, 119
        %v3138 = vpop.permute.xlu0 %3137
        %3139 = vrot.lane.b32.xlu0 %v3121, 119
        %v3140 = vpop.permute.xlu0 %3139
        %3141 = vrot.lane.b32.xlu0 %v3122, 119
        %v3142 = vpop.permute.xlu0 %3141
        %3143 = vrot.lane.b32.xlu0 %v3123, 119
        %v3144 = vpop.permute.xlu0 %3143
        %3145 = vrot.lane.b32.xlu0 %v3124, 119
        %v3146 = vpop.permute.xlu0 %3145
        %3147 = vrot.lane.b32.xlu0 %v3125, 119
        %v3148 = vpop.permute.xlu0 %3147
        %3149 = vrot.lane.b32.xlu0 %v3126, 119
        %v3150 = vpop.permute.xlu0 %3149
        %vm3151 = vcmask 973824
        %v3152 = vsel %vm3151, %v3136, %v3138
        %v3153 = vsel %vm3151, %v3138, %v3140
        %v3154 = vsel %vm3151, %v3140, %v3142
        %v3155 = vsel %vm3151, %v3142, %v3144
        %v3156 = vsel %vm3151, %v3144, %v3146
        %v3157 = vsel %vm3151, %v3146, %v3148
        %v3158 = vsel %vm3151, %v3148, %v3150
        %3167 = vst [vmem:[#allocation2 + $0x3c0] sm:$0xff] %v3152
        %3168 = vst [vmem:[#allocation2 + $0x3c8] sm:$0xff] %v3153
        %3169 = vst [vmem:[#allocation2 + $0x3d0] sm:$0xff] %v3154
        %3170 = vst [vmem:[#allocation2 + $0x3d8] sm:$0xff] %v3155
        %3171 = vst [vmem:[#allocation2 + $0x3e0] sm:$0xff] %v3156
        %3172 = vst [vmem:[#allocation2 + $0x3e8] sm:$0xff] %v3157
        %3173 = vst [vmem:[#allocation2 + $0x3f0] sm:$0xff] %v3158
        %3174 = vst.msk [vmem:[#allocation2 + $0x3f8] sm:$0xff] %vm2268, %v3150
        %v3175 = vld [vmem:[#allocation3 + $0x8] sm:$0xff]
        %v3176 = vld [vmem:[#allocation3 + $0x10] sm:$0xff]
        %v3177 = vld [vmem:[#allocation3 + $0x18] sm:$0xff]
        %v3178 = vld [vmem:[#allocation3 + $0x20] sm:$0xff]
        %v3179 = vld [vmem:[#allocation3 + $0x28] sm:$0xff]
        %v3180 = vld [vmem:[#allocation3 + $0x30] sm:$0xff]
        %v3181 = vld [vmem:[#allocation3 + $0x38] sm:$0xff]
        %v3182 = vld [vmem:[#allocation3 + $0x40] sm:$0xff]
        %3191 = vrot.lane.b32.xlu0 %v3175, 118
        %v3192 = vpop.permute.xlu0 %3191
        %3193 = vrot.lane.b32.xlu0 %v3176, 118
        %v3194 = vpop.permute.xlu0 %3193
        %3195 = vrot.lane.b32.xlu0 %v3177, 118
        %v3196 = vpop.permute.xlu0 %3195
        %3197 = vrot.lane.b32.xlu0 %v3178, 118
        %v3198 = vpop.permute.xlu0 %3197
        %3199 = vrot.lane.b32.xlu0 %v3179, 118
        %v3200 = vpop.permute.xlu0 %3199
        %3201 = vrot.lane.b32.xlu0 %v3180, 118
        %v3202 = vpop.permute.xlu0 %3201
        %3203 = vrot.lane.b32.xlu0 %v3181, 118
        %v3204 = vpop.permute.xlu0 %3203
        %3205 = vrot.lane.b32.xlu0 %v3182, 118
        %v3206 = vpop.permute.xlu0 %3205
        %v3207 = vsel %vm426, %v3192, %v3194
        %v3208 = vsel %vm426, %v3194, %v3196
        %v3209 = vsel %vm426, %v3196, %v3198
        %v3210 = vsel %vm426, %v3198, %v3200
        %v3211 = vsel %vm426, %v3200, %v3202
        %v3212 = vsel %vm426, %v3202, %v3204
        %v3213 = vsel %vm426, %v3204, %v3206
        %3222 = vst [vmem:[#allocation2 + $0x400] sm:$0xff] %v3207
        %3223 = vst [vmem:[#allocation2 + $0x408] sm:$0xff] %v3208
        %3224 = vst [vmem:[#allocation2 + $0x410] sm:$0xff] %v3209
        %3225 = vst [vmem:[#allocation2 + $0x418] sm:$0xff] %v3210
        %3226 = vst [vmem:[#allocation2 + $0x420] sm:$0xff] %v3211
        %3227 = vst [vmem:[#allocation2 + $0x428] sm:$0xff] %v3212
        %3228 = vst [vmem:[#allocation2 + $0x430] sm:$0xff] %v3213
        %3229 = vst.msk [vmem:[#allocation2 + $0x438] sm:$0xff] %vm2268, %v3206
        %v3230 = vld [vmem:[#allocation3 + $0x8] sm:$0xff]
        %v3231 = vld [vmem:[#allocation3 + $0x10] sm:$0xff]
        %v3232 = vld [vmem:[#allocation3 + $0x18] sm:$0xff]
        %v3233 = vld [vmem:[#allocation3 + $0x20] sm:$0xff]
        %v3234 = vld [vmem:[#allocation3 + $0x28] sm:$0xff]
        %v3235 = vld [vmem:[#allocation3 + $0x30] sm:$0xff]
        %v3236 = vld [vmem:[#allocation3 + $0x38] sm:$0xff]
        %v3237 = vld [vmem:[#allocation3 + $0x40] sm:$0xff]
        %3246 = vrot.lane.b32.xlu0 %v3230, 117
        %v3247 = vpop.permute.xlu0 %3246
        %3248 = vrot.lane.b32.xlu0 %v3231, 117
        %v3249 = vpop.permute.xlu0 %3248
        %3250 = vrot.lane.b32.xlu0 %v3232, 117
        %v3251 = vpop.permute.xlu0 %3250
        %3252 = vrot.lane.b32.xlu0 %v3233, 117
        %v3253 = vpop.permute.xlu0 %3252
        %3254 = vrot.lane.b32.xlu0 %v3234, 117
        %v3255 = vpop.permute.xlu0 %3254
        %3256 = vrot.lane.b32.xlu0 %v3235, 117
        %v3257 = vpop.permute.xlu0 %3256
        %3258 = vrot.lane.b32.xlu0 %v3236, 117
        %v3259 = vpop.permute.xlu0 %3258
        %3260 = vrot.lane.b32.xlu0 %v3237, 117
        %v3261 = vpop.permute.xlu0 %3260
        %v3262 = vsel %vm478, %v3247, %v3249
        %v3263 = vsel %vm478, %v3249, %v3251
        %v3264 = vsel %vm478, %v3251, %v3253
        %v3265 = vsel %vm478, %v3253, %v3255
        %v3266 = vsel %vm478, %v3255, %v3257
        %v3267 = vsel %vm478, %v3257, %v3259
        %v3268 = vsel %vm478, %v3259, %v3261
        %3277 = vst [vmem:[#allocation2 + $0x440] sm:$0xff] %v3262
        %3278 = vst [vmem:[#allocation2 + $0x448] sm:$0xff] %v3263
        %3279 = vst [vmem:[#allocation2 + $0x450] sm:$0xff] %v3264
        %3280 = vst [vmem:[#allocation2 + $0x458] sm:$0xff] %v3265
        %3281 = vst [vmem:[#allocation2 + $0x460] sm:$0xff] %v3266
        %3282 = vst [vmem:[#allocation2 + $0x468] sm:$0xff] %v3267
        %3283 = vst [vmem:[#allocation2 + $0x470] sm:$0xff] %v3268
        %3284 = vst.msk [vmem:[#allocation2 + $0x478] sm:$0xff] %vm2268, %v3261
        %v3285 = vld [vmem:[#allocation3 + $0x8] sm:$0xff]
        %v3286 = vld [vmem:[#allocation3 + $0x10] sm:$0xff]
        %v3287 = vld [vmem:[#allocation3 + $0x18] sm:$0xff]
        %v3288 = vld [vmem:[#allocation3 + $0x20] sm:$0xff]
        %v3289 = vld [vmem:[#allocation3 + $0x28] sm:$0xff]
        %v3290 = vld [vmem:[#allocation3 + $0x30] sm:$0xff]
        %v3291 = vld [vmem:[#allocation3 + $0x38] sm:$0xff]
        %v3292 = vld [vmem:[#allocation3 + $0x40] sm:$0xff]
        %v3293 = vld [vmem:[#allocation3 + $0x48] sm:$0xff]
        %3303 = vrot.lane.b32.xlu0 %v3285, 39
        %v3304 = vpop.permute.xlu0 %3303
        %3305 = vrot.lane.b32.xlu0 %v3286, 39
        %v3306 = vpop.permute.xlu0 %3305
        %3307 = vrot.lane.b32.xlu0 %v3287, 39
        %v3308 = vpop.permute.xlu0 %3307
        %3309 = vrot.lane.b32.xlu0 %v3288, 39
        %v3310 = vpop.permute.xlu0 %3309
        %3311 = vrot.lane.b32.xlu0 %v3289, 39
        %v3312 = vpop.permute.xlu0 %3311
        %3313 = vrot.lane.b32.xlu0 %v3290, 39
        %v3314 = vpop.permute.xlu0 %3313
        %3315 = vrot.lane.b32.xlu0 %v3291, 39
        %v3316 = vpop.permute.xlu0 %3315
        %3317 = vrot.lane.b32.xlu0 %v3292, 39
        %v3318 = vpop.permute.xlu0 %3317
        %3319 = vrot.lane.b32.xlu0 %v3293, 39
        %v3320 = vpop.permute.xlu0 %3319
        %vm3321 = vcmask 318464
        %v3322 = vsel %vm3321, %v3304, %v3306
        %v3323 = vsel %vm3321, %v3306, %v3308
        %v3324 = vsel %vm3321, %v3308, %v3310
        %v3325 = vsel %vm3321, %v3310, %v3312
        %v3326 = vsel %vm3321, %v3312, %v3314
        %v3327 = vsel %vm3321, %v3314, %v3316
        %v3328 = vsel %vm3321, %v3316, %v3318
        %v3329 = vsel %vm3321, %v3318, %v3320
        %3338 = vst [vmem:[#allocation2 + $0x480] sm:$0xff] %v3322
        %3339 = vst [vmem:[#allocation2 + $0x488] sm:$0xff] %v3323
        %3340 = vst [vmem:[#allocation2 + $0x490] sm:$0xff] %v3324
        %3341 = vst [vmem:[#allocation2 + $0x498] sm:$0xff] %v3325
        %3342 = vst [vmem:[#allocation2 + $0x4a0] sm:$0xff] %v3326
        %3343 = vst [vmem:[#allocation2 + $0x4a8] sm:$0xff] %v3327
        %3344 = vst [vmem:[#allocation2 + $0x4b0] sm:$0xff] %v3328
        %3345 = vst.msk [vmem:[#allocation2 + $0x4b8] sm:$0xff] %vm2268, %v3329
        %v3346 = vld [vmem:[#allocation3 + $0x8] sm:$0xff]
        %v3347 = vld [vmem:[#allocation3 + $0x10] sm:$0xff]
        %v3348 = vld [vmem:[#allocation3 + $0x18] sm:$0xff]
        %v3349 = vld [vmem:[#allocation3 + $0x20] sm:$0xff]
        %v3350 = vld [vmem:[#allocation3 + $0x28] sm:$0xff]
        %v3351 = vld [vmem:[#allocation3 + $0x30] sm:$0xff]
        %v3352 = vld [vmem:[#allocation3 + $0x38] sm:$0xff]
        %v3353 = vld [vmem:[#allocation3 + $0x40] sm:$0xff]
        %v3354 = vld [vmem:[#allocation3 + $0x48] sm:$0xff]
        %3364 = vrot.lane.b32.xlu0 %v3346, 38
        %v3365 = vpop.permute.xlu0 %3364
        %3366 = vrot.lane.b32.xlu0 %v3347, 38
        %v3367 = vpop.permute.xlu0 %3366
        %3368 = vrot.lane.b32.xlu0 %v3348, 38
        %v3369 = vpop.permute.xlu0 %3368
        %3370 = vrot.lane.b32.xlu0 %v3349, 38
        %v3371 = vpop.permute.xlu0 %3370
        %3372 = vrot.lane.b32.xlu0 %v3350, 38
        %v3373 = vpop.permute.xlu0 %3372
        %3374 = vrot.lane.b32.xlu0 %v3351, 38
        %v3375 = vpop.permute.xlu0 %3374
        %3376 = vrot.lane.b32.xlu0 %v3352, 38
        %v3377 = vpop.permute.xlu0 %3376
        %3378 = vrot.lane.b32.xlu0 %v3353, 38
        %v3379 = vpop.permute.xlu0 %3378
        %3380 = vrot.lane.b32.xlu0 %v3354, 38
        %v3381 = vpop.permute.xlu0 %3380
        %vm3382 = vcmask 310272
        %v3383 = vsel %vm3382, %v3365, %v3367
        %v3384 = vsel %vm3382, %v3367, %v3369
        %v3385 = vsel %vm3382, %v3369, %v3371
        %v3386 = vsel %vm3382, %v3371, %v3373
        %v3387 = vsel %vm3382, %v3373, %v3375
        %v3388 = vsel %vm3382, %v3375, %v3377
        %v3389 = vsel %vm3382, %v3377, %v3379
        %v3390 = vsel %vm3382, %v3379, %v3381
        %3399 = vst [vmem:[#allocation2 + $0x4c0] sm:$0xff] %v3383
        %3400 = vst [vmem:[#allocation2 + $0x4c8] sm:$0xff] %v3384
        %3401 = vst [vmem:[#allocation2 + $0x4d0] sm:$0xff] %v3385
        %3402 = vst [vmem:[#allocation2 + $0x4d8] sm:$0xff] %v3386
        %3403 = vst [vmem:[#allocation2 + $0x4e0] sm:$0xff] %v3387
        %3404 = vst [vmem:[#allocation2 + $0x4e8] sm:$0xff] %v3388
        %3405 = vst [vmem:[#allocation2 + $0x4f0] sm:$0xff] %v3389
        %3406 = vst.msk [vmem:[#allocation2 + $0x4f8] sm:$0xff] %vm2268, %v3390
        %v3407 = vld [vmem:[#allocation3 + $0x8] sm:$0xff]
        %v3408 = vld [vmem:[#allocation3 + $0x10] sm:$0xff]
        %v3409 = vld [vmem:[#allocation3 + $0x18] sm:$0xff]
        %v3410 = vld [vmem:[#allocation3 + $0x20] sm:$0xff]
        %v3411 = vld [vmem:[#allocation3 + $0x28] sm:$0xff]
        %v3412 = vld [vmem:[#allocation3 + $0x30] sm:$0xff]
        %v3413 = vld [vmem:[#allocation3 + $0x38] sm:$0xff]
        %v3414 = vld [vmem:[#allocation3 + $0x40] sm:$0xff]
        %v3415 = vld [vmem:[#allocation3 + $0x48] sm:$0xff]
        %3425 = vrot.lane.b32.xlu0 %v3407, 37
        %v3426 = vpop.permute.xlu0 %3425
        %3427 = vrot.lane.b32.xlu0 %v3408, 37
        %v3428 = vpop.permute.xlu0 %3427
        %3429 = vrot.lane.b32.xlu0 %v3409, 37
        %v3430 = vpop.permute.xlu0 %3429
        %3431 = vrot.lane.b32.xlu0 %v3410, 37
        %v3432 = vpop.permute.xlu0 %3431
        %3433 = vrot.lane.b32.xlu0 %v3411, 37
        %v3434 = vpop.permute.xlu0 %3433
        %3435 = vrot.lane.b32.xlu0 %v3412, 37
        %v3436 = vpop.permute.xlu0 %3435
        %3437 = vrot.lane.b32.xlu0 %v3413, 37
        %v3438 = vpop.permute.xlu0 %3437
        %3439 = vrot.lane.b32.xlu0 %v3414, 37
        %v3440 = vpop.permute.xlu0 %3439
        %3441 = vrot.lane.b32.xlu0 %v3415, 37
        %v3442 = vpop.permute.xlu0 %3441
        %vm3443 = vcmask 302080
        %v3444 = vsel %vm3443, %v3426, %v3428
        %v3445 = vsel %vm3443, %v3428, %v3430
        %v3446 = vsel %vm3443, %v3430, %v3432
        %v3447 = vsel %vm3443, %v3432, %v3434
        %v3448 = vsel %vm3443, %v3434, %v3436
        %v3449 = vsel %vm3443, %v3436, %v3438
        %v3450 = vsel %vm3443, %v3438, %v3440
        %v3451 = vsel %vm3443, %v3440, %v3442
        %3460 = vst [vmem:[#allocation2 + $0x500] sm:$0xff] %v3444
        %3461 = vst [vmem:[#allocation2 + $0x508] sm:$0xff] %v3445
        %3462 = vst [vmem:[#allocation2 + $0x510] sm:$0xff] %v3446
        %3463 = vst [vmem:[#allocation2 + $0x518] sm:$0xff] %v3447
        %3464 = vst [vmem:[#allocation2 + $0x520] sm:$0xff] %v3448
        %3465 = vst [vmem:[#allocation2 + $0x528] sm:$0xff] %v3449
        %3466 = vst [vmem:[#allocation2 + $0x530] sm:$0xff] %v3450
        %3467 = vst.msk [vmem:[#allocation2 + $0x538] sm:$0xff] %vm2268, %v3451
        %v3468 = vld [vmem:[#allocation3 + $0x8] sm:$0xff]
        %v3469 = vld [vmem:[#allocation3 + $0x10] sm:$0xff]
        %v3470 = vld [vmem:[#allocation3 + $0x18] sm:$0xff]
        %v3471 = vld [vmem:[#allocation3 + $0x20] sm:$0xff]
        %v3472 = vld [vmem:[#allocation3 + $0x28] sm:$0xff]
        %v3473 = vld [vmem:[#allocation3 + $0x30] sm:$0xff]
        %v3474 = vld [vmem:[#allocation3 + $0x38] sm:$0xff]
        %v3475 = vld [vmem:[#allocation3 + $0x40] sm:$0xff]
        %v3476 = vld [vmem:[#allocation3 + $0x48] sm:$0xff]
        %3486 = vrot.lane.b32.xlu0 %v3468, 29
        %v3487 = vpop.permute.xlu0 %3486
        %3488 = vrot.lane.b32.xlu0 %v3469, 29
        %v3489 = vpop.permute.xlu0 %3488
        %3490 = vrot.lane.b32.xlu0 %v3470, 29
        %v3491 = vpop.permute.xlu0 %3490
        %3492 = vrot.lane.b32.xlu0 %v3471, 29
        %v3493 = vpop.permute.xlu0 %3492
        %3494 = vrot.lane.b32.xlu0 %v3472, 29
        %v3495 = vpop.permute.xlu0 %3494
        %3496 = vrot.lane.b32.xlu0 %v3473, 29
        %v3497 = vpop.permute.xlu0 %3496
        %3498 = vrot.lane.b32.xlu0 %v3474, 29
        %v3499 = vpop.permute.xlu0 %3498
        %3500 = vrot.lane.b32.xlu0 %v3475, 29
        %v3501 = vpop.permute.xlu0 %3500
        %3502 = vrot.lane.b32.xlu0 %v3476, 29
        %v3503 = vpop.permute.xlu0 %3502
        %vm3504 = vcmask 236544
        %v3505 = vsel %vm3504, %v3487, %v3489
        %v3506 = vsel %vm3504, %v3489, %v3491
        %v3507 = vsel %vm3504, %v3491, %v3493
        %v3508 = vsel %vm3504, %v3493, %v3495
        %v3509 = vsel %vm3504, %v3495, %v3497
        %v3510 = vsel %vm3504, %v3497, %v3499
        %v3511 = vsel %vm3504, %v3499, %v3501
        %v3512 = vsel %vm3504, %v3501, %v3503
        %3521 = vst [vmem:[#allocation2 + $0x540] sm:$0xff] %v3505
        %3522 = vst [vmem:[#allocation2 + $0x548] sm:$0xff] %v3506
        %3523 = vst [vmem:[#allocation2 + $0x550] sm:$0xff] %v3507
        %3524 = vst [vmem:[#allocation2 + $0x558] sm:$0xff] %v3508
        %3525 = vst [vmem:[#allocation2 + $0x560] sm:$0xff] %v3509
        %3526 = vst [vmem:[#allocation2 + $0x568] sm:$0xff] %v3510
        %3527 = vst [vmem:[#allocation2 + $0x570] sm:$0xff] %v3511
        %3528 = vst.msk [vmem:[#allocation2 + $0x578] sm:$0xff] %vm2268, %v3512
        %v3529 = vld [vmem:[#allocation3 + $0x8] sm:$0xff]
        %v3530 = vld [vmem:[#allocation3 + $0x10] sm:$0xff]
        %v3531 = vld [vmem:[#allocation3 + $0x18] sm:$0xff]
        %v3532 = vld [vmem:[#allocation3 + $0x20] sm:$0xff]
        %v3533 = vld [vmem:[#allocation3 + $0x28] sm:$0xff]
        %v3534 = vld [vmem:[#allocation3 + $0x30] sm:$0xff]
        %v3535 = vld [vmem:[#allocation3 + $0x38] sm:$0xff]
        %v3536 = vld [vmem:[#allocation3 + $0x40] sm:$0xff]
        %v3537 = vld [vmem:[#allocation3 + $0x48] sm:$0xff]
        %3547 = vrot.lane.b32.xlu0 %v3529, 28
        %v3548 = vpop.permute.xlu0 %3547
        %3549 = vrot.lane.b32.xlu0 %v3530, 28
        %v3550 = vpop.permute.xlu0 %3549
        %3551 = vrot.lane.b32.xlu0 %v3531, 28
        %v3552 = vpop.permute.xlu0 %3551
        %3553 = vrot.lane.b32.xlu0 %v3532, 28
        %v3554 = vpop.permute.xlu0 %3553
        %3555 = vrot.lane.b32.xlu0 %v3533, 28
        %v3556 = vpop.permute.xlu0 %3555
        %3557 = vrot.lane.b32.xlu0 %v3534, 28
        %v3558 = vpop.permute.xlu0 %3557
        %3559 = vrot.lane.b32.xlu0 %v3535, 28
        %v3560 = vpop.permute.xlu0 %3559
        %3561 = vrot.lane.b32.xlu0 %v3536, 28
        %v3562 = vpop.permute.xlu0 %3561
        %3563 = vrot.lane.b32.xlu0 %v3537, 28
        %v3564 = vpop.permute.xlu0 %3563
        %v3565 = vsel %vm743, %v3548, %v3550
        %v3566 = vsel %vm743, %v3550, %v3552
        %v3567 = vsel %vm743, %v3552, %v3554
        %v3568 = vsel %vm743, %v3554, %v3556
        %v3569 = vsel %vm743, %v3556, %v3558
        %v3570 = vsel %vm743, %v3558, %v3560
        %v3571 = vsel %vm743, %v3560, %v3562
        %v3572 = vsel %vm743, %v3562, %v3564
        %3581 = vst [vmem:[#allocation2 + $0x580] sm:$0xff] %v3565
        %3582 = vst [vmem:[#allocation2 + $0x588] sm:$0xff] %v3566
        %3583 = vst [vmem:[#allocation2 + $0x590] sm:$0xff] %v3567
        %3584 = vst [vmem:[#allocation2 + $0x598] sm:$0xff] %v3568
        %3585 = vst [vmem:[#allocation2 + $0x5a0] sm:$0xff] %v3569
        %3586 = vst [vmem:[#allocation2 + $0x5a8] sm:$0xff] %v3570
        %3587 = vst [vmem:[#allocation2 + $0x5b0] sm:$0xff] %v3571
        %3588 = vst.msk [vmem:[#allocation2 + $0x5b8] sm:$0xff] %vm2268, %v3572
        %v3589 = vld [vmem:[#allocation3 + $0x8] sm:$0xff]
        %v3590 = vld [vmem:[#allocation3 + $0x10] sm:$0xff]
        %v3591 = vld [vmem:[#allocation3 + $0x18] sm:$0xff]
        %v3592 = vld [vmem:[#allocation3 + $0x20] sm:$0xff]
        %v3593 = vld [vmem:[#allocation3 + $0x28] sm:$0xff]
        %v3594 = vld [vmem:[#allocation3 + $0x30] sm:$0xff]
        %v3595 = vld [vmem:[#allocation3 + $0x38] sm:$0xff]
        %v3596 = vld [vmem:[#allocation3 + $0x40] sm:$0xff]
        %v3597 = vld [vmem:[#allocation3 + $0x48] sm:$0xff]
        %3607 = vrot.lane.b32.xlu0 %v3589, 27
        %v3608 = vpop.permute.xlu0 %3607
        %3609 = vrot.lane.b32.xlu0 %v3590, 27
        %v3610 = vpop.permute.xlu0 %3609
        %3611 = vrot.lane.b32.xlu0 %v3591, 27
        %v3612 = vpop.permute.xlu0 %3611
        %3613 = vrot.lane.b32.xlu0 %v3592, 27
        %v3614 = vpop.permute.xlu0 %3613
        %3615 = vrot.lane.b32.xlu0 %v3593, 27
        %v3616 = vpop.permute.xlu0 %3615
        %3617 = vrot.lane.b32.xlu0 %v3594, 27
        %v3618 = vpop.permute.xlu0 %3617
        %3619 = vrot.lane.b32.xlu0 %v3595, 27
        %v3620 = vpop.permute.xlu0 %3619
        %3621 = vrot.lane.b32.xlu0 %v3596, 27
        %v3622 = vpop.permute.xlu0 %3621
        %3623 = vrot.lane.b32.xlu0 %v3597, 27
        %v3624 = vpop.permute.xlu0 %3623
        %v3625 = vsel %vm800, %v3608, %v3610
        %v3626 = vsel %vm800, %v3610, %v3612
        %v3627 = vsel %vm800, %v3612, %v3614
        %v3628 = vsel %vm800, %v3614, %v3616
        %v3629 = vsel %vm800, %v3616, %v3618
        %v3630 = vsel %vm800, %v3618, %v3620
        %v3631 = vsel %vm800, %v3620, %v3622
        %v3632 = vsel %vm800, %v3622, %v3624
        %3641 = vst [vmem:[#allocation2 + $0x5c0] sm:$0xff] %v3625
        %3642 = vst [vmem:[#allocation2 + $0x5c8] sm:$0xff] %v3626
        %3643 = vst [vmem:[#allocation2 + $0x5d0] sm:$0xff] %v3627
        %3644 = vst [vmem:[#allocation2 + $0x5d8] sm:$0xff] %v3628
        %3645 = vst [vmem:[#allocation2 + $0x5e0] sm:$0xff] %v3629
        %3646 = vst [vmem:[#allocation2 + $0x5e8] sm:$0xff] %v3630
        %3647 = vst [vmem:[#allocation2 + $0x5f0] sm:$0xff] %v3631
        %3648 = vst.msk [vmem:[#allocation2 + $0x5f8] sm:$0xff] %vm2268, %v3632
        %v3649 = vld [vmem:[#allocation3 + $0x8] sm:$0xff]
        %v3650 = vld [vmem:[#allocation3 + $0x10] sm:$0xff]
        %v3651 = vld [vmem:[#allocation3 + $0x18] sm:$0xff]
        %v3652 = vld [vmem:[#allocation3 + $0x20] sm:$0xff]
        %v3653 = vld [vmem:[#allocation3 + $0x28] sm:$0xff]
        %v3654 = vld [vmem:[#allocation3 + $0x30] sm:$0xff]
        %v3655 = vld [vmem:[#allocation3 + $0x38] sm:$0xff]
        %v3656 = vld [vmem:[#allocation3 + $0x40] sm:$0xff]
        %v3657 = vld [vmem:[#allocation3 + $0x48] sm:$0xff]
        %3667 = vrot.lane.b32.xlu0 %v3649, 19
        %v3668 = vpop.permute.xlu0 %3667
        %3669 = vrot.lane.b32.xlu0 %v3650, 19
        %v3670 = vpop.permute.xlu0 %3669
        %3671 = vrot.lane.b32.xlu0 %v3651, 19
        %v3672 = vpop.permute.xlu0 %3671
        %3673 = vrot.lane.b32.xlu0 %v3652, 19
        %v3674 = vpop.permute.xlu0 %3673
        %3675 = vrot.lane.b32.xlu0 %v3653, 19
        %v3676 = vpop.permute.xlu0 %3675
        %3677 = vrot.lane.b32.xlu0 %v3654, 19
        %v3678 = vpop.permute.xlu0 %3677
        %3679 = vrot.lane.b32.xlu0 %v3655, 19
        %v3680 = vpop.permute.xlu0 %3679
        %3681 = vrot.lane.b32.xlu0 %v3656, 19
        %v3682 = vpop.permute.xlu0 %3681
        %3683 = vrot.lane.b32.xlu0 %v3657, 19
        %v3684 = vpop.permute.xlu0 %3683
        %vm3685 = vcmask 154624
        %v3686 = vsel %vm3685, %v3668, %v3670
        %v3687 = vsel %vm3685, %v3670, %v3672
        %v3688 = vsel %vm3685, %v3672, %v3674
        %v3689 = vsel %vm3685, %v3674, %v3676
        %v3690 = vsel %vm3685, %v3676, %v3678
        %v3691 = vsel %vm3685, %v3678, %v3680
        %v3692 = vsel %vm3685, %v3680, %v3682
        %v3693 = vsel %vm3685, %v3682, %v3684
        %3702 = vst [vmem:[#allocation2 + $0x600] sm:$0xff] %v3686
        %3703 = vst [vmem:[#allocation2 + $0x608] sm:$0xff] %v3687
        %3704 = vst [vmem:[#allocation2 + $0x610] sm:$0xff] %v3688
        %3705 = vst [vmem:[#allocation2 + $0x618] sm:$0xff] %v3689
        %3706 = vst [vmem:[#allocation2 + $0x620] sm:$0xff] %v3690
        %3707 = vst [vmem:[#allocation2 + $0x628] sm:$0xff] %v3691
        %3708 = vst [vmem:[#allocation2 + $0x630] sm:$0xff] %v3692
        %3709 = vst.msk [vmem:[#allocation2 + $0x638] sm:$0xff] %vm2268, %v3693
        %v3710 = vld [vmem:[#allocation3 + $0x8] sm:$0xff]
        %v3711 = vld [vmem:[#allocation3 + $0x10] sm:$0xff]
        %v3712 = vld [vmem:[#allocation3 + $0x18] sm:$0xff]
        %v3713 = vld [vmem:[#allocation3 + $0x20] sm:$0xff]
        %v3714 = vld [vmem:[#allocation3 + $0x28] sm:$0xff]
        %v3715 = vld [vmem:[#allocation3 + $0x30] sm:$0xff]
        %v3716 = vld [vmem:[#allocation3 + $0x38] sm:$0xff]
        %v3717 = vld [vmem:[#allocation3 + $0x40] sm:$0xff]
        %v3718 = vld [vmem:[#allocation3 + $0x48] sm:$0xff]
        %3728 = vrot.lane.b32.xlu0 %v3710, 18
        %v3729 = vpop.permute.xlu0 %3728
        %3730 = vrot.lane.b32.xlu0 %v3711, 18
        %v3731 = vpop.permute.xlu0 %3730
        %3732 = vrot.lane.b32.xlu0 %v3712, 18
        %v3733 = vpop.permute.xlu0 %3732
        %3734 = vrot.lane.b32.xlu0 %v3713, 18
        %v3735 = vpop.permute.xlu0 %3734
        %3736 = vrot.lane.b32.xlu0 %v3714, 18
        %v3737 = vpop.permute.xlu0 %3736
        %3738 = vrot.lane.b32.xlu0 %v3715, 18
        %v3739 = vpop.permute.xlu0 %3738
        %3740 = vrot.lane.b32.xlu0 %v3716, 18
        %v3741 = vpop.permute.xlu0 %3740
        %3742 = vrot.lane.b32.xlu0 %v3717, 18
        %v3743 = vpop.permute.xlu0 %3742
        %3744 = vrot.lane.b32.xlu0 %v3718, 18
        %v3745 = vpop.permute.xlu0 %3744
        %v3746 = vsel %vm915, %v3729, %v3731
        %v3747 = vsel %vm915, %v3731, %v3733
        %v3748 = vsel %vm915, %v3733, %v3735
        %v3749 = vsel %vm915, %v3735, %v3737
        %v3750 = vsel %vm915, %v3737, %v3739
        %v3751 = vsel %vm915, %v3739, %v3741
        %v3752 = vsel %vm915, %v3741, %v3743
        %v3753 = vsel %vm915, %v3743, %v3745
        %3762 = vst [vmem:[#allocation2 + $0x640] sm:$0xff] %v3746
        %3763 = vst [vmem:[#allocation2 + $0x648] sm:$0xff] %v3747
        %3764 = vst [vmem:[#allocation2 + $0x650] sm:$0xff] %v3748
        %3765 = vst [vmem:[#allocation2 + $0x658] sm:$0xff] %v3749
        %3766 = vst [vmem:[#allocation2 + $0x660] sm:$0xff] %v3750
        %3767 = vst [vmem:[#allocation2 + $0x668] sm:$0xff] %v3751
        %3768 = vst [vmem:[#allocation2 + $0x670] sm:$0xff] %v3752
        %3769 = vst.msk [vmem:[#allocation2 + $0x678] sm:$0xff] %vm2268, %v3753
        %v3770 = vld [vmem:[#allocation3 + $0x8] sm:$0xff]
        %v3771 = vld [vmem:[#allocation3 + $0x10] sm:$0xff]
        %v3772 = vld [vmem:[#allocation3 + $0x18] sm:$0xff]
        %v3773 = vld [vmem:[#allocation3 + $0x20] sm:$0xff]
        %v3774 = vld [vmem:[#allocation3 + $0x28] sm:$0xff]
        %v3775 = vld [vmem:[#allocation3 + $0x30] sm:$0xff]
        %v3776 = vld [vmem:[#allocation3 + $0x38] sm:$0xff]
        %v3777 = vld [vmem:[#allocation3 + $0x40] sm:$0xff]
        %v3778 = vld [vmem:[#allocation3 + $0x48] sm:$0xff]
        %3788 = vrot.lane.b32.xlu0 %v3770, 17
        %v3789 = vpop.permute.xlu0 %3788
        %3790 = vrot.lane.b32.xlu0 %v3771, 17
        %v3791 = vpop.permute.xlu0 %3790
        %3792 = vrot.lane.b32.xlu0 %v3772, 17
        %v3793 = vpop.permute.xlu0 %3792
        %3794 = vrot.lane.b32.xlu0 %v3773, 17
        %v3795 = vpop.permute.xlu0 %3794
        %3796 = vrot.lane.b32.xlu0 %v3774, 17
        %v3797 = vpop.permute.xlu0 %3796
        %3798 = vrot.lane.b32.xlu0 %v3775, 17
        %v3799 = vpop.permute.xlu0 %3798
        %3800 = vrot.lane.b32.xlu0 %v3776, 17
        %v3801 = vpop.permute.xlu0 %3800
        %3802 = vrot.lane.b32.xlu0 %v3777, 17
        %v3803 = vpop.permute.xlu0 %3802
        %3804 = vrot.lane.b32.xlu0 %v3778, 17
        %v3805 = vpop.permute.xlu0 %3804
        %v3806 = vsel %vm973, %v3789, %v3791
        %v3807 = vsel %vm973, %v3791, %v3793
        %v3808 = vsel %vm973, %v3793, %v3795
        %v3809 = vsel %vm973, %v3795, %v3797
        %v3810 = vsel %vm973, %v3797, %v3799
        %v3811 = vsel %vm973, %v3799, %v3801
        %v3812 = vsel %vm973, %v3801, %v3803
        %v3813 = vsel %vm973, %v3803, %v3805
        %3822 = vst [vmem:[#allocation2 + $0x680] sm:$0xff] %v3806
        %3823 = vst [vmem:[#allocation2 + $0x688] sm:$0xff] %v3807
        %3824 = vst [vmem:[#allocation2 + $0x690] sm:$0xff] %v3808
        %3825 = vst [vmem:[#allocation2 + $0x698] sm:$0xff] %v3809
        %3826 = vst [vmem:[#allocation2 + $0x6a0] sm:$0xff] %v3810
        %3827 = vst [vmem:[#allocation2 + $0x6a8] sm:$0xff] %v3811
        %3828 = vst [vmem:[#allocation2 + $0x6b0] sm:$0xff] %v3812
        %3829 = vst.msk [vmem:[#allocation2 + $0x6b8] sm:$0xff] %vm2268, %v3813
        %v3830 = vld [vmem:[%s3] sm:$0xff]
        %v3831 = vld [vmem:[%s3 + $0x8] sm:$0xff]
        %v3832 = vld [vmem:[#allocation2] sm:$0xff]
        %v3833 = vld [vmem:[#allocation2 + $0x8] sm:$0xff]
        %v3834 = vld [vmem:[#allocation2 + $0x10] sm:$0xff]
        %v3835 = vld [vmem:[#allocation2 + $0x18] sm:$0xff]
        %v3836 = vld [vmem:[#allocation2 + $0x20] sm:$0xff]
        %v3837 = vld [vmem:[#allocation2 + $0x28] sm:$0xff]
        %v3838 = vld [vmem:[#allocation2 + $0x30] sm:$0xff]
        %v3839 = vld [vmem:[#allocation2 + $0x38] sm:$0xff]
        %v3840 = vld [vmem:[#allocation2 + $0x40] sm:$0xff]
        %v3841 = vld [vmem:[#allocation2 + $0x48] sm:$0xff]
        %v3842 = vld [vmem:[#allocation2 + $0x50] sm:$0xff]
        %v3843 = vld [vmem:[#allocation2 + $0x58] sm:$0xff]
        %v3844 = vld [vmem:[#allocation2 + $0x60] sm:$0xff]
        %v3845 = vld [vmem:[#allocation2 + $0x68] sm:$0xff]
        %v3846 = vld [vmem:[#allocation2 + $0x70] sm:$0xff]
        %v3847 = vld [vmem:[#allocation2 + $0x78] sm:$0xff]
        %v3848 = vld [vmem:[#allocation2 + $0x80] sm:$0xff]
        %v3849 = vld [vmem:[#allocation2 + $0x88] sm:$0xff]
        %v3850 = vld [vmem:[#allocation2 + $0x90] sm:$0xff]
        %v3851 = vld [vmem:[#allocation2 + $0x98] sm:$0xff]
        %v3852 = vld [vmem:[#allocation2 + $0xa0] sm:$0xff]
        %v3853 = vld [vmem:[#allocation2 + $0xa8] sm:$0xff]
        %v3854 = vld [vmem:[#allocation2 + $0xb0] sm:$0xff]
        %v3855 = vld [vmem:[#allocation2 + $0xb8] sm:$0xff]
        %v3856 = vld [vmem:[#allocation2 + $0xc0] sm:$0xff]
        %v3857 = vld [vmem:[#allocation2 + $0xc8] sm:$0xff]
        %v3858 = vld [vmem:[#allocation2 + $0xd0] sm:$0xff]
        %v3859 = vld [vmem:[#allocation2 + $0xd8] sm:$0xff]
        %v3860 = vld [vmem:[#allocation2 + $0xe0] sm:$0xff]
        %v3861 = vld [vmem:[#allocation2 + $0xe8] sm:$0xff]
        %v3862 = vld [vmem:[#allocation2 + $0xf0] sm:$0xff]
        %v3863 = vld [vmem:[#allocation2 + $0xf8] sm:$0xff]
        %v3864 = vld [vmem:[#allocation2 + $0x100] sm:$0xff]
        %v3865 = vld [vmem:[#allocation2 + $0x108] sm:$0xff]
        %v3866 = vld [vmem:[#allocation2 + $0x110] sm:$0xff]
        %v3867 = vld [vmem:[#allocation2 + $0x118] sm:$0xff]
        %v3868 = vld [vmem:[#allocation2 + $0x120] sm:$0xff]
        %v3869 = vld [vmem:[#allocation2 + $0x128] sm:$0xff]
        %v3870 = vld [vmem:[#allocation2 + $0x130] sm:$0xff]
        %v3871 = vld [vmem:[#allocation2 + $0x138] sm:$0xff]
        %v3872 = vld [vmem:[#allocation2 + $0x140] sm:$0xff]
        %v3873 = vld [vmem:[#allocation2 + $0x148] sm:$0xff]
        %v3874 = vld [vmem:[#allocation2 + $0x150] sm:$0xff]
        %v3875 = vld [vmem:[#allocation2 + $0x158] sm:$0xff]
        %v3876 = vld [vmem:[#allocation2 + $0x160] sm:$0xff]
        %v3877 = vld [vmem:[#allocation2 + $0x168] sm:$0xff]
        %v3878 = vld [vmem:[#allocation2 + $0x170] sm:$0xff]
        %v3879 = vld [vmem:[#allocation2 + $0x178] sm:$0xff]
        %v3880 = vld [vmem:[#allocation2 + $0x180] sm:$0xff]
        %v3881 = vld [vmem:[#allocation2 + $0x188] sm:$0xff]
        %v3882 = vld [vmem:[#allocation2 + $0x190] sm:$0xff]
        %v3883 = vld [vmem:[#allocation2 + $0x198] sm:$0xff]
        %v3884 = vld [vmem:[#allocation2 + $0x1a0] sm:$0xff]
        %v3885 = vld [vmem:[#allocation2 + $0x1a8] sm:$0xff]
        %v3886 = vld [vmem:[#allocation2 + $0x1b0] sm:$0xff]
        %v3887 = vld [vmem:[#allocation2 + $0x1b8] sm:$0xff]
        %v3888 = vld [vmem:[#allocation2 + $0x1c0] sm:$0xff]
        %v3889 = vld [vmem:[#allocation2 + $0x1c8] sm:$0xff]
        %v3890 = vld [vmem:[#allocation2 + $0x1d0] sm:$0xff]
        %v3891 = vld [vmem:[#allocation2 + $0x1d8] sm:$0xff]
        %v3892 = vld [vmem:[#allocation2 + $0x1e0] sm:$0xff]
        %v3893 = vld [vmem:[#allocation2 + $0x1e8] sm:$0xff]
        %v3894 = vld [vmem:[#allocation2 + $0x1f0] sm:$0xff]
        %v3895 = vld [vmem:[#allocation2 + $0x1f8] sm:$0xff]
        %v3896 = vld [vmem:[#allocation2 + $0x200] sm:$0xff]
        %v3897 = vld [vmem:[#allocation2 + $0x208] sm:$0xff]
        %v3898 = vld [vmem:[#allocation2 + $0x210] sm:$0xff]
        %v3899 = vld [vmem:[#allocation2 + $0x218] sm:$0xff]
        %v3900 = vld [vmem:[#allocation2 + $0x220] sm:$0xff]
        %v3901 = vld [vmem:[#allocation2 + $0x228] sm:$0xff]
        %v3902 = vld [vmem:[#allocation2 + $0x230] sm:$0xff]
        %v3903 = vld [vmem:[#allocation2 + $0x238] sm:$0xff]
        %v3904 = vld [vmem:[#allocation2 + $0x240] sm:$0xff]
        %v3905 = vld [vmem:[#allocation2 + $0x248] sm:$0xff]
        %v3906 = vld [vmem:[#allocation2 + $0x250] sm:$0xff]
        %v3907 = vld [vmem:[#allocation2 + $0x258] sm:$0xff]
        %v3908 = vld [vmem:[#allocation2 + $0x260] sm:$0xff]
        %v3909 = vld [vmem:[#allocation2 + $0x268] sm:$0xff]
        %v3910 = vld [vmem:[#allocation2 + $0x270] sm:$0xff]
        %v3911 = vld [vmem:[#allocation2 + $0x278] sm:$0xff]
        %v3912 = vld [vmem:[#allocation2 + $0x280] sm:$0xff]
        %v3913 = vld [vmem:[#allocation2 + $0x288] sm:$0xff]
        %v3914 = vld [vmem:[#allocation2 + $0x290] sm:$0xff]
        %v3915 = vld [vmem:[#allocation2 + $0x298] sm:$0xff]
        %v3916 = vld [vmem:[#allocation2 + $0x2a0] sm:$0xff]
        %v3917 = vld [vmem:[#allocation2 + $0x2a8] sm:$0xff]
        %v3918 = vld [vmem:[#allocation2 + $0x2b0] sm:$0xff]
        %v3919 = vld [vmem:[#allocation2 + $0x2b8] sm:$0xff]
        %v3920 = vld [vmem:[#allocation2 + $0x2c0] sm:$0xff]
        %v3921 = vld [vmem:[#allocation2 + $0x2c8] sm:$0xff]
        %v3922 = vld [vmem:[#allocation2 + $0x2d0] sm:$0xff]
        %v3923 = vld [vmem:[#allocation2 + $0x2d8] sm:$0xff]
        %v3924 = vld [vmem:[#allocation2 + $0x2e0] sm:$0xff]
        %v3925 = vld [vmem:[#allocation2 + $0x2e8] sm:$0xff]
        %v3926 = vld [vmem:[#allocation2 + $0x2f0] sm:$0xff]
        %v3927 = vld [vmem:[#allocation2 + $0x2f8] sm:$0xff]
        %v3928 = vld [vmem:[#allocation2 + $0x300] sm:$0xff]
        %v3929 = vld [vmem:[#allocation2 + $0x308] sm:$0xff]
        %v3930 = vld [vmem:[#allocation2 + $0x310] sm:$0xff]
        %v3931 = vld [vmem:[#allocation2 + $0x318] sm:$0xff]
        %v3932 = vld [vmem:[#allocation2 + $0x320] sm:$0xff]
        %v3933 = vld [vmem:[#allocation2 + $0x328] sm:$0xff]
        %v3934 = vld [vmem:[#allocation2 + $0x330] sm:$0xff]
        %v3935 = vld [vmem:[#allocation2 + $0x338] sm:$0xff]
        %v3936 = vld [vmem:[#allocation2 + $0x340] sm:$0xff]
        %v3937 = vld [vmem:[#allocation2 + $0x348] sm:$0xff]
        %v3938 = vld [vmem:[#allocation2 + $0x350] sm:$0xff]
        %v3939 = vld [vmem:[#allocation2 + $0x358] sm:$0xff]
        %v3940 = vld [vmem:[#allocation2 + $0x360] sm:$0xff]
        %v3941 = vld [vmem:[#allocation2 + $0x368] sm:$0xff]
        %v3942 = vld [vmem:[#allocation2 + $0x370] sm:$0xff]
        %v3943 = vld [vmem:[#allocation2 + $0x378] sm:$0xff]
        %v3944 = vld [vmem:[#allocation2 + $0x380] sm:$0xff]
        %v3945 = vld [vmem:[#allocation2 + $0x388] sm:$0xff]
        %v3946 = vld [vmem:[#allocation2 + $0x390] sm:$0xff]
        %v3947 = vld [vmem:[#allocation2 + $0x398] sm:$0xff]
        %v3948 = vld [vmem:[#allocation2 + $0x3a0] sm:$0xff]
        %v3949 = vld [vmem:[#allocation2 + $0x3a8] sm:$0xff]
        %v3950 = vld [vmem:[#allocation2 + $0x3b0] sm:$0xff]
        %v3951 = vld [vmem:[#allocation2 + $0x3b8] sm:$0xff]
        %v3952 = vld [vmem:[#allocation2 + $0x3c0] sm:$0xff]
        %v3953 = vld [vmem:[#allocation2 + $0x3c8] sm:$0xff]
        %v3954 = vld [vmem:[#allocation2 + $0x3d0] sm:$0xff]
        %v3955 = vld [vmem:[#allocation2 + $0x3d8] sm:$0xff]
        %v3956 = vld [vmem:[#allocation2 + $0x3e0] sm:$0xff]
        %v3957 = vld [vmem:[#allocation2 + $0x3e8] sm:$0xff]
        %v3958 = vld [vmem:[#allocation2 + $0x3f0] sm:$0xff]
        %v3959 = vld [vmem:[#allocation2 + $0x3f8] sm:$0xff]
        %v3960 = vld [vmem:[#allocation2 + $0x400] sm:$0xff]
        %v3961 = vld [vmem:[#allocation2 + $0x408] sm:$0xff]
        %v3962 = vld [vmem:[#allocation2 + $0x410] sm:$0xff]
        %v3963 = vld [vmem:[#allocation2 + $0x418] sm:$0xff]
        %v3964 = vld [vmem:[#allocation2 + $0x420] sm:$0xff]
        %v3965 = vld [vmem:[#allocation2 + $0x428] sm:$0xff]
        %v3966 = vld [vmem:[#allocation2 + $0x430] sm:$0xff]
        %v3967 = vld [vmem:[#allocation2 + $0x438] sm:$0xff]
        %v3968 = vld [vmem:[#allocation2 + $0x440] sm:$0xff]
        %v3969 = vld [vmem:[#allocation2 + $0x448] sm:$0xff]
        %v3970 = vld [vmem:[#allocation2 + $0x450] sm:$0xff]
        %v3971 = vld [vmem:[#allocation2 + $0x458] sm:$0xff]
        %v3972 = vld [vmem:[#allocation2 + $0x460] sm:$0xff]
        %v3973 = vld [vmem:[#allocation2 + $0x468] sm:$0xff]
        %v3974 = vld [vmem:[#allocation2 + $0x470] sm:$0xff]
        %v3975 = vld [vmem:[#allocation2 + $0x478] sm:$0xff]
        %v3976 = vld [vmem:[#allocation2 + $0x480] sm:$0xff]
        %v3977 = vld [vmem:[#allocation2 + $0x488] sm:$0xff]
        %v3978 = vld [vmem:[#allocation2 + $0x490] sm:$0xff]
        %v3979 = vld [vmem:[#allocation2 + $0x498] sm:$0xff]
        %v3980 = vld [vmem:[#allocation2 + $0x4a0] sm:$0xff]
        %v3981 = vld [vmem:[#allocation2 + $0x4a8] sm:$0xff]
        %v3982 = vld [vmem:[#allocation2 + $0x4b0] sm:$0xff]
        %v3983 = vld [vmem:[#allocation2 + $0x4b8] sm:$0xff]
        %v3984 = vld [vmem:[#allocation2 + $0x4c0] sm:$0xff]
        %v3985 = vld [vmem:[#allocation2 + $0x4c8] sm:$0xff]
        %v3986 = vld [vmem:[#allocation2 + $0x4d0] sm:$0xff]
        %v3987 = vld [vmem:[#allocation2 + $0x4d8] sm:$0xff]
        %v3988 = vld [vmem:[#allocation2 + $0x4e0] sm:$0xff]
        %v3989 = vld [vmem:[#allocation2 + $0x4e8] sm:$0xff]
        %v3990 = vld [vmem:[#allocation2 + $0x4f0] sm:$0xff]
        %v3991 = vld [vmem:[#allocation2 + $0x4f8] sm:$0xff]
        %v3992 = vld [vmem:[#allocation2 + $0x500] sm:$0xff]
        %v3993 = vld [vmem:[#allocation2 + $0x508] sm:$0xff]
        %v3994 = vld [vmem:[#allocation2 + $0x510] sm:$0xff]
        %v3995 = vld [vmem:[#allocation2 + $0x518] sm:$0xff]
        %v3996 = vld [vmem:[#allocation2 + $0x520] sm:$0xff]
        %v3997 = vld [vmem:[#allocation2 + $0x528] sm:$0xff]
        %v3998 = vld [vmem:[#allocation2 + $0x530] sm:$0xff]
        %v3999 = vld [vmem:[#allocation2 + $0x538] sm:$0xff]
        %v4000 = vld [vmem:[#allocation2 + $0x540] sm:$0xff]
        %v4001 = vld [vmem:[#allocation2 + $0x548] sm:$0xff]
        %v4002 = vld [vmem:[#allocation2 + $0x550] sm:$0xff]
        %v4003 = vld [vmem:[#allocation2 + $0x558] sm:$0xff]
        %v4004 = vld [vmem:[#allocation2 + $0x560] sm:$0xff]
        %v4005 = vld [vmem:[#allocation2 + $0x568] sm:$0xff]
        %v4006 = vld [vmem:[#allocation2 + $0x570] sm:$0xff]
        %v4007 = vld [vmem:[#allocation2 + $0x578] sm:$0xff]
        %v4008 = vld [vmem:[#allocation2 + $0x580] sm:$0xff]
        %v4009 = vld [vmem:[#allocation2 + $0x588] sm:$0xff]
        %v4010 = vld [vmem:[#allocation2 + $0x590] sm:$0xff]
        %v4011 = vld [vmem:[#allocation2 + $0x598] sm:$0xff]
        %v4012 = vld [vmem:[#allocation2 + $0x5a0] sm:$0xff]
        %v4013 = vld [vmem:[#allocation2 + $0x5a8] sm:$0xff]
        %v4014 = vld [vmem:[#allocation2 + $0x5b0] sm:$0xff]
        %v4015 = vld [vmem:[#allocation2 + $0x5b8] sm:$0xff]
        %v4016 = vld [vmem:[#allocation2 + $0x5c0] sm:$0xff]
        %v4017 = vld [vmem:[#allocation2 + $0x5c8] sm:$0xff]
        %v4018 = vld [vmem:[#allocation2 + $0x5d0] sm:$0xff]
        %v4019 = vld [vmem:[#allocation2 + $0x5d8] sm:$0xff]
        %v4020 = vld [vmem:[#allocation2 + $0x5e0] sm:$0xff]
        %v4021 = vld [vmem:[#allocation2 + $0x5e8] sm:$0xff]
        %v4022 = vld [vmem:[#allocation2 + $0x5f0] sm:$0xff]
        %v4023 = vld [vmem:[#allocation2 + $0x5f8] sm:$0xff]
        %v4024 = vld [vmem:[#allocation2 + $0x600] sm:$0xff]
        %v4025 = vld [vmem:[#allocation2 + $0x608] sm:$0xff]
        %v4026 = vld [vmem:[#allocation2 + $0x610] sm:$0xff]
        %v4027 = vld [vmem:[#allocation2 + $0x618] sm:$0xff]
        %v4028 = vld [vmem:[#allocation2 + $0x620] sm:$0xff]
        %v4029 = vld [vmem:[#allocation2 + $0x628] sm:$0xff]
        %v4030 = vld [vmem:[#allocation2 + $0x630] sm:$0xff]
        %v4031 = vld [vmem:[#allocation2 + $0x638] sm:$0xff]
        %v4032 = vld [vmem:[#allocation2 + $0x640] sm:$0xff]
        %v4033 = vld [vmem:[#allocation2 + $0x648] sm:$0xff]
        %v4034 = vld [vmem:[#allocation2 + $0x650] sm:$0xff]
        %v4035 = vld [vmem:[#allocation2 + $0x658] sm:$0xff]
        %v4036 = vld [vmem:[#allocation2 + $0x660] sm:$0xff]
        %v4037 = vld [vmem:[#allocation2 + $0x668] sm:$0xff]
        %v4038 = vld [vmem:[#allocation2 + $0x670] sm:$0xff]
        %v4039 = vld [vmem:[#allocation2 + $0x678] sm:$0xff]
        %v4040 = vld [vmem:[#allocation2 + $0x680] sm:$0xff]
        %v4041 = vld [vmem:[#allocation2 + $0x688] sm:$0xff]
        %v4042 = vld [vmem:[#allocation2 + $0x690] sm:$0xff]
        %v4043 = vld [vmem:[#allocation2 + $0x698] sm:$0xff]
        %v4044 = vld [vmem:[#allocation2 + $0x6a0] sm:$0xff]
        %v4045 = vld [vmem:[#allocation2 + $0x6a8] sm:$0xff]
        %v4046 = vld [vmem:[#allocation2 + $0x6b0] sm:$0xff]
        %v4047 = vld [vmem:[#allocation2 + $0x6b8] sm:$0xff]
        %v4048 = vld [vmem:[%s4] sm:$0xff]
        %4050 = vset.pattern.permute.xlu0 0
        %4051 = vperm.xlu0 %4050, %v4048
        %v4052 = vpop.permute.xlu0 %4051
        %vm4054 = vcmask 719872
        %v4056 = vsel %vm4054, %v3831, 0
        %4058 = vmatprep.subr.mxu0 %v3833
        %4059 = vmatpush1.msra.mxu0 %v3832
        %4060 = vmatprep.subr.mxu0 %v3841
        %4061 = vmatpush1.msra.mxu0 %v3840
        %4062 = vmatprep.subr.mxu0 %v3849
        %4063 = vmatpush1.msra.mxu0 %v3848
        %4064 = vmatprep.subr.mxu0 %v3857
        %4065 = vmatpush1.msra.mxu0 %v3856
        %4066 = vmatprep.subr.mxu0 %v3865
        %4067 = vmatpush1.msra.mxu0 %v3864
        %4068 = vmatprep.subr.mxu0 %v3873
        %4069 = vmatpush1.msra.mxu0 %v3872
        %4070 = vmatprep.subr.mxu0 %v3881
        %4071 = vmatpush1.msra.mxu0 %v3880
        %4072 = vmatprep.subr.mxu0 %v3889
        %4073 = vmatpush1.msra.mxu0 %v3888
        %4074 = vmatprep.subr.mxu0 %v3897
        %4075 = vmatpush1.msra.mxu0 %v3896
        %4076 = vmatprep.subr.mxu0 %v3905
        %4077 = vmatpush1.msra.mxu0 %v3904
        %4078 = vmatprep.subr.mxu0 %v3913
        %4079 = vmatpush1.msra.mxu0 %v3912
        %4080 = vmatprep.subr.mxu0 %v3921
        %4081 = vmatpush1.msra.mxu0 %v3920
        %4082 = vmatprep.subr.mxu0 %v3929
        %4083 = vmatpush1.msra.mxu0 %v3928
        %4084 = vmatprep.subr.mxu0 %v3937
        %4085 = vmatpush1.msra.mxu0 %v3936
        %4086 = vmatprep.subr.mxu0 %v3945
        %4087 = vmatpush1.msra.mxu0 %v3944
        %4088 = vmatprep.subr.mxu0 %v3953
        %4089 = vmatpush1.msra.mxu0 %v3952
        %4090 = vmatprep.subr.mxu0 %v3961
        %4091 = vmatpush1.msra.mxu0 %v3960
        %4092 = vmatprep.subr.mxu0 %v3969
        %4093 = vmatpush1.msra.mxu0 %v3968
        %4094 = vmatprep.subr.mxu0 %v3977
        %4095 = vmatpush1.msra.mxu0 %v3976
        %4096 = vmatprep.subr.mxu0 %v3985
        %4097 = vmatpush1.msra.mxu0 %v3984
        %4098 = vmatprep.subr.mxu0 %v3993
        %4099 = vmatpush1.msra.mxu0 %v3992
        %4100 = vmatprep.subr.mxu0 %v4001
        %4101 = vmatpush1.msra.mxu0 %v4000
        %4102 = vmatprep.subr.mxu0 %v4009
        %4103 = vmatpush1.msra.mxu0 %v4008
        %4104 = vmatprep.subr.mxu0 %v4017
        %4105 = vmatpush1.msra.mxu0 %v4016
        %4106 = vmatprep.subr.mxu0 %v4025
        %4107 = vmatpush1.msra.mxu0 %v4024
        %4108 = vmatprep.subr.mxu0 %v4033
        %4109 = vmatpush1.msra.mxu0 %v4032
        %4110 = vmatprep.subr.mxu0 %v4041
        %4111 = vmatpush1.msra.mxu0 %v4040
        %4112 = vmatprep.subr.mxu0 0.0
        %4113 = vmatpush1.msra.mxu0 0.0
        %4114 = vmatprep.subr.mxu0 0.0
        %4115 = vmatpush1.msra.mxu0 0.0
        %4116 = vmatprep.subr.mxu0 0.0
        %4117 = vmatpush1.msra.mxu0 0.0
        %4118 = vmatprep.subr.mxu0 0.0
        %4119 = vmatpush1.msra.mxu0 0.0
        %4120 = vmatprep.subr.mxu0 0.0
        %4121 = vmatpush1.msra.mxu0 0.0
        %4122 = vmatprep.mubr.f32.mxu0 %v4056
        %4123 = vmatmul.mubr.f32.gmra.mrb[0].mxu0 %v3830
        %v4124 = vpop.f32.mrb[0].mxu0
        %v4125 = vadd.f32 %v4052, %v4124
        %v4126 = vpop.f32.mrb[0].mxu0
        %v4127 = vadd.f32 %v4052, %v4126
        %4128 = vdwg.mxu0
        %4129 = vmatprep.subr.mxu0 %v3835
        %4130 = vmatpush1.msra.mxu0 %v3834
        %4131 = vmatprep.subr.mxu0 %v3843
        %4132 = vmatpush1.msra.mxu0 %v3842
        %4133 = vmatprep.subr.mxu0 %v3851
        %4134 = vmatpush1.msra.mxu0 %v3850
        %4135 = vmatprep.subr.mxu0 %v3859
        %4136 = vmatpush1.msra.mxu0 %v3858
        %4137 = vmatprep.subr.mxu0 %v3867
        %4138 = vmatpush1.msra.mxu0 %v3866
        %4139 = vmatprep.subr.mxu0 %v3875
        %4140 = vmatpush1.msra.mxu0 %v3874
        %4141 = vmatprep.subr.mxu0 %v3883
        %4142 = vmatpush1.msra.mxu0 %v3882
        %4143 = vmatprep.subr.mxu0 %v3891
        %4144 = vmatpush1.msra.mxu0 %v3890
        %4145 = vmatprep.subr.mxu0 %v3899
        %4146 = vmatpush1.msra.mxu0 %v3898
        %4147 = vmatprep.subr.mxu0 %v3907
        %4148 = vmatpush1.msra.mxu0 %v3906
        %4149 = vmatprep.subr.mxu0 %v3915
        %4150 = vmatpush1.msra.mxu0 %v3914
        %4151 = vmatprep.subr.mxu0 %v3923
        %4152 = vmatpush1.msra.mxu0 %v3922
        %4153 = vmatprep.subr.mxu0 %v3931
        %4154 = vmatpush1.msra.mxu0 %v3930
        %4155 = vmatprep.subr.mxu0 %v3939
        %4156 = vmatpush1.msra.mxu0 %v3938
        %4157 = vmatprep.subr.mxu0 %v3947
        %4158 = vmatpush1.msra.mxu0 %v3946
        %4159 = vmatprep.subr.mxu0 %v3955
        %4160 = vmatpush1.msra.mxu0 %v3954
        %4161 = vmatprep.subr.mxu0 %v3963
        %4162 = vmatpush1.msra.mxu0 %v3962
        %4163 = vmatprep.subr.mxu0 %v3971
        %4164 = vmatpush1.msra.mxu0 %v3970
        %4165 = vmatprep.subr.mxu0 %v3979
        %4166 = vmatpush1.msra.mxu0 %v3978
        %4167 = vmatprep.subr.mxu0 %v3987
        %4168 = vmatpush1.msra.mxu0 %v3986
        %4169 = vmatprep.subr.mxu0 %v3995
        %4170 = vmatpush1.msra.mxu0 %v3994
        %4171 = vmatprep.subr.mxu0 %v4003
        %4172 = vmatpush1.msra.mxu0 %v4002
        %4173 = vmatprep.subr.mxu0 %v4011
        %4174 = vmatpush1.msra.mxu0 %v4010
        %4175 = vmatprep.subr.mxu0 %v4019
        %4176 = vmatpush1.msra.mxu0 %v4018
        %4177 = vmatprep.subr.mxu0 %v4027
        %4178 = vmatpush1.msra.mxu0 %v4026
        %4179 = vmatprep.subr.mxu0 %v4035
        %4180 = vmatpush1.msra.mxu0 %v4034
        %4181 = vmatprep.subr.mxu0 %v4043
        %4182 = vmatpush1.msra.mxu0 %v4042
        %4183 = vmatprep.subr.mxu0 0.0
        %4184 = vmatpush1.msra.mxu0 0.0
        %4185 = vmatprep.subr.mxu0 0.0
        %4186 = vmatpush1.msra.mxu0 0.0
        %4187 = vmatprep.subr.mxu0 0.0
        %4188 = vmatpush1.msra.mxu0 0.0
        %4189 = vmatprep.subr.mxu0 0.0
        %4190 = vmatpush1.msra.mxu0 0.0
        %4191 = vmatprep.subr.mxu0 0.0
        %4192 = vmatpush1.msra.mxu0 0.0
        %4193 = vmatprep.mubr.f32.mxu0 %v4056
        %4194 = vmatmul.mubr.f32.gmra.mrb[0].mxu0 %v3830
        %v4195 = vpop.f32.mrb[0].mxu0
        %v4196 = vadd.f32 %v4052, %v4195
        %v4197 = vpop.f32.mrb[0].mxu0
        %v4198 = vadd.f32 %v4052, %v4197
        %4199 = vdwg.mxu0
        %4200 = vmatprep.subr.mxu0 %v3837
        %4201 = vmatpush1.msra.mxu0 %v3836
        %4202 = vmatprep.subr.mxu0 %v3845
        %4203 = vmatpush1.msra.mxu0 %v3844
        %4204 = vmatprep.subr.mxu0 %v3853
        %4205 = vmatpush1.msra.mxu0 %v3852
        %4206 = vmatprep.subr.mxu0 %v3861
        %4207 = vmatpush1.msra.mxu0 %v3860
        %4208 = vmatprep.subr.mxu0 %v3869
        %4209 = vmatpush1.msra.mxu0 %v3868
        %4210 = vmatprep.subr.mxu0 %v3877
        %4211 = vmatpush1.msra.mxu0 %v3876
        %4212 = vmatprep.subr.mxu0 %v3885
        %4213 = vmatpush1.msra.mxu0 %v3884
        %4214 = vmatprep.subr.mxu0 %v3893
        %4215 = vmatpush1.msra.mxu0 %v3892
        %4216 = vmatprep.subr.mxu0 %v3901
        %4217 = vmatpush1.msra.mxu0 %v3900
        %4218 = vmatprep.subr.mxu0 %v3909
        %4219 = vmatpush1.msra.mxu0 %v3908
        %4220 = vmatprep.subr.mxu0 %v3917
        %4221 = vmatpush1.msra.mxu0 %v3916
        %4222 = vmatprep.subr.mxu0 %v3925
        %4223 = vmatpush1.msra.mxu0 %v3924
        %4224 = vmatprep.subr.mxu0 %v3933
        %4225 = vmatpush1.msra.mxu0 %v3932
        %4226 = vmatprep.subr.mxu0 %v3941
        %4227 = vmatpush1.msra.mxu0 %v3940
        %4228 = vmatprep.subr.mxu0 %v3949
        %4229 = vmatpush1.msra.mxu0 %v3948
        %4230 = vmatprep.subr.mxu0 %v3957
        %4231 = vmatpush1.msra.mxu0 %v3956
        %4232 = vmatprep.subr.mxu0 %v3965
        %4233 = vmatpush1.msra.mxu0 %v3964
        %4234 = vmatprep.subr.mxu0 %v3973
        %4235 = vmatpush1.msra.mxu0 %v3972
        %4236 = vmatprep.subr.mxu0 %v3981
        %4237 = vmatpush1.msra.mxu0 %v3980
        %4238 = vmatprep.subr.mxu0 %v3989
        %4239 = vmatpush1.msra.mxu0 %v3988
        %4240 = vmatprep.subr.mxu0 %v3997
        %4241 = vmatpush1.msra.mxu0 %v3996
        %4242 = vmatprep.subr.mxu0 %v4005
        %4243 = vmatpush1.msra.mxu0 %v4004
        %4244 = vmatprep.subr.mxu0 %v4013
        %4245 = vmatpush1.msra.mxu0 %v4012
        %4246 = vmatprep.subr.mxu0 %v4021
        %4247 = vmatpush1.msra.mxu0 %v4020
        %4248 = vmatprep.subr.mxu0 %v4029
        %4249 = vmatpush1.msra.mxu0 %v4028
        %4250 = vmatprep.subr.mxu0 %v4037
        %4251 = vmatpush1.msra.mxu0 %v4036
        %4252 = vmatprep.subr.mxu0 %v4045
        %4253 = vmatpush1.msra.mxu0 %v4044
        %4254 = vmatprep.subr.mxu0 0.0
        %4255 = vmatpush1.msra.mxu0 0.0
        %4256 = vmatprep.subr.mxu0 0.0
        %4257 = vmatpush1.msra.mxu0 0.0
        %4258 = vmatprep.subr.mxu0 0.0
        %4259 = vmatpush1.msra.mxu0 0.0
        %4260 = vmatprep.subr.mxu0 0.0
        %4261 = vmatpush1.msra.mxu0 0.0
        %4262 = vmatprep.subr.mxu0 0.0
        %4263 = vmatpush1.msra.mxu0 0.0
        %4264 = vmatprep.mubr.f32.mxu0 %v4056
        %4265 = vmatmul.mubr.f32.gmra.mrb[0].mxu0 %v3830
        %v4266 = vpop.f32.mrb[0].mxu0
        %v4267 = vadd.f32 %v4052, %v4266
        %v4268 = vpop.f32.mrb[0].mxu0
        %v4269 = vadd.f32 %v4052, %v4268
        %4270 = vdwg.mxu0
        %4271 = vmatprep.subr.mxu0 %v3839
        %4272 = vmatpush1.msra.mxu0 %v3838
        %4273 = vmatprep.subr.mxu0 %v3847
        %4274 = vmatpush1.msra.mxu0 %v3846
        %4275 = vmatprep.subr.mxu0 %v3855
        %4276 = vmatpush1.msra.mxu0 %v3854
        %4277 = vmatprep.subr.mxu0 %v3863
        %4278 = vmatpush1.msra.mxu0 %v3862
        %4279 = vmatprep.subr.mxu0 %v3871
        %4280 = vmatpush1.msra.mxu0 %v3870
        %4281 = vmatprep.subr.mxu0 %v3879
        %4282 = vmatpush1.msra.mxu0 %v3878
        %4283 = vmatprep.subr.mxu0 %v3887
        %4284 = vmatpush1.msra.mxu0 %v3886
        %4285 = vmatprep.subr.mxu0 %v3895
        %4286 = vmatpush1.msra.mxu0 %v3894
        %4287 = vmatprep.subr.mxu0 %v3903
        %4288 = vmatpush1.msra.mxu0 %v3902
        %4289 = vmatprep.subr.mxu0 %v3911
        %4290 = vmatpush1.msra.mxu0 %v3910
        %4291 = vmatprep.subr.mxu0 %v3919
        %4292 = vmatpush1.msra.mxu0 %v3918
        %4293 = vmatprep.subr.mxu0 %v3927
        %4294 = vmatpush1.msra.mxu0 %v3926
        %4295 = vmatprep.subr.mxu0 %v3935
        %4296 = vmatpush1.msra.mxu0 %v3934
        %4297 = vmatprep.subr.mxu0 %v3943
        %4298 = vmatpush1.msra.mxu0 %v3942
        %4299 = vmatprep.subr.mxu0 %v3951
        %4300 = vmatpush1.msra.mxu0 %v3950
        %4301 = vmatprep.subr.mxu0 %v3959
        %4302 = vmatpush1.msra.mxu0 %v3958
        %4303 = vmatprep.subr.mxu0 %v3967
        %4304 = vmatpush1.msra.mxu0 %v3966
        %4305 = vmatprep.subr.mxu0 %v3975
        %4306 = vmatpush1.msra.mxu0 %v3974
        %4307 = vmatprep.subr.mxu0 %v3983
        %4308 = vmatpush1.msra.mxu0 %v3982
        %4309 = vmatprep.subr.mxu0 %v3991
        %4310 = vmatpush1.msra.mxu0 %v3990
        %4311 = vmatprep.subr.mxu0 %v3999
        %4312 = vmatpush1.msra.mxu0 %v3998
        %4313 = vmatprep.subr.mxu0 %v4007
        %4314 = vmatpush1.msra.mxu0 %v4006
        %4315 = vmatprep.subr.mxu0 %v4015
        %4316 = vmatpush1.msra.mxu0 %v4014
        %4317 = vmatprep.subr.mxu0 %v4023
        %4318 = vmatpush1.msra.mxu0 %v4022
        %4319 = vmatprep.subr.mxu0 %v4031
        %4320 = vmatpush1.msra.mxu0 %v4030
        %4321 = vmatprep.subr.mxu0 %v4039
        %4322 = vmatpush1.msra.mxu0 %v4038
        %4323 = vmatprep.subr.mxu0 %v4047
        %4324 = vmatpush1.msra.mxu0 %v4046
        %4325 = vmatprep.subr.mxu0 0.0
        %4326 = vmatpush1.msra.mxu0 0.0
        %4327 = vmatprep.subr.mxu0 0.0
        %4328 = vmatpush1.msra.mxu0 0.0
        %4329 = vmatprep.subr.mxu0 0.0
        %4330 = vmatpush1.msra.mxu0 0.0
        %4331 = vmatprep.subr.mxu0 0.0
        %4332 = vmatpush1.msra.mxu0 0.0
        %4333 = vmatprep.subr.mxu0 0.0
        %4334 = vmatpush1.msra.mxu0 0.0
        %4335 = vmatprep.mubr.f32.mxu0 %v4056
        %4336 = vmatmul.mubr.f32.gmra.mrb[0].mxu0 %v3830
        %v4337 = vpop.f32.mrb[0].mxu0
        %v4338 = vadd.f32 %v4052, %v4337
        %v4339 = vpop.f32.mrb[0].mxu0
        %v4340 = vadd.f32 %v4052, %v4339
        %4341 = vdwg.mxu0
        %vm4342 = vcmp.ge.f32.partialorder %v4125, 0.0
        %vm4343 = vcmp.ge.f32.partialorder %v4127, 0.0
        %vm4344 = vcmp.ge.f32.partialorder %v4196, 0.0
        %vm4345 = vcmp.ge.f32.partialorder %v4198, 0.0
        %vm4346 = vcmp.ge.f32.partialorder %v4267, 0.0
        %vm4347 = vcmp.ge.f32.partialorder %v4269, 0.0
        %vm4348 = vcmp.ge.f32.partialorder %v4338, 0.0
        %vm4349 = vcmp.ge.f32.partialorder %v4340, 0.0
        %v4350 = vmul.f32 %v4125, 0.01
        %v4351 = vmul.f32 %v4127, 0.01
        %v4352 = vmul.f32 %v4196, 0.01
        %v4353 = vmul.f32 %v4198, 0.01
        %v4354 = vmul.f32 %v4267, 0.01
        %v4355 = vmul.f32 %v4269, 0.01
        %v4356 = vmul.f32 %v4338, 0.01
        %v4357 = vmul.f32 %v4340, 0.01
        %v4358 = vsel %vm4342, %v4125, %v4350
        %v4359 = vsel %vm4343, %v4127, %v4351
        %v4360 = vsel %vm4344, %v4196, %v4352
        %v4361 = vsel %vm4345, %v4198, %v4353
        %v4362 = vsel %vm4346, %v4267, %v4354
        %v4363 = vsel %vm4347, %v4269, %v4355
        %v4364 = vsel %vm4348, %v4338, %v4356
        %v4365 = vsel %vm4349, %v4340, %v4357
        %4366 = vst [vmem:[#allocation3] sm:$0xff] 0.0
        %4367 = vst [vmem:[#allocation3 + $0x8] sm:$0xff] 0.0
        %4368 = vst [vmem:[#allocation3 + $0x10] sm:$0xff] 0.0
        %4369 = vst [vmem:[#allocation3 + $0x18] sm:$0xff] 0.0
        %4370 = vst [vmem:[#allocation3 + $0x20] sm:$0xff] 0.0
        %4371 = vst [vmem:[#allocation3 + $0x28] sm:$0xff] 0.0
        %4372 = vst [vmem:[#allocation3 + $0x30] sm:$0xff] 0.0
        %4373 = vst [vmem:[#allocation3 + $0x38] sm:$0xff] 0.0
        %4374 = vst [vmem:[#allocation3 + $0x40] sm:$0xff] 0.0
        %4375 = vst.msk [vmem:[#allocation3 + $0x48] sm:$0xff] %vm2259, 0.0
        %4376 = vst [vmem:[#allocation3] sm:$0xff] %v4358
        %4377 = vst [vmem:[#allocation3 + $0x8] sm:$0xff] %v4359
        %4378 = vst [vmem:[#allocation3 + $0x10] sm:$0xff] %v4360
        %4379 = vst [vmem:[#allocation3 + $0x18] sm:$0xff] %v4361
        %4380 = vst [vmem:[#allocation3 + $0x20] sm:$0xff] %v4362
        %4381 = vst [vmem:[#allocation3 + $0x28] sm:$0xff] %v4363
        %4382 = vst [vmem:[#allocation3 + $0x30] sm:$0xff] %v4364
        %4383 = vst.msk [vmem:[#allocation3 + $0x38] sm:$0xff] %vm2268, %v4365
        %v4384 = vld [vmem:[#allocation3] sm:$0xff]
        %v4385 = vld [vmem:[#allocation3 + $0x8] sm:$0xff]
        %v4386 = vld [vmem:[#allocation3 + $0x10] sm:$0xff]
        %v4387 = vld [vmem:[#allocation3 + $0x18] sm:$0xff]
        %v4388 = vld [vmem:[#allocation3 + $0x20] sm:$0xff]
        %v4389 = vld [vmem:[#allocation3 + $0x28] sm:$0xff]
        %v4390 = vld [vmem:[#allocation3 + $0x30] sm:$0xff]
        %v4391 = vld [vmem:[#allocation3 + $0x38] sm:$0xff]
        %4400 = vrot.lane.b32.xlu0 %v4384, 127
        %v4401 = vpop.permute.xlu0 %4400
        %4402 = vrot.lane.b32.xlu0 %v4385, 127
        %v4403 = vpop.permute.xlu0 %4402
        %4404 = vrot.lane.b32.xlu0 %v4386, 127
        %v4405 = vpop.permute.xlu0 %4404
        %4406 = vrot.lane.b32.xlu0 %v4387, 127
        %v4407 = vpop.permute.xlu0 %4406
        %4408 = vrot.lane.b32.xlu0 %v4388, 127
        %v4409 = vpop.permute.xlu0 %4408
        %4410 = vrot.lane.b32.xlu0 %v4389, 127
        %v4411 = vpop.permute.xlu0 %4410
        %4412 = vrot.lane.b32.xlu0 %v4390, 127
        %v4413 = vpop.permute.xlu0 %4412
        %4414 = vrot.lane.b32.xlu0 %v4391, 127
        %v4415 = vpop.permute.xlu0 %4414
        %v4416 = vsel %vm321, %v4401, %v4403
        %v4417 = vsel %vm321, %v4403, %v4405
        %v4418 = vsel %vm321, %v4405, %v4407
        %v4419 = vsel %vm321, %v4407, %v4409
        %v4420 = vsel %vm321, %v4409, %v4411
        %v4421 = vsel %vm321, %v4411, %v4413
        %v4422 = vsel %vm321, %v4413, %v4415
        %v4431 = vadd.f32 %v4358, %v4416
        %v4432 = vadd.f32 %v4359, %v4417
        %v4433 = vadd.f32 %v4360, %v4418
        %v4434 = vadd.f32 %v4361, %v4419
        %v4435 = vadd.f32 %v4362, %v4420
        %v4436 = vadd.f32 %v4363, %v4421
        %v4437 = vadd.f32 %v4364, %v4422
        %v4438 = vadd.f32 %v4365, %v4415
        %4439 = vrot.lane.b32.xlu0 %v4384, 118
        %v4440 = vpop.permute.xlu0 %4439
        %4441 = vrot.lane.b32.xlu0 %v4385, 118
        %v4442 = vpop.permute.xlu0 %4441
        %4443 = vrot.lane.b32.xlu0 %v4386, 118
        %v4444 = vpop.permute.xlu0 %4443
        %4445 = vrot.lane.b32.xlu0 %v4387, 118
        %v4446 = vpop.permute.xlu0 %4445
        %4447 = vrot.lane.b32.xlu0 %v4388, 118
        %v4448 = vpop.permute.xlu0 %4447
        %4449 = vrot.lane.b32.xlu0 %v4389, 118
        %v4450 = vpop.permute.xlu0 %4449
        %4451 = vrot.lane.b32.xlu0 %v4390, 118
        %v4452 = vpop.permute.xlu0 %4451
        %4453 = vrot.lane.b32.xlu0 %v4391, 118
        %v4454 = vpop.permute.xlu0 %4453
        %v4455 = vsel %vm426, %v4440, %v4442
        %v4456 = vsel %vm426, %v4442, %v4444
        %v4457 = vsel %vm426, %v4444, %v4446
        %v4458 = vsel %vm426, %v4446, %v4448
        %v4459 = vsel %vm426, %v4448, %v4450
        %v4460 = vsel %vm426, %v4450, %v4452
        %v4461 = vsel %vm426, %v4452, %v4454
        %v4470 = vadd.f32 %v4431, %v4455
        %v4471 = vadd.f32 %v4432, %v4456
        %v4472 = vadd.f32 %v4433, %v4457
        %v4473 = vadd.f32 %v4434, %v4458
        %v4474 = vadd.f32 %v4435, %v4459
        %v4475 = vadd.f32 %v4436, %v4460
        %v4476 = vadd.f32 %v4437, %v4461
        %v4477 = vadd.f32 %v4438, %v4454
        %4478 = vrot.lane.b32.xlu0 %v4384, 117
        %v4479 = vpop.permute.xlu0 %4478
        %4480 = vrot.lane.b32.xlu0 %v4385, 117
        %v4481 = vpop.permute.xlu0 %4480
        %4482 = vrot.lane.b32.xlu0 %v4386, 117
        %v4483 = vpop.permute.xlu0 %4482
        %4484 = vrot.lane.b32.xlu0 %v4387, 117
        %v4485 = vpop.permute.xlu0 %4484
        %4486 = vrot.lane.b32.xlu0 %v4388, 117
        %v4487 = vpop.permute.xlu0 %4486
        %4488 = vrot.lane.b32.xlu0 %v4389, 117
        %v4489 = vpop.permute.xlu0 %4488
        %4490 = vrot.lane.b32.xlu0 %v4390, 117
        %v4491 = vpop.permute.xlu0 %4490
        %4492 = vrot.lane.b32.xlu0 %v4391, 117
        %v4493 = vpop.permute.xlu0 %4492
        %v4494 = vsel %vm478, %v4479, %v4481
        %v4495 = vsel %vm478, %v4481, %v4483
        %v4496 = vsel %vm478, %v4483, %v4485
        %v4497 = vsel %vm478, %v4485, %v4487
        %v4498 = vsel %vm478, %v4487, %v4489
        %v4499 = vsel %vm478, %v4489, %v4491
        %v4500 = vsel %vm478, %v4491, %v4493
        %v4509 = vadd.f32 %v4470, %v4494
        %v4510 = vadd.f32 %v4471, %v4495
        %v4511 = vadd.f32 %v4472, %v4496
        %v4512 = vadd.f32 %v4473, %v4497
        %v4513 = vadd.f32 %v4474, %v4498
        %v4514 = vadd.f32 %v4475, %v4499
        %v4515 = vadd.f32 %v4476, %v4500
        %v4516 = vadd.f32 %v4477, %v4493
        %v4517 = vld [vmem:[#allocation3 + $0x40] sm:$0xff]
        %4519 = vrot.lane.b32.xlu0 %v4384, 28
        %v4520 = vpop.permute.xlu0 %4519
        %4521 = vrot.lane.b32.xlu0 %v4385, 28
        %v4522 = vpop.permute.xlu0 %4521
        %4523 = vrot.lane.b32.xlu0 %v4386, 28
        %v4524 = vpop.permute.xlu0 %4523
        %4525 = vrot.lane.b32.xlu0 %v4387, 28
        %v4526 = vpop.permute.xlu0 %4525
        %4527 = vrot.lane.b32.xlu0 %v4388, 28
        %v4528 = vpop.permute.xlu0 %4527
        %4529 = vrot.lane.b32.xlu0 %v4389, 28
        %v4530 = vpop.permute.xlu0 %4529
        %4531 = vrot.lane.b32.xlu0 %v4390, 28
        %v4532 = vpop.permute.xlu0 %4531
        %4533 = vrot.lane.b32.xlu0 %v4391, 28
        %v4534 = vpop.permute.xlu0 %4533
        %4535 = vrot.lane.b32.xlu0 %v4517, 28
        %v4536 = vpop.permute.xlu0 %4535
        %v4537 = vsel %vm743, %v4520, %v4522
        %v4538 = vsel %vm743, %v4522, %v4524
        %v4539 = vsel %vm743, %v4524, %v4526
        %v4540 = vsel %vm743, %v4526, %v4528
        %v4541 = vsel %vm743, %v4528, %v4530
        %v4542 = vsel %vm743, %v4530, %v4532
        %v4543 = vsel %vm743, %v4532, %v4534
        %v4544 = vsel %vm743, %v4534, %v4536
        %v4553 = vadd.f32 %v4509, %v4537
        %v4554 = vadd.f32 %v4510, %v4538
        %v4555 = vadd.f32 %v4511, %v4539
        %v4556 = vadd.f32 %v4512, %v4540
        %v4557 = vadd.f32 %v4513, %v4541
        %v4558 = vadd.f32 %v4514, %v4542
        %v4559 = vadd.f32 %v4515, %v4543
        %v4560 = vadd.f32 %v4516, %v4544
        %4561 = vrot.lane.b32.xlu0 %v4384, 27
        %v4562 = vpop.permute.xlu0 %4561
        %4563 = vrot.lane.b32.xlu0 %v4385, 27
        %v4564 = vpop.permute.xlu0 %4563
        %4565 = vrot.lane.b32.xlu0 %v4386, 27
        %v4566 = vpop.permute.xlu0 %4565
        %4567 = vrot.lane.b32.xlu0 %v4387, 27
        %v4568 = vpop.permute.xlu0 %4567
        %4569 = vrot.lane.b32.xlu0 %v4388, 27
        %v4570 = vpop.permute.xlu0 %4569
        %4571 = vrot.lane.b32.xlu0 %v4389, 27
        %v4572 = vpop.permute.xlu0 %4571
        %4573 = vrot.lane.b32.xlu0 %v4390, 27
        %v4574 = vpop.permute.xlu0 %4573
        %4575 = vrot.lane.b32.xlu0 %v4391, 27
        %v4576 = vpop.permute.xlu0 %4575
        %4577 = vrot.lane.b32.xlu0 %v4517, 27
        %v4578 = vpop.permute.xlu0 %4577
        %v4579 = vsel %vm800, %v4562, %v4564
        %v4580 = vsel %vm800, %v4564, %v4566
        %v4581 = vsel %vm800, %v4566, %v4568
        %v4582 = vsel %vm800, %v4568, %v4570
        %v4583 = vsel %vm800, %v4570, %v4572
        %v4584 = vsel %vm800, %v4572, %v4574
        %v4585 = vsel %vm800, %v4574, %v4576
        %v4586 = vsel %vm800, %v4576, %v4578
        %v4595 = vadd.f32 %v4553, %v4579
        %v4596 = vadd.f32 %v4554, %v4580
        %v4597 = vadd.f32 %v4555, %v4581
        %v4598 = vadd.f32 %v4556, %v4582
        %v4599 = vadd.f32 %v4557, %v4583
        %v4600 = vadd.f32 %v4558, %v4584
        %v4601 = vadd.f32 %v4559, %v4585
        %v4602 = vadd.f32 %v4560, %v4586
        %4603 = vrot.lane.b32.xlu0 %v4384, 18
        %v4604 = vpop.permute.xlu0 %4603
        %4605 = vrot.lane.b32.xlu0 %v4385, 18
        %v4606 = vpop.permute.xlu0 %4605
        %4607 = vrot.lane.b32.xlu0 %v4386, 18
        %v4608 = vpop.permute.xlu0 %4607
        %4609 = vrot.lane.b32.xlu0 %v4387, 18
        %v4610 = vpop.permute.xlu0 %4609
        %4611 = vrot.lane.b32.xlu0 %v4388, 18
        %v4612 = vpop.permute.xlu0 %4611
        %4613 = vrot.lane.b32.xlu0 %v4389, 18
        %v4614 = vpop.permute.xlu0 %4613
        %4615 = vrot.lane.b32.xlu0 %v4390, 18
        %v4616 = vpop.permute.xlu0 %4615
        %4617 = vrot.lane.b32.xlu0 %v4391, 18
        %v4618 = vpop.permute.xlu0 %4617
        %4619 = vrot.lane.b32.xlu0 %v4517, 18
        %v4620 = vpop.permute.xlu0 %4619
        %v4621 = vsel %vm915, %v4604, %v4606
        %v4622 = vsel %vm915, %v4606, %v4608
        %v4623 = vsel %vm915, %v4608, %v4610
        %v4624 = vsel %vm915, %v4610, %v4612
        %v4625 = vsel %vm915, %v4612, %v4614
        %v4626 = vsel %vm915, %v4614, %v4616
        %v4627 = vsel %vm915, %v4616, %v4618
        %v4628 = vsel %vm915, %v4618, %v4620
        %v4637 = vadd.f32 %v4595, %v4621
        %v4638 = vadd.f32 %v4596, %v4622
        %v4639 = vadd.f32 %v4597, %v4623
        %v4640 = vadd.f32 %v4598, %v4624
        %v4641 = vadd.f32 %v4599, %v4625
        %v4642 = vadd.f32 %v4600, %v4626
        %v4643 = vadd.f32 %v4601, %v4627
        %v4644 = vadd.f32 %v4602, %v4628
        %4645 = vrot.lane.b32.xlu0 %v4384, 17
        %v4646 = vpop.permute.xlu0 %4645
        %4647 = vrot.lane.b32.xlu0 %v4385, 17
        %v4648 = vpop.permute.xlu0 %4647
        %4649 = vrot.lane.b32.xlu0 %v4386, 17
        %v4650 = vpop.permute.xlu0 %4649
        %4651 = vrot.lane.b32.xlu0 %v4387, 17
        %v4652 = vpop.permute.xlu0 %4651
        %4653 = vrot.lane.b32.xlu0 %v4388, 17
        %v4654 = vpop.permute.xlu0 %4653
        %4655 = vrot.lane.b32.xlu0 %v4389, 17
        %v4656 = vpop.permute.xlu0 %4655
        %4657 = vrot.lane.b32.xlu0 %v4390, 17
        %v4658 = vpop.permute.xlu0 %4657
        %4659 = vrot.lane.b32.xlu0 %v4391, 17
        %v4660 = vpop.permute.xlu0 %4659
        %4661 = vrot.lane.b32.xlu0 %v4517, 17
        %v4662 = vpop.permute.xlu0 %4661
        %v4663 = vsel %vm973, %v4646, %v4648
        %v4664 = vsel %vm973, %v4648, %v4650
        %v4665 = vsel %vm973, %v4650, %v4652
        %v4666 = vsel %vm973, %v4652, %v4654
        %v4667 = vsel %vm973, %v4654, %v4656
        %v4668 = vsel %vm973, %v4656, %v4658
        %v4669 = vsel %vm973, %v4658, %v4660
        %v4670 = vsel %vm973, %v4660, %v4662
        %v4679 = vadd.f32 %v4637, %v4663
        %v4680 = vadd.f32 %v4638, %v4664
        %v4681 = vadd.f32 %v4639, %v4665
        %v4682 = vadd.f32 %v4640, %v4666
        %v4683 = vadd.f32 %v4641, %v4667
        %v4684 = vadd.f32 %v4642, %v4668
        %v4685 = vadd.f32 %v4643, %v4669
        %v4686 = vadd.f32 %v4644, %v4670
        %v4687 = vmul.f32 %v4679, 0.125
        %v4688 = vmul.f32 %v4680, 0.125
        %v4689 = vmul.f32 %v4681, 0.125
        %v4690 = vmul.f32 %v4682, 0.125
        %v4691 = vmul.f32 %v4683, 0.125
        %v4692 = vmul.f32 %v4684, 0.125
        %v4693 = vmul.f32 %v4685, 0.125
        %v4694 = vmul.f32 %v4686, 0.125
        %4695 = vst [vmem:[%s267] sm:$0xff] %v4687
        %4696 = vst [vmem:[%s267 + $0x8] sm:$0xff] %v4688
        %4697 = vst [vmem:[%s267 + $0x10] sm:$0xff] %v4689
        %4698 = vst [vmem:[%s267 + $0x18] sm:$0xff] %v4690
        %4699 = vst [vmem:[%s267 + $0x20] sm:$0xff] %v4691
        %4700 = vst [vmem:[%s267 + $0x28] sm:$0xff] %v4692
        %4701 = vst [vmem:[%s267 + $0x30] sm:$0xff] %v4693
        %4702 = vst.msk [vmem:[%s267 + $0x38] sm:$0xff] %vm2268, %v4694
        %s4703 = sand.u32 %s162, 1
        %s4704 = scalar_lea.sflag [#allocation6], %s4703
        %s4705 = sand.u32 %s162, 1
        %s4706 = smul.addr %s4705, 64
        %s4707 = scalar_lea.vmem [#allocation7], %s4706
        // Predicated region
        $region49: #{tpu_custom_call.1} parent=43 // pred_check
          %p4708 = pneg %p172
        $region50: #{tpu_custom_call.1} parent=43 // pred_check_branch
          %4710 = sbr.rel (%p4708) target = $region52
        $region51: #{tpu_custom_call.1} parent=43 // pred_region
          %s4712 = ssub.s32 1024, 1024
          %4713 = vsyncadd %s4704, %s4712
          %s4714 = smul.addr %s23, 8
          %s4715 = smul.addr %s4714, 128
          %s4716 = scalar_lea.hbm %s6, %s4715
          %s4718 = sshll.u32 %s4707, 4
          %s4719 = int_to_ptr.vmem [resolvable:$true] %s4718
          %4721 = dma.vmem_to_hbm [thread:$0]  %s4719, 1024, %s4716, %s4704
        $region52: #{tpu_custom_call.1} parent=43 // pred_fallthru
          _
      $region44: #{tpu_custom_call.1} parent=5 // pred_fallthru
        _
      %p4722 = scmp.le.s32.totalorder 2, %s18
      // Predicated region
      $region53: #{tpu_custom_call.1} parent=5 // pred_check
        %p4723 = pneg %p4722
      $region54: #{tpu_custom_call.1} parent=5 // pred_check_branch
        %4725 = sbr.rel (%p4723) target = $region56
      $region55: #{tpu_custom_call.1} parent=5 // pred_region
        %s4726 = ssub.s32 %s18, 2
        // Predicated region
        $region57: #{tpu_custom_call.1} parent=55 // pred_check
          %p4727 = pneg %p178
        $region58: #{tpu_custom_call.1} parent=55 // pred_check_branch
          %4729 = sbr.rel (%p4727) target = $region60
        $region59: #{tpu_custom_call.1} parent=55 // pred_region
          %s4730 = sand.u32 %s163, 1
          %s4731 = scalar_lea.sflag [#allocation6], %s4730
          %s4732 = sand.u32 %s163, 1
          %s4733 = smul.addr %s4732, 64
          %s4734 = scalar_lea.vmem [#allocation7], %s4733
          %4735 = dma.done %s4731, 1024
        $region60: #{tpu_custom_call.1} parent=55 // pred_fallthru
          _
      $region56: #{tpu_custom_call.1} parent=5 // pred_fallthru
        _
    $region6: #{tpu_custom_call.1} parent=1 // loop_footer
      %s22 = sadd.s32 1, %s18
    $region7: #{tpu_custom_call.1} parent=1 // loop_footer_branch
      %17 = sbr.rel target = $region3
    $region8: #{tpu_custom_call.1} parent=1 // loop_exit
      _
    %4736 = vsyncpa [#allocation5], 1
    %s4737 = scalar_lea.sflag [#allocation5], 1
    %4738 = vsyncpa %s4737, 1
    %4739 = vsyncpa [#allocation6], 1
    %s4740 = scalar_lea.sflag [#allocation6], 1
    %4741 = vsyncpa %s4740, 1

</llo_original>
